<compile_context>
chip_gen: v6e
topology: v6e:2x2x1
jax: 0.10.0
libtpu: 0.0.40
codegen_flags: <defaults>
</compile_context>

<pallas_src>
import functools
import math

import jax
import jax.numpy as jnp
from jax.experimental import pallas as pl
from jax.experimental.pallas import tpu as pltpu


def _attn_kernel(x_ref, wqkv_ref, qkv_scale_ref, wo_ref, wo_scale_ref,
                 cos_ref, sin_ref, out_ref, acc_ref, *, head_dim, hps):
    g = pl.program_id(1)

    @pl.when(g == 0)
    def _init():
        acc_ref[...] = jnp.zeros_like(acc_ref)

    # Fused head-group QKV projection: one bf16 MXU matmul, K = hidden size,
    # N = 3 * hps * head_dim (768 for hps=2, hd=128 -> multiple of 256).
    x = x_ref[0]                                              # [T, H] bf16
    T = x.shape[0]
    w_qkv = wqkv_ref[0].astype(jnp.bfloat16)                  # [H, 3*gd] int8->bf16
    qkv = jnp.dot(x, w_qkv, preferred_element_type=jnp.float32)   # [T, 3*gd] f32
    # Per-output-channel dequant scale (softmax 1/sqrt(hd) pre-folded into q).
    qkv = qkv * qkv_scale_ref[0]                              # broadcast [1, 3*gd]

    # Causal additive mask, rebuilt in-kernel (two VPU iota + select ops,
    # hidden under the MXU) instead of a resident [T, T] f32 HBM table.
    row = jax.lax.broadcasted_iota(jnp.int32, (T, T), 0)
    col = jax.lax.broadcasted_iota(jnp.int32, (T, T), 1)
    bias = jnp.where(row >= col, 0.0, -1e30).astype(jnp.float32)

    cos = cos_ref[...]                                        # [T, hd]
    sin = sin_ref[...]                                        # [T, hd] (sign-folded)
    half = head_dim // 2
    gd = hps * head_dim

    # Per-head attention within the group (static 2-iteration loop).
    o_parts = []
    for h in range(hps):
        q = qkv[:, h * head_dim:(h + 1) * head_dim]
        k = qkv[:, gd + h * head_dim:gd + (h + 1) * head_dim]
        v = qkv[:, 2 * gd + h * head_dim:2 * gd + (h + 1) * head_dim]

        # NeoX rotary embedding, full-width via XLU roll:
        #   rot(x) = x * [cos, cos] + roll(x, hd/2) * [-sin, sin]
        q = q * cos + pltpu.roll(q, half, 1) * sin
        k = k * cos + pltpu.roll(k, half, 1) * sin

        # Causal scaled-dot-product attention (scale already folded into q).
        s = jax.lax.dot_general(q.astype(jnp.bfloat16), k.astype(jnp.bfloat16),
                                (((1,), (1,)), ((), ())),
                                preferred_element_type=jnp.float32)   # [T, T]
        s = s + bias
        m = jnp.max(s, axis=-1, keepdims=True)
        p = jnp.exp(s - m)
        l = jnp.sum(p, axis=-1, keepdims=True)
        o = jnp.dot(p.astype(jnp.bfloat16), v.astype(jnp.bfloat16),
                    preferred_element_type=jnp.float32)               # [T, hd]
        # Exact reciprocal: l is only [T, 1], so exactness is ~free; the
        # normalization multiply hits the [T, hd] output, not [T, T] weights.
        o = o * pl.reciprocal(l)
        o_parts.append(o.astype(jnp.bfloat16))

    o_group = jnp.concatenate(o_parts, axis=-1)               # [T, hps*hd] bf16

    # o_proj folded per head-group: acc += o_g @ Wo[g*gd:(g+1)*gd, :]
    # (K = hps*head_dim = 256 for hps=2 -> full 256-wide MXU on v6e/v7x).
    w_o = wo_ref[0].astype(jnp.bfloat16)                      # [gd, H]
    acc_ref[...] += jnp.dot(o_group, w_o, preferred_element_type=jnp.float32)

    @pl.when(g == pl.num_programs(1) - 1)
    def _finalize():
        out_ref[0] = (acc_ref[...] * wo_scale_ref[...]).astype(out_ref.dtype)


def eetq_llama_attention(hidden, wq_i8, q_scale, wk_i8, k_scale,
                         wv_i8, v_scale, wo_i8, o_scale, cos, sin, num_heads):
    """hidden: [B, T, H] (Batch x Time x Channel).

    w*_i8: int8 weights stored as [in, out] (= nn.Linear weight.T).
    *_scale: per-output-channel dequant scales, shape [out].
    cos/sin: rotary tables at positions arange(T), shape [T, head_dim // 2].
    """
    B, T, H = hidden.shape
    head_dim = H // num_heads
    sm_scale = 1.0 / math.sqrt(head_dim)

    # Heads per grid step: 2 when possible (256-wide MXU alignment on
    # v6e/v7x); falls back to 1 for odd head counts.
    hps = 2 if num_heads % 2 == 0 else 1
    num_groups = num_heads // hps
    gd = hps * head_dim

    # --- host-side weight re-layout (pure reshapes/concats, done once) ------
    def per_group(w):  # [H, H] -> [num_groups, H, hps*head_dim]
        return w.reshape(H, num_groups, gd).transpose(1, 0, 2)

    # Fused per-group QKV int8 weight: [num_groups, H, 3*gd]
    # (column order within a group: q_h0..q_h{hps-1}, k_*, v_*).
    wqkv = jnp.concatenate(
        [per_group(wq_i8), per_group(wk_i8), per_group(wv_i8)], axis=-1)
    # Per-channel scales; attention softmax scale folded into the q columns.
    qkv_scale = jnp.concatenate(
        [(q_scale * sm_scale).reshape(num_groups, 1, gd),
         k_scale.reshape(num_groups, 1, gd),
         v_scale.reshape(num_groups, 1, gd)], axis=-1).astype(jnp.float32)
    # o_proj input dim split per group: [num_groups, gd, H].
    wo_groups = wo_i8.reshape(num_groups, gd, H)
    wo_scale = o_scale.reshape(1, H).astype(jnp.float32)

    # Full-width rotary tables: cos duplicated, sin sign-folded for roll-RoPE.
    cos_full = jnp.concatenate([cos, cos], axis=-1).astype(jnp.float32)
    sin_signed = jnp.concatenate([-sin, sin], axis=-1).astype(jnp.float32)

    # Activations go in as bf16 (MXU input dtype): halves x HBM/VMEM traffic
    # and removes the per-step f32->bf16 cast.
    hidden_bf16 = hidden.astype(jnp.bfloat16)

    kernel = functools.partial(_attn_kernel, head_dim=head_dim, hps=hps)

    return pl.pallas_call(
        kernel,
        out_shape=jax.ShapeDtypeStruct((B, T, H), hidden.dtype),
        grid_spec=pltpu.PrefetchScalarGridSpec(
            num_scalar_prefetch=0,
            grid=(B, num_groups),
            in_specs=[
                pl.BlockSpec((1, T, H), lambda b, g: (b, 0, 0)),           # x (bf16)
                pl.BlockSpec((1, H, 3 * gd), lambda b, g: (g, 0, 0)),      # fused QKV int8
                pl.BlockSpec((1, 1, 3 * gd), lambda b, g: (g, 0, 0)),      # QKV dequant scales
                pl.BlockSpec((1, gd, H), lambda b, g: (g, 0, 0)),          # o_proj int8 slab
                pl.BlockSpec((1, H), lambda b, g: (0, 0)),                 # o_proj scale
                pl.BlockSpec((T, head_dim), lambda b, g: (0, 0)),          # cos (full width)
                pl.BlockSpec((T, head_dim), lambda b, g: (0, 0)),          # sin (sign-folded)
            ],
            out_specs=pl.BlockSpec((1, T, H), lambda b, g: (b, 0, 0)),
            scratch_shapes=[pltpu.VMEM((T, H), jnp.float32)],              # o_proj accumulator
        ),
        compiler_params=pltpu.CompilerParams(
            # Head-group axis is a reduction into acc_ref -> must be
            # "arbitrary" and innermost; batch axis is independent.
            dimension_semantics=("parallel", "arbitrary"),
            # Explicit VMEM budget: fits v7x's 64 MiB physical with headroom,
            # well inside v5e/v6e's 128 MiB.
            vmem_limit_bytes=48 * 1024 * 1024),
    )(hidden_bf16, wqkv, qkv_scale, wo_groups, wo_scale, cos_full, sin_signed)


def _quantize_per_out_channel(w):
    """Symmetric int8 per-output-channel quantization of a [in, out] weight."""
    scale = jnp.max(jnp.abs(w), axis=0) / 127.0
    w_i8 = jnp.clip(jnp.round(w / scale), -127, 127).astype(jnp.int8)
    w_deq = w_i8.astype(jnp.float32) * scale
    return w_i8, scale.astype(jnp.float32), w_deq


def _reference(hidden, wq, wk, wv, wo, cos, sin, num_heads):
    """Pure-JAX f32 reference mirroring the PyTorch forward (dequant weights)."""
    B, T, H = hidden.shape
    hd = H // num_heads
    q = (hidden @ wq).reshape(B, T, num_heads, hd)
    k = (hidden @ wk).reshape(B, T, num_heads, hd)
    v = (hidden @ wv).reshape(B, T, num_heads, hd)

    def rope(x):
        x1, x2 = x[..., :hd // 2], x[..., hd // 2:]
        c = cos[None, :, None, :]
        s = sin[None, :, None, :]
        return jnp.concatenate([x1 * c - x2 * s, x2 * c + x1 * s], axis=-1)

    q, k = rope(q), rope(k)
    q = q.transpose(0, 2, 1, 3)
    k = k.transpose(0, 2, 1, 3)
    v = v.transpose(0, 2, 1, 3)
    s = jnp.einsum('bhqd,bhkd->bhqk', q, k) / math.sqrt(hd)
    mask = jnp.tril(jnp.ones((T, T), dtype=bool))
    s = jnp.where(mask[None, None], s, -jnp.inf)
    p = jax.nn.softmax(s, axis=-1)
    o = jnp.einsum('bhqk,bhkd->bhqd', p, v)
    o = o.transpose(0, 2, 1, 3).reshape(B, T, H)
    return o @ wo


if __name__ == "__main__":
    B, T, H, num_heads = 2, 128, 512, 4
    head_dim = H // num_heads

    key = jax.random.PRNGKey(0)
    k_x, k_q, k_k, k_v, k_o = jax.random.split(key, 5)
    hidden = jax.random.normal(k_x, (B, T, H), dtype=jnp.float32)
    # Dense fp32 "master" weights stored as [in, out] (= nn.Linear weight.T).
    wq = jax.random.normal(k_q, (H, H), dtype=jnp.float32) * 0.03
    wk = jax.random.normal(k_k, (H, H), dtype=jnp.float32) * 0.03
    wv = jax.random.normal(k_v, (H, H), dtype=jnp.float32) * 0.03
    wo = jax.random.normal(k_o, (H, H), dtype=jnp.float32) * 0.03

    # EETQ-style int8 weight-only quantization, per-output-channel scales.
    wq_i8, q_scale, wq_deq = _quantize_per_out_channel(wq)
    wk_i8, k_scale, wk_deq = _quantize_per_out_channel(wk)
    wv_i8, v_scale, wv_deq = _quantize_per_out_channel(wv)
    wo_i8, o_scale, wo_deq = _quantize_per_out_channel(wo)

    # Rotary cos/sin cache (EETRotaryEmbedding, base=10000) at positions
    # arange(T).
    inv_freq = 1.0 / (10000.0 ** (jnp.arange(0, head_dim, 2,
                                              dtype=jnp.float32) / head_dim))
    positions = jnp.arange(T, dtype=jnp.float32)
    freqs = jnp.einsum('i,j->ij', positions, inv_freq)       # [T, head_dim//2]
    cos = jnp.cos(freqs)
    sin = jnp.sin(freqs)

    out = eetq_llama_attention(hidden, wq_i8, q_scale, wk_i8, k_scale,
                               wv_i8, v_scale, wo_i8, o_scale,
                               cos, sin, num_heads)
    out = jax.block_until_ready(out)

    ref = _reference(hidden, wq_deq, wk_deq, wv_deq, wo_deq, cos, sin,
                     num_heads)
    assert out.shape == (B, T, H)
    max_err = float(jnp.max(jnp.abs(out - ref)))
    # Kernel runs on the bf16 MXU path (f32 accumulation); compare against the
    # f32 reference with a correspondingly loose tolerance.
    assert jnp.allclose(out, ref, atol=5e-2, rtol=5e-2), (
        f"mismatch vs reference (max abs err {max_err})")
    print("KERNEL_OK")
</pallas_src>

<mosaic_0001>
module attributes {stable_mosaic.version = 11 : i64} {
  func.func @_attn_kernel(%arg0: i32, %arg1: i32, %arg2: memref<1x128x512xbf16, #tpu.memory_space<vmem>>, %arg3: memref<1x512x768xi8, #tpu.memory_space<vmem>>, %arg4: memref<1x1x768xf32, #tpu.memory_space<vmem>>, %arg5: memref<1x256x512xi8, #tpu.memory_space<vmem>>, %arg6: memref<1x512xf32, #tpu.memory_space<vmem>>, %arg7: memref<128x128xf32, #tpu.memory_space<vmem>>, %arg8: memref<128x128xf32, #tpu.memory_space<vmem>>, %arg9: memref<1x128x512xf32, #tpu.memory_space<vmem>>, %arg10: memref<128x512xf32, #tpu.memory_space<vmem>>) attributes {dimension_semantics = [#tpu.dimension_semantics<parallel>, #tpu.dimension_semantics<arbitrary>], iteration_bounds = array<i64: 2, 2>, scalar_prefetch = 0 : i64, scratch_operands = 1 : i64, tpu.core_type = #tpu.core_type<tc>, window_params = [{transform_indices = @transform_0, window_bounds = array<i64: 1, 128, 512>}, {transform_indices = @transform_1, window_bounds = array<i64: 1, 512, 768>}, {transform_indices = @transform_2, window_bounds = array<i64: 1, 1, 768>}, {transform_indices = @transform_3, window_bounds = array<i64: 1, 256, 512>}, {pipeline_mode = #tpu.pipeline_mode<synchronous>, transform_indices = @transform_4, window_bounds = array<i64: 1, 512>}, {pipeline_mode = #tpu.pipeline_mode<synchronous>, transform_indices = @transform_5, window_bounds = array<i64: 128, 128>}, {pipeline_mode = #tpu.pipeline_mode<synchronous>, transform_indices = @transform_6, window_bounds = array<i64: 128, 128>}, {transform_indices = @transform_7, window_bounds = array<i64: 1, 128, 512>}]} {
    %c0_i32 = arith.constant 0 : i32
    %0 = arith.cmpi eq, %arg1, %c0_i32 : i32
    %1 = arith.extui %0 : i1 to i32
    %c0_i32_0 = arith.constant 0 : i32
    %2 = arith.cmpi ne, %1, %c0_i32_0 : i32
    scf.if %2 {
      %cst_35 = arith.constant 0.000000e+00 : f32
      %90 = vector.broadcast %cst_35 : f32 to vector<128x512xf32>
      %c0_36 = arith.constant 0 : index
      %c0_37 = arith.constant 0 : index
      %91 = vector.load %arg10[%c0_36, %c0_37] : memref<128x512xf32, #tpu.memory_space<vmem>>, vector<128x512xf32>
      tpu.vector_store %arg10[%c0_36, %c0_37], %90 {strides = array<i32>} : memref<128x512xf32, #tpu.memory_space<vmem>>, vector<128x512xf32>,
    } else {
    }
    %c0 = arith.constant 0 : index
    %c0_1 = arith.constant 0 : index
    %c0_2 = arith.constant 0 : index
    %3 = vector.load %arg2[%c0, %c0_1, %c0_2] : memref<1x128x512xbf16, #tpu.memory_space<vmem>>, vector<1x128x512xbf16>
    %4 = vector.shape_cast %3 : vector<1x128x512xbf16> to vector<128x512xbf16>
    %c0_3 = arith.constant 0 : index
    %c0_4 = arith.constant 0 : index
    %c0_5 = arith.constant 0 : index
    %5 = vector.load %arg3[%c0_3, %c0_4, %c0_5] : memref<1x512x768xi8, #tpu.memory_space<vmem>>, vector<1x512x768xi8>
    %6 = vector.shape_cast %5 : vector<1x512x768xi8> to vector<512x768xi8>
    %7 = arith.sitofp %6 : vector<512x768xi8> to vector<512x768xbf16>
    %cst = arith.constant dense<0.000000e+00> : vector<128x768xf32>
    %8 = tpu.matmul %4, %7, %cst {dimension_numbers = #tpu.dot_dimension_numbers<[1], [0], [0], [1], [0, 0, 1, 1], [], []>} : vector<128x512xbf16>, vector<512x768xbf16>, vector<128x768xf32> -> vector<128x768xf32>
    %c0_6 = arith.constant 0 : index
    %c0_7 = arith.constant 0 : index
    %c0_8 = arith.constant 0 : index
    %9 = vector.load %arg4[%c0_6, %c0_7, %c0_8] : memref<1x1x768xf32, #tpu.memory_space<vmem>>, vector<1x1x768xf32>
    %10 = vector.shape_cast %9 : vector<1x1x768xf32> to vector<1x768xf32>
    %11 = vector.broadcast %10 : vector<1x768xf32> to vector<128x768xf32>
    %12 = arith.mulf %8, %11 : vector<128x768xf32>
    %13 = tpu.iota {dimensions = array<i32: 0>} : vector<128x128xi32>
    %14 = tpu.iota {dimensions = array<i32: 1>} : vector<128x128xi32>
    %15 = arith.cmpi sge, %13, %14 : vector<128x128xi32>
    %cst_9 = arith.constant 0.000000e+00 : f32
    %cst_10 = arith.constant -1.000000e+30 : f32
    %16 = vector.broadcast %cst_9 : f32 to vector<128x128xf32>
    %17 = vector.broadcast %cst_10 : f32 to vector<128x128xf32>
    %18 = arith.select %15, %16, %17 : vector<128x128xi1>, vector<128x128xf32>
    %c0_11 = arith.constant 0 : index
    %c0_12 = arith.constant 0 : index
    %19 = vector.load %arg7[%c0_11, %c0_12] : memref<128x128xf32, #tpu.memory_space<vmem>>, vector<128x128xf32>
    %c0_13 = arith.constant 0 : index
    %c0_14 = arith.constant 0 : index
    %20 = vector.load %arg8[%c0_13, %c0_14] : memref<128x128xf32, #tpu.memory_space<vmem>>, vector<128x128xf32>
    %21 = vector.extract_strided_slice %12 {offsets = [0, 0], sizes = [128, 128], strides = [1, 1]} : vector<128x768xf32> to vector<128x128xf32>
    %22 = vector.extract_strided_slice %12 {offsets = [0, 256], sizes = [128, 128], strides = [1, 1]} : vector<128x768xf32> to vector<128x128xf32>
    %23 = vector.extract_strided_slice %12 {offsets = [0, 512], sizes = [128, 128], strides = [1, 1]} : vector<128x768xf32> to vector<128x128xf32>
    %24 = arith.mulf %21, %19 : vector<128x128xf32>
    %c64_i32 = arith.constant 64 : i32
    %25 = tpu.dynamic_rotate %21 by %c64_i32 dim 1 : vector<128x128xf32>, i32 -> vector<128x128xf32>
    %26 = arith.mulf %25, %20 : vector<128x128xf32>
    %27 = arith.addf %24, %26 : vector<128x128xf32>
    %28 = arith.mulf %22, %19 : vector<128x128xf32>
    %c64_i32_15 = arith.constant 64 : i32
    %29 = tpu.dynamic_rotate %22 by %c64_i32_15 dim 1 : vector<128x128xf32>, i32 -> vector<128x128xf32>
    %30 = arith.mulf %29, %20 : vector<128x128xf32>
    %31 = arith.addf %28, %30 : vector<128x128xf32>
    %32 = arith.truncf %27 : vector<128x128xf32> to vector<128x128xbf16>
    %33 = arith.truncf %31 : vector<128x128xf32> to vector<128x128xbf16>
    %cst_16 = arith.constant dense<0.000000e+00> : vector<128x128xf32>
    %34 = tpu.matmul %32, %33, %cst_16 {dimension_numbers = #tpu.dot_dimension_numbers<[1], [1], [0], [0], [0, 0, 1, 0], [], []>} : vector<128x128xbf16>, vector<128x128xbf16>, vector<128x128xf32> -> vector<128x128xf32>
    %35 = arith.addf %34, %18 : vector<128x128xf32>
    %cst_17 = arith.constant dense<0xFF800000> : vector<128xf32>
    %36 = vector.multi_reduction <maximumf>, %35, %cst_17 [1] : vector<128x128xf32> to vector<128xf32>
    %37 = vector.shape_cast %36 : vector<128xf32> to vector<128x1xf32>
    %38 = vector.broadcast %37 : vector<128x1xf32> to vector<128x128xf32>
    %39 = arith.subf %35, %38 : vector<128x128xf32>
    %40 = math.exp %39 : vector<128x128xf32>
    %cst_18 = arith.constant dense<0.000000e+00> : vector<128xf32>
    %41 = vector.multi_reduction <add>, %40, %cst_18 [1] : vector<128x128xf32> to vector<128xf32>
    %42 = vector.shape_cast %41 : vector<128xf32> to vector<128x1xf32>
    %43 = arith.truncf %40 : vector<128x128xf32> to vector<128x128xbf16>
    %44 = arith.truncf %23 : vector<128x128xf32> to vector<128x128xbf16>
    %cst_19 = arith.constant dense<0.000000e+00> : vector<128x128xf32>
    %45 = tpu.matmul %43, %44, %cst_19 {dimension_numbers = #tpu.dot_dimension_numbers<[1], [0], [0], [1], [0, 0, 1, 1], [], []>} : vector<128x128xbf16>, vector<128x128xbf16>, vector<128x128xf32> -> vector<128x128xf32>
    %46 = tpu.reciprocal %42 : vector<128x1xf32> -> vector<128x1xf32>
    %47 = vector.broadcast %46 : vector<128x1xf32> to vector<128x128xf32>
    %48 = arith.mulf %45, %47 : vector<128x128xf32>
    %49 = arith.truncf %48 : vector<128x128xf32> to vector<128x128xbf16>
    %50 = vector.extract_strided_slice %12 {offsets = [0, 128], sizes = [128, 128], strides = [1, 1]} : vector<128x768xf32> to vector<128x128xf32>
    %51 = vector.extract_strided_slice %12 {offsets = [0, 384], sizes = [128, 128], strides = [1, 1]} : vector<128x768xf32> to vector<128x128xf32>
    %52 = vector.extract_strided_slice %12 {offsets = [0, 640], sizes = [128, 128], strides = [1, 1]} : vector<128x768xf32> to vector<128x128xf32>
    %53 = arith.mulf %50, %19 : vector<128x128xf32>
    %c64_i32_20 = arith.constant 64 : i32
    %54 = tpu.dynamic_rotate %50 by %c64_i32_20 dim 1 : vector<128x128xf32>, i32 -> vector<128x128xf32>
    %55 = arith.mulf %54, %20 : vector<128x128xf32>
    %56 = arith.addf %53, %55 : vector<128x128xf32>
    %57 = arith.mulf %51, %19 : vector<128x128xf32>
    %c64_i32_21 = arith.constant 64 : i32
    %58 = tpu.dynamic_rotate %51 by %c64_i32_21 dim 1 : vector<128x128xf32>, i32 -> vector<128x128xf32>
    %59 = arith.mulf %58, %20 : vector<128x128xf32>
    %60 = arith.addf %57, %59 : vector<128x128xf32>
    %61 = arith.truncf %56 : vector<128x128xf32> to vector<128x128xbf16>
    %62 = arith.truncf %60 : vector<128x128xf32> to vector<128x128xbf16>
    %cst_22 = arith.constant dense<0.000000e+00> : vector<128x128xf32>
    %63 = tpu.matmul %61, %62, %cst_22 {dimension_numbers = #tpu.dot_dimension_numbers<[1], [1], [0], [0], [0, 0, 1, 0], [], []>} : vector<128x128xbf16>, vector<128x128xbf16>, vector<128x128xf32> -> vector<128x128xf32>
    %64 = arith.addf %63, %18 : vector<128x128xf32>
    %cst_23 = arith.constant dense<0xFF800000> : vector<128xf32>
    %65 = vector.multi_reduction <maximumf>, %64, %cst_23 [1] : vector<128x128xf32> to vector<128xf32>
    %66 = vector.shape_cast %65 : vector<128xf32> to vector<128x1xf32>
    %67 = vector.broadcast %66 : vector<128x1xf32> to vector<128x128xf32>
    %68 = arith.subf %64, %67 : vector<128x128xf32>
    %69 = math.exp %68 : vector<128x128xf32>
    %cst_24 = arith.constant dense<0.000000e+00> : vector<128xf32>
    %70 = vector.multi_reduction <add>, %69, %cst_24 [1] : vector<128x128xf32> to vector<128xf32>
    %71 = vector.shape_cast %70 : vector<128xf32> to vector<128x1xf32>
    %72 = arith.truncf %69 : vector<128x128xf32> to vector<128x128xbf16>
    %73 = arith.truncf %52 : vector<128x128xf32> to vector<128x128xbf16>
    %cst_25 = arith.constant dense<0.000000e+00> : vector<128x128xf32>
    %74 = tpu.matmul %72, %73, %cst_25 {dimension_numbers = #tpu.dot_dimension_numbers<[1], [0], [0], [1], [0, 0, 1, 1], [], []>} : vector<128x128xbf16>, vector<128x128xbf16>, vector<128x128xf32> -> vector<128x128xf32>
    %75 = tpu.reciprocal %71 : vector<128x1xf32> -> vector<128x1xf32>
    %76 = vector.broadcast %75 : vector<128x1xf32> to vector<128x128xf32>
    %77 = arith.mulf %74, %76 : vector<128x128xf32>
    %78 = arith.truncf %77 : vector<128x128xf32> to vector<128x128xbf16>
    %79 = tpu.concatenate %49, %78 in 1 : vector<128x128xbf16>, vector<128x128xbf16> -> vector<128x256xbf16>
    %c0_26 = arith.constant 0 : index
    %c0_27 = arith.constant 0 : index
    %c0_28 = arith.constant 0 : index
    %80 = vector.load %arg5[%c0_26, %c0_27, %c0_28] : memref<1x256x512xi8, #tpu.memory_space<vmem>>, vector<1x256x512xi8>
    %81 = vector.shape_cast %80 : vector<1x256x512xi8> to vector<256x512xi8>
    %82 = arith.sitofp %81 : vector<256x512xi8> to vector<256x512xbf16>
    %c0_29 = arith.constant 0 : index
    %c0_30 = arith.constant 0 : index
    %83 = vector.load %arg10[%c0_29, %c0_30] : memref<128x512xf32, #tpu.memory_space<vmem>>, vector<128x512xf32>
    %cst_31 = arith.constant dense<0.000000e+00> : vector<128x512xf32>
    %84 = tpu.matmul %79, %82, %cst_31 {dimension_numbers = #tpu.dot_dimension_numbers<[1], [0], [0], [1], [0, 0, 1, 1], [], []>} : vector<128x256xbf16>, vector<256x512xbf16>, vector<128x512xf32> -> vector<128x512xf32>
    %85 = arith.addf %83, %84 : vector<128x512xf32>
    %c0_32 = arith.constant 0 : index
    %c0_33 = arith.constant 0 : index
    %86 = vector.load %arg10[%c0_32, %c0_33] : memref<128x512xf32, #tpu.memory_space<vmem>>, vector<128x512xf32>
    tpu.vector_store %arg10[%c0_32, %c0_33], %85 {strides = array<i32>} : memref<128x512xf32, #tpu.memory_space<vmem>>, vector<128x512xf32>,
    %c1_i32 = arith.constant 1 : i32
    %87 = arith.cmpi eq, %arg1, %c1_i32 : i32
    %88 = arith.extui %87 : i1 to i32
    %c0_i32_34 = arith.constant 0 : i32
    %89 = arith.cmpi ne, %88, %c0_i32_34 : i32
    scf.if %89 {
      %c0_35 = arith.constant 0 : index
      %c0_36 = arith.constant 0 : index
      %90 = vector.load %arg10[%c0_35, %c0_36] : memref<128x512xf32, #tpu.memory_space<vmem>>, vector<128x512xf32>
      %c0_37 = arith.constant 0 : index
      %c0_38 = arith.constant 0 : index
      %91 = vector.load %arg6[%c0_37, %c0_38] : memref<1x512xf32, #tpu.memory_space<vmem>>, vector<1x512xf32>
      %92 = vector.broadcast %91 : vector<1x512xf32> to vector<128x512xf32>
      %93 = arith.mulf %90, %92 : vector<128x512xf32>
      %c0_39 = arith.constant 0 : index
      %c0_40 = arith.constant 0 : index
      %c0_41 = arith.constant 0 : index
      %94 = vector.load %arg9[%c0_39, %c0_40, %c0_41] : memref<1x128x512xf32, #tpu.memory_space<vmem>>, vector<1x128x512xf32>
      %95 = vector.shape_cast %94 : vector<1x128x512xf32> to vector<128x512xf32>
      %96 = vector.shape_cast %93 : vector<128x512xf32> to vector<1x128x512xf32>
      tpu.vector_store %arg9[%c0_39, %c0_40, %c0_41], %96 {strides = array<i32>} : memref<1x128x512xf32, #tpu.memory_space<vmem>>, vector<1x128x512xf32>,
    } else {
    }
    return
  }
  func.func @transform_0(%arg0: i32, %arg1: i32) -> (i32, i32, i32) {
    %c0_i32 = arith.constant 0 : i32
    %c0_i32_0 = arith.constant 0 : i32
    %c0_i32_1 = arith.constant 0 : i32
    return %arg0, %c0_i32, %c0_i32_0 : i32, i32, i32
  }
  func.func @transform_1(%arg0: i32, %arg1: i32) -> (i32, i32, i32) {
    %c0_i32 = arith.constant 0 : i32
    %c0_i32_0 = arith.constant 0 : i32
    %c0_i32_1 = arith.constant 0 : i32
    return %arg1, %c0_i32, %c0_i32_0 : i32, i32, i32
  }
  func.func @transform_2(%arg0: i32, %arg1: i32) -> (i32, i32, i32) {
    %c0_i32 = arith.constant 0 : i32
    %c0_i32_0 = arith.constant 0 : i32
    %c0_i32_1 = arith.constant 0 : i32
    return %arg1, %c0_i32, %c0_i32_0 : i32, i32, i32
  }
  func.func @transform_3(%arg0: i32, %arg1: i32) -> (i32, i32, i32) {
    %c0_i32 = arith.constant 0 : i32
    %c0_i32_0 = arith.constant 0 : i32
    %c0_i32_1 = arith.constant 0 : i32
    return %arg1, %c0_i32, %c0_i32_0 : i32, i32, i32
  }
  func.func @transform_4(%arg0: i32, %arg1: i32) -> (i32, i32) {
    %c0_i32 = arith.constant 0 : i32
    %c0_i32_0 = arith.constant 0 : i32
    %c0_i32_1 = arith.constant 0 : i32
    return %c0_i32, %c0_i32_0 : i32, i32
  }
  func.func @transform_5(%arg0: i32, %arg1: i32) -> (i32, i32) {
    %c0_i32 = arith.constant 0 : i32
    %c0_i32_0 = arith.constant 0 : i32
    %c0_i32_1 = arith.constant 0 : i32
    return %c0_i32, %c0_i32_0 : i32, i32
  }
  func.func @transform_6(%arg0: i32, %arg1: i32) -> (i32, i32) {
    %c0_i32 = arith.constant 0 : i32
    %c0_i32_0 = arith.constant 0 : i32
    %c0_i32_1 = arith.constant 0 : i32
    return %c0_i32, %c0_i32_0 : i32, i32
  }
  func.func @transform_7(%arg0: i32, %arg1: i32) -> (i32, i32, i32) {
    %c0_i32 = arith.constant 0 : i32
    %c0_i32_0 = arith.constant 0 : i32
    %c0_i32_1 = arith.constant 0 : i32
    return %arg0, %c0_i32, %c0_i32_0 : i32, i32, i32
  }
}

</mosaic_0001>

<llo_original>
// kernel: tpu_custom_call.1
$region0: #{tpu_custom_call.1}
  #allocation0 [shape = 'u32[]', space=smem, size = 0x4, offset = 0x4, fixed_abs, tag = 'smem constant byte address 0x4 - core index']
  #allocation1 [shape = 'u32[144,128]{1,0:T(1,128)}', space=vmem, size = 0x12000, scoped, tag = 'internal scratch']
  #allocation2 [shape = 'f32[128,512]{1,0:T(8,128)}', space=vmem, size = 0x40000, scoped, tag = 'scratch operand']
  %s0 = inlined_call_operand.hbm [shape: bf16[2,128,512], index: 0, kind: input, shape index: {}]
  %s1 = inlined_call_operand.hbm [shape: s8[2,512,768], index: 1, kind: input, shape index: {}]
  %s2 = inlined_call_operand.hbm [shape: f32[2,1,768], index: 2, kind: input, shape index: {}]
  %s3 = inlined_call_operand.hbm [shape: s8[2,256,512], index: 3, kind: input, shape index: {}]
  %s4 = inlined_call_operand.vmem [shape: f32[1,512], index: 4, kind: input, shape index: {}]
  %s5 = inlined_call_operand.hbm [shape: f32[128,128], index: 5, kind: input, shape index: {}]
  %s6 = inlined_call_operand.hbm [shape: f32[128,128], index: 6, kind: input, shape index: {}]
  %s7 = inlined_call_operand.hbm [shape: f32[2,128,512], index: 7, kind: output, shape index: {}]
  %s8 = sld [smem:[#allocation0]]
  $region93: #{tpu_custom_call.1} parent=0
    _
  %s10 = ssub.s32 1, %s8
  %s11 = scalar_select 0, %s10, %s8
  $region1: #{tpu_custom_call.1} parent=0
    #allocation3 [shape = 'u8[262144]{0}', space=vmem, size = 0x40000, scoped, tag = 'input window, operand 0']
    #allocation4 [shape = 's32[2]{0}', space=sflag, size = 0x8, scoped, tag = 'scoped memory for tpu_custom_call.1']
    #allocation5 [shape = 's32[2]{0}', space=sflag, size = 0x8, scoped, tag = 'scoped memory for tpu_custom_call.1']
    #allocation6 [shape = 'u8[786432]{0}', space=vmem, size = 0xc0000, scoped, tag = 'input window, operand 1']
    #allocation7 [shape = 's32[2]{0}', space=sflag, size = 0x8, scoped, tag = 'scoped memory for tpu_custom_call.1']
    #allocation8 [shape = 'u8[6144]{0}', space=vmem, size = 0x1800, scoped, tag = 'input window, operand 2']
    #allocation9 [shape = 'u8[262144]{0}', space=vmem, size = 0x40000, scoped, tag = 'input window, operand 3']
    #allocation10 [shape = 's32[2]{0}', space=sflag, size = 0x8, scoped, tag = 'scoped memory for tpu_custom_call.1']
    #allocation11 [shape = 'u8[65536]{0}', space=vmem, size = 0x10000, scoped, tag = 'input window, operand 5, single buffered']
    #allocation12 [shape = 'u8[65536]{0}', space=vmem, size = 0x10000, scoped, tag = 'input window, operand 6, single buffered']
    #allocation13 [shape = 's32[1]{0}', space=sflag, size = 0x4, scoped, tag = 'scoped memory for tpu_custom_call.1']
    #allocation14 [shape = 'u8[524288]{0}', space=vmem, size = 0x80000, scoped, tag = 'output window, operand 0']
    %12 = vsyncpa [#allocation4], 0
    %s13 = scalar_lea.sflag [#allocation4], 1
    %14 = vsyncpa %s13, 0
    %15 = vsyncpa [#allocation7], 0
    %s16 = scalar_lea.sflag [#allocation7], 1
    %17 = vsyncpa %s16, 0
    %18 = vsyncpa [#allocation10], 0
    %s19 = scalar_lea.sflag [#allocation10], 1
    %20 = vsyncpa %s19, 0
    %21 = vsyncpa [#allocation13], 0
    %22 = vsyncpa [#allocation5], 0
    %s23 = scalar_lea.sflag [#allocation5], 1
    %24 = vsyncpa %s23, 0
    loop: start=0, step=1, limit=6
    $region2: #{tpu_custom_call.1} parent=1 // loop_pre_header
      _
    $region3: #{tpu_custom_call.1} parent=1 // loop_header
      %s26 = sphi 0, %s30
      %p27 = scmp.ge.s32.totalorder %s26, 6
      %s33 = sphi 0, %s45
      %s34 = sphi 0, %s41
      %s35 = sphi 0, %s33
      %s36 = sphi 0, %s34
      %s37 = sphi 0, %s35
      %s38 = sphi 0, %s36
      %s48 = sphi 0, %s50
      %s51 = sphi 0, %s48
      %s52 = sphi 0, %s51
      %s68 = sphi 0, %s52
      %s74 = sphi 0, %s76
      %s77 = sphi 0, %s74
      %s78 = sphi 0, %s77
      %s94 = sphi 0, %s78
      %s100 = sphi 0, %s102
      %s103 = sphi 0, %s100
      %s104 = sphi 0, %s103
      %s120 = sphi 0, %s104
      %s126 = sphi 0, %s128
      %s129 = sphi 0, %s126
      %s130 = sphi 0, %s129
      %s146 = sphi 0, %s130
      %s150 = sphi 0, %s150
      %s152 = sphi 0, %s150
      %s153 = sphi 0, %s152
      %s167 = sphi 0, %s153
      %s171 = sphi 0, %s171
      %s173 = sphi 0, %s171
      %s174 = sphi 0, %s173
      %s188 = sphi 0, %s174
      %s192 = sphi 0, %s192
      %s194 = sphi 0, %s192
      %s195 = sphi 0, %s194
      %s209 = sphi 0, %s195
      %s215 = sphi 0, %s217
      %s218 = sphi 0, %s215
      %s219 = sphi 0, %s218
      %s235 = sphi 0, %s219
    $region4: #{tpu_custom_call.1} parent=1 // loop_header_branch
      %29 = sbr.rel (%p27) target = $region8
    $region5: #{tpu_custom_call.1} parent=1 // loop_body
      %s31 = ssub.s32 %s26, 1
      %s32 = ssub.s32 %s26, 2
      %s39 = sadd.s32 1, %s34
      %p40 = scmp.ge.s32.totalorder %s39, 2
      %s41 = scalar_select %p40, 0, %s39
      %s42 = sadd.s32 1, %s33
      %s43 = scalar_select %p40, %s42, %s33
      %p44 = scmp.ge.s32.totalorder %s43, 2
      %s45 = scalar_select %p44, 0, %s43
      %s46 = ssub.s32 %s33, %s45
      %p47 = scmp.eq.s32.totalorder %s46, 0
      %s49 = sadd.s32 %s48, 1
      %s50 = scalar_select %p47, %s48, %s49
      %p53 = pneg %p47
      %p54 = scmp.eq.s32.totalorder %s26, 3
      %p55 = por %p53, %p54
      %p56 = scmp.ne.s32.totalorder %s48, %s51
      %p57 = scmp.eq.s32.totalorder %s26, 0
      %p58 = por %p56, %p57
      %p59 = scmp.ne.s32.totalorder %s48, %s51
      %p60 = scmp.eq.s32.totalorder %s31, 3
      %p61 = por %p59, %p60
      %p62 = scmp.ne.s32.totalorder %s51, %s52
      %p63 = scmp.eq.s32.totalorder %s31, 0
      %p64 = por %p62, %p63
      %p65 = scmp.ne.s32.totalorder %s51, %s52
      %p66 = scmp.eq.s32.totalorder %s32, 3
      %p67 = por %p65, %p66
      %p69 = scmp.ne.s32.totalorder %s52, %s68
      %p70 = scmp.eq.s32.totalorder %s32, 0
      %p71 = por %p69, %p70
      %s72 = ssub.s32 %s34, %s41
      %p73 = scmp.eq.s32.totalorder %s72, 0
      %s75 = sadd.s32 %s74, 1
      %s76 = scalar_select %p73, %s74, %s75
      %p79 = pneg %p73
      %p80 = scmp.eq.s32.totalorder %s26, 3
      %p81 = por %p79, %p80
      %p82 = scmp.ne.s32.totalorder %s74, %s77
      %p83 = scmp.eq.s32.totalorder %s26, 0
      %p84 = por %p82, %p83
      %p85 = scmp.ne.s32.totalorder %s74, %s77
      %p86 = scmp.eq.s32.totalorder %s31, 3
      %p87 = por %p85, %p86
      %p88 = scmp.ne.s32.totalorder %s77, %s78
      %p89 = scmp.eq.s32.totalorder %s31, 0
      %p90 = por %p88, %p89
      %p91 = scmp.ne.s32.totalorder %s77, %s78
      %p92 = scmp.eq.s32.totalorder %s32, 3
      %p93 = por %p91, %p92
      %p95 = scmp.ne.s32.totalorder %s78, %s94
      %p96 = scmp.eq.s32.totalorder %s32, 0
      %p97 = por %p95, %p96
      %s98 = ssub.s32 %s34, %s41
      %p99 = scmp.eq.s32.totalorder %s98, 0
      %s101 = sadd.s32 %s100, 1
      %s102 = scalar_select %p99, %s100, %s101
      %p105 = pneg %p99
      %p106 = scmp.eq.s32.totalorder %s26, 3
      %p107 = por %p105, %p106
      %p108 = scmp.ne.s32.totalorder %s100, %s103
      %p109 = scmp.eq.s32.totalorder %s26, 0
      %p110 = por %p108, %p109
      %p111 = scmp.ne.s32.totalorder %s100, %s103
      %p112 = scmp.eq.s32.totalorder %s31, 3
      %p113 = por %p111, %p112
      %p114 = scmp.ne.s32.totalorder %s103, %s104
      %p115 = scmp.eq.s32.totalorder %s31, 0
      %p116 = por %p114, %p115
      %p117 = scmp.ne.s32.totalorder %s103, %s104
      %p118 = scmp.eq.s32.totalorder %s32, 3
      %p119 = por %p117, %p118
      %p121 = scmp.ne.s32.totalorder %s104, %s120
      %p122 = scmp.eq.s32.totalorder %s32, 0
      %p123 = por %p121, %p122
      %s124 = ssub.s32 %s34, %s41
      %p125 = scmp.eq.s32.totalorder %s124, 0
      %s127 = sadd.s32 %s126, 1
      %s128 = scalar_select %p125, %s126, %s127
      %p131 = pneg %p125
      %p132 = scmp.eq.s32.totalorder %s26, 3
      %p133 = por %p131, %p132
      %p134 = scmp.ne.s32.totalorder %s126, %s129
      %p135 = scmp.eq.s32.totalorder %s26, 0
      %p136 = por %p134, %p135
      %p137 = scmp.ne.s32.totalorder %s126, %s129
      %p138 = scmp.eq.s32.totalorder %s31, 3
      %p139 = por %p137, %p138
      %p140 = scmp.ne.s32.totalorder %s129, %s130
      %p141 = scmp.eq.s32.totalorder %s31, 0
      %p142 = por %p140, %p141
      %p143 = scmp.ne.s32.totalorder %s129, %s130
      %p144 = scmp.eq.s32.totalorder %s32, 3
      %p145 = por %p143, %p144
      %p147 = scmp.ne.s32.totalorder %s130, %s146
      %p148 = scmp.eq.s32.totalorder %s32, 0
      %p149 = por %p147, %p148
      %s151 = sadd.s32 %s150, 1
      %p154 = scmp.eq.s32.totalorder %s26, 3
      %p155 = scmp.ne.s32.totalorder %s150, %s152
      %p156 = scmp.eq.s32.totalorder %s26, 0
      %p157 = por %p155, %p156
      %p158 = scmp.ne.s32.totalorder %s150, %s152
      %p159 = scmp.eq.s32.totalorder %s31, 3
      %p160 = por %p158, %p159
      %p161 = scmp.ne.s32.totalorder %s152, %s153
      %p162 = scmp.eq.s32.totalorder %s31, 0
      %p163 = por %p161, %p162
      %p164 = scmp.ne.s32.totalorder %s152, %s153
      %p165 = scmp.eq.s32.totalorder %s32, 3
      %p166 = por %p164, %p165
      %p168 = scmp.ne.s32.totalorder %s153, %s167
      %p169 = scmp.eq.s32.totalorder %s32, 0
      %p170 = por %p168, %p169
      %s172 = sadd.s32 %s171, 1
      %p175 = scmp.eq.s32.totalorder %s26, 3
      %p176 = scmp.ne.s32.totalorder %s171, %s173
      %p177 = scmp.eq.s32.totalorder %s26, 0
      %p178 = por %p176, %p177
      %p179 = scmp.ne.s32.totalorder %s171, %s173
      %p180 = scmp.eq.s32.totalorder %s31, 3
      %p181 = por %p179, %p180
      %p182 = scmp.ne.s32.totalorder %s173, %s174
      %p183 = scmp.eq.s32.totalorder %s31, 0
      %p184 = por %p182, %p183
      %p185 = scmp.ne.s32.totalorder %s173, %s174
      %p186 = scmp.eq.s32.totalorder %s32, 3
      %p187 = por %p185, %p186
      %p189 = scmp.ne.s32.totalorder %s174, %s188
      %p190 = scmp.eq.s32.totalorder %s32, 0
      %p191 = por %p189, %p190
      %s193 = sadd.s32 %s192, 1
      %p196 = scmp.eq.s32.totalorder %s26, 3
      %p197 = scmp.ne.s32.totalorder %s192, %s194
      %p198 = scmp.eq.s32.totalorder %s26, 0
      %p199 = por %p197, %p198
      %p200 = scmp.ne.s32.totalorder %s192, %s194
      %p201 = scmp.eq.s32.totalorder %s31, 3
      %p202 = por %p200, %p201
      %p203 = scmp.ne.s32.totalorder %s194, %s195
      %p204 = scmp.eq.s32.totalorder %s31, 0
      %p205 = por %p203, %p204
      %p206 = scmp.ne.s32.totalorder %s194, %s195
      %p207 = scmp.eq.s32.totalorder %s32, 3
      %p208 = por %p206, %p207
      %p210 = scmp.ne.s32.totalorder %s195, %s209
      %p211 = scmp.eq.s32.totalorder %s32, 0
      %p212 = por %p210, %p211
      %s213 = ssub.s32 %s33, %s45
      %p214 = scmp.eq.s32.totalorder %s213, 0
      %s216 = sadd.s32 %s215, 1
      %s217 = scalar_select %p214, %s215, %s216
      %p220 = pneg %p214
      %p221 = scmp.eq.s32.totalorder %s26, 3
      %p222 = por %p220, %p221
      %p223 = scmp.ne.s32.totalorder %s215, %s218
      %p224 = scmp.eq.s32.totalorder %s26, 0
      %p225 = por %p223, %p224
      %p226 = scmp.ne.s32.totalorder %s215, %s218
      %p227 = scmp.eq.s32.totalorder %s31, 3
      %p228 = por %p226, %p227
      %p229 = scmp.ne.s32.totalorder %s218, %s219
      %p230 = scmp.eq.s32.totalorder %s31, 0
      %p231 = por %p229, %p230
      %p232 = scmp.ne.s32.totalorder %s218, %s219
      %p233 = scmp.eq.s32.totalorder %s32, 3
      %p234 = por %p232, %p233
      %p236 = scmp.ne.s32.totalorder %s219, %s235
      %p237 = scmp.eq.s32.totalorder %s32, 0
      %p238 = por %p236, %p237
      %p239 = scmp.le.s32.totalorder 1, %s26
      %p240 = scmp.lt.s32.totalorder %s26, 5
      %p241 = pnand %p239, %p240
      %p242 = pneg %p241
      // Predicated region
      $region9: #{tpu_custom_call.1} parent=5 // pred_check
        _
      $region10: #{tpu_custom_call.1} parent=5 // pred_check_branch
        %244 = sbr.rel (%p241) target = $region12
      $region11: #{tpu_custom_call.1} parent=5 // pred_region
        %s245 = ssub.s32 %s26, 1
        // Predicated region
        $region13: #{tpu_custom_call.1} parent=11 // pred_check
          %p246 = pneg %p163
        $region14: #{tpu_custom_call.1} parent=11 // pred_check_branch
          %248 = sbr.rel (%p246) target = $region16
        $region15: #{tpu_custom_call.1} parent=11 // pred_region
          _
        $region16: #{tpu_custom_call.1} parent=11 // pred_fallthru
          _
        // Predicated region
        $region17: #{tpu_custom_call.1} parent=11 // pred_check
          %p249 = pneg %p184
        $region18: #{tpu_custom_call.1} parent=11 // pred_check_branch
          %251 = sbr.rel (%p249) target = $region20
        $region19: #{tpu_custom_call.1} parent=11 // pred_region
          %s253 = ssub.s32 2048, 2048
          %254 = vsyncadd [#allocation10], %s253
          %s255 = sshll.u32 [#allocation11], 4
          %s256 = int_to_ptr.vmem [resolvable:$true] %s255
          %261 = dma.hbm_to_vmem [thread:$0]  %s5, 2048, %s256, [#allocation10], 128, 128, 8
        $region20: #{tpu_custom_call.1} parent=11 // pred_fallthru
          _
        // Predicated region
        $region21: #{tpu_custom_call.1} parent=11 // pred_check
          %p262 = pneg %p205
        $region22: #{tpu_custom_call.1} parent=11 // pred_check_branch
          %264 = sbr.rel (%p262) target = $region24
        $region23: #{tpu_custom_call.1} parent=11 // pred_region
          %s266 = ssub.s32 2048, 2048
          %267 = vsyncadd [#allocation13], %s266
          %s268 = sshll.u32 [#allocation12], 4
          %s269 = int_to_ptr.vmem [resolvable:$true] %s268
          %274 = dma.hbm_to_vmem [thread:$0]  %s6, 2048, %s269, [#allocation13], 128, 128, 8
        $region24: #{tpu_custom_call.1} parent=11 // pred_fallthru
          _
      $region12: #{tpu_custom_call.1} parent=5 // pred_fallthru
        _
      %p275 = scmp.lt.s32.totalorder %s26, 4
      // Predicated region
      $region25: #{tpu_custom_call.1} parent=5 // pred_check
        %p276 = pneg %p275
      $region26: #{tpu_custom_call.1} parent=5 // pred_check_branch
        %278 = sbr.rel (%p276) target = $region28
      $region27: #{tpu_custom_call.1} parent=5 // pred_region
        // Predicated region
        $region29: #{tpu_custom_call.1} parent=27 // pred_check
          %p279 = pneg %p58
        $region30: #{tpu_custom_call.1} parent=27 // pred_check_branch
          %281 = sbr.rel (%p279) target = $region32
        $region31: #{tpu_custom_call.1} parent=27 // pred_region
          %s282 = sand.u32 %s48, 1
          %s283 = scalar_lea.sflag [#allocation4], %s282
          %s284 = sand.u32 %s48, 1
          %s285 = smul.addr %s284, 256
          %s286 = scalar_lea.vmem [#allocation3], %s285
          %s288 = ssub.s32 4096, 4096
          %289 = vsyncadd %s283, %s288
          %s290 = smul.addr %s33, 64
          %s291 = smul.addr %s290, 64
          %s292 = scalar_lea.hbm %s0, %s291
          %s293 = sshll.u32 %s286, 4
          %s294 = int_to_ptr.vmem [resolvable:$true] %s293
          %299 = dma.hbm_to_vmem [thread:$0]  %s292, 4096, %s294, %s283, 256, 256, 16
        $region32: #{tpu_custom_call.1} parent=27 // pred_fallthru
          _
        // Predicated region
        $region33: #{tpu_custom_call.1} parent=27 // pred_check
          %p300 = pneg %p84
        $region34: #{tpu_custom_call.1} parent=27 // pred_check_branch
          %302 = sbr.rel (%p300) target = $region36
        $region35: #{tpu_custom_call.1} parent=27 // pred_region
          %s303 = sand.u32 %s26, 1
          %s304 = scalar_lea.sflag [#allocation7], %s303
          %s305 = sand.u32 %s74, 1
          %s306 = smul.addr %s305, 768
          %s307 = scalar_lea.vmem [#allocation6], %s306
          %s309 = ssub.s32 12288, 12288
          %310 = vsyncadd %s304, %s309
          %s311 = smul.addr %s34, 96
          %s312 = smul.addr %s311, 128
          %s313 = scalar_lea.hbm %s1, %s312
          %s314 = sshll.u32 %s307, 4
          %s315 = int_to_ptr.vmem [resolvable:$true] %s314
          %320 = dma.hbm_to_vmem [thread:$0]  %s313, 12288, %s315, %s304, 768, 768, 48
        $region36: #{tpu_custom_call.1} parent=27 // pred_fallthru
          _
        // Predicated region
        $region37: #{tpu_custom_call.1} parent=27 // pred_check
          %p321 = pneg %p110
        $region38: #{tpu_custom_call.1} parent=27 // pred_check_branch
          %323 = sbr.rel (%p321) target = $region40
        $region39: #{tpu_custom_call.1} parent=27 // pred_region
          %s324 = sand.u32 %s26, 1
          %s325 = scalar_lea.sflag [#allocation7], %s324
          %s326 = sand.u32 %s100, 1
          %s327 = smul.addr %s326, 6
          %s328 = scalar_lea.vmem [#allocation8], %s327
          %s330 = ssub.s32 96, 96
          %331 = vsyncadd %s325, %s330
          %s332 = smul.addr %s34, 6
          %s333 = smul.addr %s332, 16
          %s334 = scalar_lea.hbm %s2, %s333
          %s336 = sshll.u32 %s328, 4
          %s337 = int_to_ptr.vmem [resolvable:$true] %s336
          %339 = dma.hbm_to_vmem [thread:$0]  %s334, 96, %s337, %s325
        $region40: #{tpu_custom_call.1} parent=27 // pred_fallthru
          _
        // Predicated region
        $region41: #{tpu_custom_call.1} parent=27 // pred_check
          %p340 = pneg %p136
        $region42: #{tpu_custom_call.1} parent=27 // pred_check_branch
          %342 = sbr.rel (%p340) target = $region44
        $region43: #{tpu_custom_call.1} parent=27 // pred_region
          %s343 = sand.u32 %s26, 1
          %s344 = scalar_lea.sflag [#allocation10], %s343
          %s345 = sand.u32 %s126, 1
          %s346 = smul.addr %s345, 256
          %s347 = scalar_lea.vmem [#allocation9], %s346
          %s349 = ssub.s32 4096, 4096
          %350 = vsyncadd %s344, %s349
          %s351 = smul.addr %s34, 32
          %s352 = smul.addr %s351, 128
          %s353 = scalar_lea.hbm %s3, %s352
          %s354 = sshll.u32 %s347, 4
          %s355 = int_to_ptr.vmem [resolvable:$true] %s354
          %360 = dma.hbm_to_vmem [thread:$0]  %s353, 4096, %s355, %s344, 512, 512, 32
        $region44: #{tpu_custom_call.1} parent=27 // pred_fallthru
          _
      $region28: #{tpu_custom_call.1} parent=5 // pred_fallthru
        _
      %p361 = scmp.le.s32.totalorder 1, %s26
      %p362 = scmp.lt.s32.totalorder %s26, 5
      %p363 = pnand %p361, %p362
      %p364 = pneg %p363
      // Predicated region
      $region45: #{tpu_custom_call.1} parent=5 // pred_check
        _
      $region46: #{tpu_custom_call.1} parent=5 // pred_check_branch
        %366 = sbr.rel (%p363) target = $region48
      $region47: #{tpu_custom_call.1} parent=5 // pred_region
        %s367 = ssub.s32 %s26, 1
        %s368 = sand.u32 %s51, 1
        %s369 = scalar_lea.sflag [#allocation4], %s368
        %s370 = sand.u32 %s51, 1
        %s371 = smul.addr %s370, 256
        %s372 = scalar_lea.vmem [#allocation3], %s371
        // Predicated region
        $region49: #{tpu_custom_call.1} parent=47 // pred_check
          %p373 = pneg %p64
        $region50: #{tpu_custom_call.1} parent=47 // pred_check_branch
          %375 = sbr.rel (%p373) target = $region52
        $region51: #{tpu_custom_call.1} parent=47 // pred_region
          %376 = dma.done %s369, 4096
        $region52: #{tpu_custom_call.1} parent=47 // pred_fallthru
          _
        %s377 = sand.u32 %s31, 1
        %s378 = scalar_lea.sflag [#allocation7], %s377
        %s379 = sand.u32 %s77, 1
        %s380 = smul.addr %s379, 768
        %s381 = scalar_lea.vmem [#allocation6], %s380
        // Predicated region
        $region53: #{tpu_custom_call.1} parent=47 // pred_check
          %p382 = pneg %p90
        $region54: #{tpu_custom_call.1} parent=47 // pred_check_branch
          %384 = sbr.rel (%p382) target = $region56
        $region55: #{tpu_custom_call.1} parent=47 // pred_region
          %385 = dma.done %s378, 12288
        $region56: #{tpu_custom_call.1} parent=47 // pred_fallthru
          _
        %s386 = sand.u32 %s31, 1
        %s387 = scalar_lea.sflag [#allocation7], %s386
        %s388 = sand.u32 %s103, 1
        %s389 = smul.addr %s388, 6
        %s390 = scalar_lea.vmem [#allocation8], %s389
        // Predicated region
        $region57: #{tpu_custom_call.1} parent=47 // pred_check
          %p391 = pneg %p116
        $region58: #{tpu_custom_call.1} parent=47 // pred_check_branch
          %393 = sbr.rel (%p391) target = $region60
        $region59: #{tpu_custom_call.1} parent=47 // pred_region
          %394 = dma.done %s387, 96
        $region60: #{tpu_custom_call.1} parent=47 // pred_fallthru
          _
        %s395 = sand.u32 %s31, 1
        %s396 = scalar_lea.sflag [#allocation10], %s395
        %s397 = sand.u32 %s129, 1
        %s398 = smul.addr %s397, 256
        %s399 = scalar_lea.vmem [#allocation9], %s398
        // Predicated region
        $region61: #{tpu_custom_call.1} parent=47 // pred_check
          %p400 = pneg %p142
        $region62: #{tpu_custom_call.1} parent=47 // pred_check_branch
          %402 = sbr.rel (%p400) target = $region64
        $region63: #{tpu_custom_call.1} parent=47 // pred_region
          %403 = dma.done %s396, 4096
        $region64: #{tpu_custom_call.1} parent=47 // pred_fallthru
          _
        // Predicated region
        $region65: #{tpu_custom_call.1} parent=47 // pred_check
          %p404 = pneg %p184
        $region66: #{tpu_custom_call.1} parent=47 // pred_check_branch
          %406 = sbr.rel (%p404) target = $region68
        $region67: #{tpu_custom_call.1} parent=47 // pred_region
          %407 = dma.done [#allocation10], 2048
        $region68: #{tpu_custom_call.1} parent=47 // pred_fallthru
          _
        // Predicated region
        $region69: #{tpu_custom_call.1} parent=47 // pred_check
          %p408 = pneg %p205
        $region70: #{tpu_custom_call.1} parent=47 // pred_check_branch
          %410 = sbr.rel (%p408) target = $region72
        $region71: #{tpu_custom_call.1} parent=47 // pred_region
          %411 = dma.done [#allocation13], 2048
        $region72: #{tpu_custom_call.1} parent=47 // pred_fallthru
          _
        %s412 = sand.u32 %s51, 1
        %s413 = scalar_lea.sflag [#allocation4], %s412
        %s414 = sand.u32 %s51, 1
        %s415 = smul.addr %s414, 256
        %s416 = scalar_lea.vmem [#allocation3], %s415
        %p417 = pneg %p64
        %p418 = pneg %p61
        %s419 = sand.u32 %s31, 1
        %s420 = scalar_lea.sflag [#allocation7], %s419
        %s421 = sand.u32 %s77, 1
        %s422 = smul.addr %s421, 768
        %s423 = scalar_lea.vmem [#allocation6], %s422
        %p424 = pneg %p90
        %p425 = pneg %p87
        %s426 = sand.u32 %s31, 1
        %s427 = scalar_lea.sflag [#allocation7], %s426
        %s428 = sand.u32 %s103, 1
        %s429 = smul.addr %s428, 6
        %s430 = scalar_lea.vmem [#allocation8], %s429
        %p431 = pneg %p116
        %p432 = pneg %p113
        %s433 = sand.u32 %s31, 1
        %s434 = scalar_lea.sflag [#allocation10], %s433
        %s435 = sand.u32 %s129, 1
        %s436 = smul.addr %s435, 256
        %s437 = scalar_lea.vmem [#allocation9], %s436
        %p438 = pneg %p142
        %p439 = pneg %p139
        %p440 = pneg %p163
        %p441 = pneg %p160
        %p442 = pneg %p184
        %p443 = pneg %p181
        %p444 = pneg %p205
        %p445 = pneg %p202
        %p446 = pneg %p231
        %p447 = pneg %p228
        %s448 = sand.u32 %s218, 1
        %s449 = scalar_lea.sflag [#allocation5], %s448
        %s450 = sand.u32 %s218, 1
        %s451 = smul.addr %s450, 512
        %s452 = scalar_lea.vmem [#allocation14], %s451
        %p454 = scmp.eq.s32.totalorder %s36, 0
        // Predicated region
        $region73: #{tpu_custom_call.1} parent=47 // pred_check
          %p455 = pneg %p454
        $region74: #{tpu_custom_call.1} parent=47 // pred_check_branch
          %457 = sbr.rel (%p455) target = $region76
        $region75: #{tpu_custom_call.1} parent=47 // pred_region
          %458 = vst [vmem:[#allocation2] sm:$0xff] 0.0
          %459 = vst [vmem:[#allocation2 + $0x8] sm:$0xff] 0.0
          %460 = vst [vmem:[#allocation2 + $0x10] sm:$0xff] 0.0
          %461 = vst [vmem:[#allocation2 + $0x18] sm:$0xff] 0.0
          %462 = vst [vmem:[#allocation2 + $0x20] sm:$0xff] 0.0
          %463 = vst [vmem:[#allocation2 + $0x28] sm:$0xff] 0.0
          %464 = vst [vmem:[#allocation2 + $0x30] sm:$0xff] 0.0
          %465 = vst [vmem:[#allocation2 + $0x38] sm:$0xff] 0.0
          %466 = vst [vmem:[#allocation2 + $0x40] sm:$0xff] 0.0
          %467 = vst [vmem:[#allocation2 + $0x48] sm:$0xff] 0.0
          %468 = vst [vmem:[#allocation2 + $0x50] sm:$0xff] 0.0
          %469 = vst [vmem:[#allocation2 + $0x58] sm:$0xff] 0.0
          %470 = vst [vmem:[#allocation2 + $0x60] sm:$0xff] 0.0
          %471 = vst [vmem:[#allocation2 + $0x68] sm:$0xff] 0.0
          %472 = vst [vmem:[#allocation2 + $0x70] sm:$0xff] 0.0
          %473 = vst [vmem:[#allocation2 + $0x78] sm:$0xff] 0.0
          %474 = vst [vmem:[#allocation2 + $0x80] sm:$0xff] 0.0
          %475 = vst [vmem:[#allocation2 + $0x88] sm:$0xff] 0.0
          %476 = vst [vmem:[#allocation2 + $0x90] sm:$0xff] 0.0
          %477 = vst [vmem:[#allocation2 + $0x98] sm:$0xff] 0.0
          %478 = vst [vmem:[#allocation2 + $0xa0] sm:$0xff] 0.0
          %479 = vst [vmem:[#allocation2 + $0xa8] sm:$0xff] 0.0
          %480 = vst [vmem:[#allocation2 + $0xb0] sm:$0xff] 0.0
          %481 = vst [vmem:[#allocation2 + $0xb8] sm:$0xff] 0.0
          %482 = vst [vmem:[#allocation2 + $0xc0] sm:$0xff] 0.0
          %483 = vst [vmem:[#allocation2 + $0xc8] sm:$0xff] 0.0
          %484 = vst [vmem:[#allocation2 + $0xd0] sm:$0xff] 0.0
          %485 = vst [vmem:[#allocation2 + $0xd8] sm:$0xff] 0.0
          %486 = vst [vmem:[#allocation2 + $0xe0] sm:$0xff] 0.0
          %487 = vst [vmem:[#allocation2 + $0xe8] sm:$0xff] 0.0
          %488 = vst [vmem:[#allocation2 + $0xf0] sm:$0xff] 0.0
          %489 = vst [vmem:[#allocation2 + $0xf8] sm:$0xff] 0.0
          %490 = vst [vmem:[#allocation2 + $0x100] sm:$0xff] 0.0
          %491 = vst [vmem:[#allocation2 + $0x108] sm:$0xff] 0.0
          %492 = vst [vmem:[#allocation2 + $0x110] sm:$0xff] 0.0
          %493 = vst [vmem:[#allocation2 + $0x118] sm:$0xff] 0.0
          %494 = vst [vmem:[#allocation2 + $0x120] sm:$0xff] 0.0
          %495 = vst [vmem:[#allocation2 + $0x128] sm:$0xff] 0.0
          %496 = vst [vmem:[#allocation2 + $0x130] sm:$0xff] 0.0
          %497 = vst [vmem:[#allocation2 + $0x138] sm:$0xff] 0.0
          %498 = vst [vmem:[#allocation2 + $0x140] sm:$0xff] 0.0
          %499 = vst [vmem:[#allocation2 + $0x148] sm:$0xff] 0.0
          %500 = vst [vmem:[#allocation2 + $0x150] sm:$0xff] 0.0
          %501 = vst [vmem:[#allocation2 + $0x158] sm:$0xff] 0.0
          %502 = vst [vmem:[#allocation2 + $0x160] sm:$0xff] 0.0
          %503 = vst [vmem:[#allocation2 + $0x168] sm:$0xff] 0.0
          %504 = vst [vmem:[#allocation2 + $0x170] sm:$0xff] 0.0
          %505 = vst [vmem:[#allocation2 + $0x178] sm:$0xff] 0.0
          %506 = vst [vmem:[#allocation2 + $0x180] sm:$0xff] 0.0
          %507 = vst [vmem:[#allocation2 + $0x188] sm:$0xff] 0.0
          %508 = vst [vmem:[#allocation2 + $0x190] sm:$0xff] 0.0
          %509 = vst [vmem:[#allocation2 + $0x198] sm:$0xff] 0.0
          %510 = vst [vmem:[#allocation2 + $0x1a0] sm:$0xff] 0.0
          %511 = vst [vmem:[#allocation2 + $0x1a8] sm:$0xff] 0.0
          %512 = vst [vmem:[#allocation2 + $0x1b0] sm:$0xff] 0.0
          %513 = vst [vmem:[#allocation2 + $0x1b8] sm:$0xff] 0.0
          %514 = vst [vmem:[#allocation2 + $0x1c0] sm:$0xff] 0.0
          %515 = vst [vmem:[#allocation2 + $0x1c8] sm:$0xff] 0.0
          %516 = vst [vmem:[#allocation2 + $0x1d0] sm:$0xff] 0.0
          %517 = vst [vmem:[#allocation2 + $0x1d8] sm:$0xff] 0.0
          %518 = vst [vmem:[#allocation2 + $0x1e0] sm:$0xff] 0.0
          %519 = vst [vmem:[#allocation2 + $0x1e8] sm:$0xff] 0.0
          %520 = vst [vmem:[#allocation2 + $0x1f0] sm:$0xff] 0.0
          %521 = vst [vmem:[#allocation2 + $0x1f8] sm:$0xff] 0.0
        $region76: #{tpu_custom_call.1} parent=47 // pred_fallthru
          _
        %v522 = vld [vmem:[%s372] sm:$0xff]
        %v523 = vld [vmem:[%s372 + $0x8] sm:$0xff]
        %v524 = vld [vmem:[%s372 + $0x10] sm:$0xff]
        %v525 = vld [vmem:[%s372 + $0x18] sm:$0xff]
        %v526 = vld [vmem:[%s372 + $0x20] sm:$0xff]
        %v527 = vld [vmem:[%s372 + $0x28] sm:$0xff]
        %v528 = vld [vmem:[%s372 + $0x30] sm:$0xff]
        %v529 = vld [vmem:[%s372 + $0x38] sm:$0xff]
        %v530 = vld [vmem:[%s372 + $0x40] sm:$0xff]
        %v531 = vld [vmem:[%s372 + $0x48] sm:$0xff]
        %v532 = vld [vmem:[%s372 + $0x50] sm:$0xff]
        %v533 = vld [vmem:[%s372 + $0x58] sm:$0xff]
        %v534 = vld [vmem:[%s372 + $0x60] sm:$0xff]
        %v535 = vld [vmem:[%s372 + $0x68] sm:$0xff]
        %v536 = vld [vmem:[%s372 + $0x70] sm:$0xff]
        %v537 = vld [vmem:[%s372 + $0x78] sm:$0xff]
        %v538 = vld [vmem:[%s372 + $0x80] sm:$0xff]
        %v539 = vld [vmem:[%s372 + $0x88] sm:$0xff]
        %v540 = vld [vmem:[%s372 + $0x90] sm:$0xff]
        %v541 = vld [vmem:[%s372 + $0x98] sm:$0xff]
        %v542 = vld [vmem:[%s372 + $0xa0] sm:$0xff]
        %v543 = vld [vmem:[%s372 + $0xa8] sm:$0xff]
        %v544 = vld [vmem:[%s372 + $0xb0] sm:$0xff]
        %v545 = vld [vmem:[%s372 + $0xb8] sm:$0xff]
        %v546 = vld [vmem:[%s372 + $0xc0] sm:$0xff]
        %v547 = vld [vmem:[%s372 + $0xc8] sm:$0xff]
        %v548 = vld [vmem:[%s372 + $0xd0] sm:$0xff]
        %v549 = vld [vmem:[%s372 + $0xd8] sm:$0xff]
        %v550 = vld [vmem:[%s372 + $0xe0] sm:$0xff]
        %v551 = vld [vmem:[%s372 + $0xe8] sm:$0xff]
        %v552 = vld [vmem:[%s372 + $0xf0] sm:$0xff]
        %v553 = vld [vmem:[%s372 + $0xf8] sm:$0xff]
        %v554 = vld [vmem:[%s381] sm:$0xff]
        %v555 = vld [vmem:[%s381 + $0x8] sm:$0xff]
        %v556 = vld [vmem:[%s381 + $0x10] sm:$0xff]
        %v557 = vld [vmem:[%s381 + $0x18] sm:$0xff]
        %v558 = vld [vmem:[%s381 + $0x20] sm:$0xff]
        %v559 = vld [vmem:[%s381 + $0x28] sm:$0xff]
        %v560 = vld [vmem:[%s381 + $0x30] sm:$0xff]
        %v561 = vld [vmem:[%s381 + $0x38] sm:$0xff]
        %v562 = vld [vmem:[%s381 + $0x40] sm:$0xff]
        %v563 = vld [vmem:[%s381 + $0x48] sm:$0xff]
        %v564 = vld [vmem:[%s381 + $0x50] sm:$0xff]
        %v565 = vld [vmem:[%s381 + $0x58] sm:$0xff]
        %v566 = vld [vmem:[%s381 + $0x60] sm:$0xff]
        %v567 = vld [vmem:[%s381 + $0x68] sm:$0xff]
        %v568 = vld [vmem:[%s381 + $0x70] sm:$0xff]
        %v569 = vld [vmem:[%s381 + $0x78] sm:$0xff]
        %v570 = vld [vmem:[%s381 + $0x80] sm:$0xff]
        %v571 = vld [vmem:[%s381 + $0x88] sm:$0xff]
        %v572 = vld [vmem:[%s381 + $0x90] sm:$0xff]
        %v573 = vld [vmem:[%s381 + $0x98] sm:$0xff]
        %v574 = vld [vmem:[%s381 + $0xa0] sm:$0xff]
        %v575 = vld [vmem:[%s381 + $0xa8] sm:$0xff]
        %v576 = vld [vmem:[%s381 + $0xb0] sm:$0xff]
        %v577 = vld [vmem:[%s381 + $0xb8] sm:$0xff]
        %v578 = vld [vmem:[%s381 + $0xc0] sm:$0xff]
        %v579 = vld [vmem:[%s381 + $0xc8] sm:$0xff]
        %v580 = vld [vmem:[%s381 + $0xd0] sm:$0xff]
        %v581 = vld [vmem:[%s381 + $0xd8] sm:$0xff]
        %v582 = vld [vmem:[%s381 + $0xe0] sm:$0xff]
        %v583 = vld [vmem:[%s381 + $0xe8] sm:$0xff]
        %v584 = vld [vmem:[%s381 + $0xf0] sm:$0xff]
        %v585 = vld [vmem:[%s381 + $0xf8] sm:$0xff]
        %v586 = vld [vmem:[%s381 + $0x100] sm:$0xff]
        %v587 = vld [vmem:[%s381 + $0x108] sm:$0xff]
        %v588 = vld [vmem:[%s381 + $0x110] sm:$0xff]
        %v589 = vld [vmem:[%s381 + $0x118] sm:$0xff]
        %v590 = vld [vmem:[%s381 + $0x120] sm:$0xff]
        %v591 = vld [vmem:[%s381 + $0x128] sm:$0xff]
        %v592 = vld [vmem:[%s381 + $0x130] sm:$0xff]
        %v593 = vld [vmem:[%s381 + $0x138] sm:$0xff]
        %v594 = vld [vmem:[%s381 + $0x140] sm:$0xff]
        %v595 = vld [vmem:[%s381 + $0x148] sm:$0xff]
        %v596 = vld [vmem:[%s381 + $0x150] sm:$0xff]
        %v597 = vld [vmem:[%s381 + $0x158] sm:$0xff]
        %v598 = vld [vmem:[%s381 + $0x160] sm:$0xff]
        %v599 = vld [vmem:[%s381 + $0x168] sm:$0xff]
        %v600 = vld [vmem:[%s381 + $0x170] sm:$0xff]
        %v601 = vld [vmem:[%s381 + $0x178] sm:$0xff]
        %v602 = vld [vmem:[%s381 + $0x180] sm:$0xff]
        %v603 = vld [vmem:[%s381 + $0x188] sm:$0xff]
        %v604 = vld [vmem:[%s381 + $0x190] sm:$0xff]
        %v605 = vld [vmem:[%s381 + $0x198] sm:$0xff]
        %v606 = vld [vmem:[%s381 + $0x1a0] sm:$0xff]
        %v607 = vld [vmem:[%s381 + $0x1a8] sm:$0xff]
        %v608 = vld [vmem:[%s381 + $0x1b0] sm:$0xff]
        %v609 = vld [vmem:[%s381 + $0x1b8] sm:$0xff]
        %v610 = vld [vmem:[%s381 + $0x1c0] sm:$0xff]
        %v611 = vld [vmem:[%s381 + $0x1c8] sm:$0xff]
        %v612 = vld [vmem:[%s381 + $0x1d0] sm:$0xff]
        %v613 = vld [vmem:[%s381 + $0x1d8] sm:$0xff]
        %v614 = vld [vmem:[%s381 + $0x1e0] sm:$0xff]
        %v615 = vld [vmem:[%s381 + $0x1e8] sm:$0xff]
        %v616 = vld [vmem:[%s381 + $0x1f0] sm:$0xff]
        %v617 = vld [vmem:[%s381 + $0x1f8] sm:$0xff]
        %v618 = vld [vmem:[%s381 + $0x200] sm:$0xff]
        %v619 = vld [vmem:[%s381 + $0x208] sm:$0xff]
        %v620 = vld [vmem:[%s381 + $0x210] sm:$0xff]
        %v621 = vld [vmem:[%s381 + $0x218] sm:$0xff]
        %v622 = vld [vmem:[%s381 + $0x220] sm:$0xff]
        %v623 = vld [vmem:[%s381 + $0x228] sm:$0xff]
        %v624 = vld [vmem:[%s381 + $0x230] sm:$0xff]
        %v625 = vld [vmem:[%s381 + $0x238] sm:$0xff]
        %v626 = vld [vmem:[%s381 + $0x240] sm:$0xff]
        %v627 = vld [vmem:[%s381 + $0x248] sm:$0xff]
        %v628 = vld [vmem:[%s381 + $0x250] sm:$0xff]
        %v629 = vld [vmem:[%s381 + $0x258] sm:$0xff]
        %v630 = vld [vmem:[%s381 + $0x260] sm:$0xff]
        %v631 = vld [vmem:[%s381 + $0x268] sm:$0xff]
        %v632 = vld [vmem:[%s381 + $0x270] sm:$0xff]
        %v633 = vld [vmem:[%s381 + $0x278] sm:$0xff]
        %v634 = vld [vmem:[%s381 + $0x280] sm:$0xff]
        %v635 = vld [vmem:[%s381 + $0x288] sm:$0xff]
        %v636 = vld [vmem:[%s381 + $0x290] sm:$0xff]
        %v637 = vld [vmem:[%s381 + $0x298] sm:$0xff]
        %v638 = vld [vmem:[%s381 + $0x2a0] sm:$0xff]
        %v639 = vld [vmem:[%s381 + $0x2a8] sm:$0xff]
        %v640 = vld [vmem:[%s381 + $0x2b0] sm:$0xff]
        %v641 = vld [vmem:[%s381 + $0x2b8] sm:$0xff]
        %v642 = vld [vmem:[%s381 + $0x2c0] sm:$0xff]
        %v643 = vld [vmem:[%s381 + $0x2c8] sm:$0xff]
        %v644 = vld [vmem:[%s381 + $0x2d0] sm:$0xff]
        %v645 = vld [vmem:[%s381 + $0x2d8] sm:$0xff]
        %v646 = vld [vmem:[%s381 + $0x2e0] sm:$0xff]
        %v647 = vld [vmem:[%s381 + $0x2e8] sm:$0xff]
        %v648 = vld [vmem:[%s381 + $0x2f0] sm:$0xff]
        %v649 = vld [vmem:[%s381 + $0x2f8] sm:$0xff]
        %v650 = vunpack.c.l.s8.bf16 %v554
        %v651 = vunpack.c.l.s8.bf16 %v555
        %v652 = vunpack.c.l.s8.bf16 %v556
        %v653 = vunpack.c.l.s8.bf16 %v557
        %v654 = vunpack.c.l.s8.bf16 %v558
        %v655 = vunpack.c.l.s8.bf16 %v559
        %v656 = vunpack.c.h.s8.bf16 %v554
        %v657 = vunpack.c.h.s8.bf16 %v555
        %v658 = vunpack.c.h.s8.bf16 %v556
        %v659 = vunpack.c.h.s8.bf16 %v557
        %v660 = vunpack.c.h.s8.bf16 %v558
        %v661 = vunpack.c.h.s8.bf16 %v559
        %v662 = vunpack.c.l.s8.bf16 %v560
        %v663 = vunpack.c.l.s8.bf16 %v561
        %v664 = vunpack.c.l.s8.bf16 %v562
        %v665 = vunpack.c.l.s8.bf16 %v563
        %v666 = vunpack.c.l.s8.bf16 %v564
        %v667 = vunpack.c.l.s8.bf16 %v565
        %v668 = vunpack.c.h.s8.bf16 %v560
        %v669 = vunpack.c.h.s8.bf16 %v561
        %v670 = vunpack.c.h.s8.bf16 %v562
        %v671 = vunpack.c.h.s8.bf16 %v563
        %v672 = vunpack.c.h.s8.bf16 %v564
        %v673 = vunpack.c.h.s8.bf16 %v565
        %v674 = vunpack.c.l.s8.bf16 %v566
        %v675 = vunpack.c.l.s8.bf16 %v567
        %v676 = vunpack.c.l.s8.bf16 %v568
        %v677 = vunpack.c.l.s8.bf16 %v569
        %v678 = vunpack.c.l.s8.bf16 %v570
        %v679 = vunpack.c.l.s8.bf16 %v571
        %v680 = vunpack.c.h.s8.bf16 %v566
        %v681 = vunpack.c.h.s8.bf16 %v567
        %v682 = vunpack.c.h.s8.bf16 %v568
        %v683 = vunpack.c.h.s8.bf16 %v569
        %v684 = vunpack.c.h.s8.bf16 %v570
        %v685 = vunpack.c.h.s8.bf16 %v571
        %v686 = vunpack.c.l.s8.bf16 %v572
        %v687 = vunpack.c.l.s8.bf16 %v573
        %v688 = vunpack.c.l.s8.bf16 %v574
        %v689 = vunpack.c.l.s8.bf16 %v575
        %v690 = vunpack.c.l.s8.bf16 %v576
        %v691 = vunpack.c.l.s8.bf16 %v577
        %v692 = vunpack.c.h.s8.bf16 %v572
        %v693 = vunpack.c.h.s8.bf16 %v573
        %v694 = vunpack.c.h.s8.bf16 %v574
        %v695 = vunpack.c.h.s8.bf16 %v575
        %v696 = vunpack.c.h.s8.bf16 %v576
        %v697 = vunpack.c.h.s8.bf16 %v577
        %v698 = vunpack.c.l.s8.bf16 %v578
        %v699 = vunpack.c.l.s8.bf16 %v579
        %v700 = vunpack.c.l.s8.bf16 %v580
        %v701 = vunpack.c.l.s8.bf16 %v581
        %v702 = vunpack.c.l.s8.bf16 %v582
        %v703 = vunpack.c.l.s8.bf16 %v583
        %v704 = vunpack.c.h.s8.bf16 %v578
        %v705 = vunpack.c.h.s8.bf16 %v579
        %v706 = vunpack.c.h.s8.bf16 %v580
        %v707 = vunpack.c.h.s8.bf16 %v581
        %v708 = vunpack.c.h.s8.bf16 %v582
        %v709 = vunpack.c.h.s8.bf16 %v583
        %v710 = vunpack.c.l.s8.bf16 %v584
        %v711 = vunpack.c.l.s8.bf16 %v585
        %v712 = vunpack.c.l.s8.bf16 %v586
        %v713 = vunpack.c.l.s8.bf16 %v587
        %v714 = vunpack.c.l.s8.bf16 %v588
        %v715 = vunpack.c.l.s8.bf16 %v589
        %v716 = vunpack.c.h.s8.bf16 %v584
        %v717 = vunpack.c.h.s8.bf16 %v585
        %v718 = vunpack.c.h.s8.bf16 %v586
        %v719 = vunpack.c.h.s8.bf16 %v587
        %v720 = vunpack.c.h.s8.bf16 %v588
        %v721 = vunpack.c.h.s8.bf16 %v589
        %v722 = vunpack.c.l.s8.bf16 %v590
        %v723 = vunpack.c.l.s8.bf16 %v591
        %v724 = vunpack.c.l.s8.bf16 %v592
        %v725 = vunpack.c.l.s8.bf16 %v593
        %v726 = vunpack.c.l.s8.bf16 %v594
        %v727 = vunpack.c.l.s8.bf16 %v595
        %v728 = vunpack.c.h.s8.bf16 %v590
        %v729 = vunpack.c.h.s8.bf16 %v591
        %v730 = vunpack.c.h.s8.bf16 %v592
        %v731 = vunpack.c.h.s8.bf16 %v593
        %v732 = vunpack.c.h.s8.bf16 %v594
        %v733 = vunpack.c.h.s8.bf16 %v595
        %v734 = vunpack.c.l.s8.bf16 %v596
        %v735 = vunpack.c.l.s8.bf16 %v597
        %v736 = vunpack.c.l.s8.bf16 %v598
        %v737 = vunpack.c.l.s8.bf16 %v599
        %v738 = vunpack.c.l.s8.bf16 %v600
        %v739 = vunpack.c.l.s8.bf16 %v601
        %v740 = vunpack.c.h.s8.bf16 %v596
        %v741 = vunpack.c.h.s8.bf16 %v597
        %v742 = vunpack.c.h.s8.bf16 %v598
        %v743 = vunpack.c.h.s8.bf16 %v599
        %v744 = vunpack.c.h.s8.bf16 %v600
        %v745 = vunpack.c.h.s8.bf16 %v601
        %v746 = vunpack.c.l.s8.bf16 %v602
        %v747 = vunpack.c.l.s8.bf16 %v603
        %v748 = vunpack.c.l.s8.bf16 %v604
        %v749 = vunpack.c.l.s8.bf16 %v605
        %v750 = vunpack.c.l.s8.bf16 %v606
        %v751 = vunpack.c.l.s8.bf16 %v607
        %v752 = vunpack.c.h.s8.bf16 %v602
        %v753 = vunpack.c.h.s8.bf16 %v603
        %v754 = vunpack.c.h.s8.bf16 %v604
        %v755 = vunpack.c.h.s8.bf16 %v605
        %v756 = vunpack.c.h.s8.bf16 %v606
        %v757 = vunpack.c.h.s8.bf16 %v607
        %v758 = vunpack.c.l.s8.bf16 %v608
        %v759 = vunpack.c.l.s8.bf16 %v609
        %v760 = vunpack.c.l.s8.bf16 %v610
        %v761 = vunpack.c.l.s8.bf16 %v611
        %v762 = vunpack.c.l.s8.bf16 %v612
        %v763 = vunpack.c.l.s8.bf16 %v613
        %v764 = vunpack.c.h.s8.bf16 %v608
        %v765 = vunpack.c.h.s8.bf16 %v609
        %v766 = vunpack.c.h.s8.bf16 %v610
        %v767 = vunpack.c.h.s8.bf16 %v611
        %v768 = vunpack.c.h.s8.bf16 %v612
        %v769 = vunpack.c.h.s8.bf16 %v613
        %v770 = vunpack.c.l.s8.bf16 %v614
        %v771 = vunpack.c.l.s8.bf16 %v615
        %v772 = vunpack.c.l.s8.bf16 %v616
        %v773 = vunpack.c.l.s8.bf16 %v617
        %v774 = vunpack.c.l.s8.bf16 %v618
        %v775 = vunpack.c.l.s8.bf16 %v619
        %v776 = vunpack.c.h.s8.bf16 %v614
        %v777 = vunpack.c.h.s8.bf16 %v615
        %v778 = vunpack.c.h.s8.bf16 %v616
        %v779 = vunpack.c.h.s8.bf16 %v617
        %v780 = vunpack.c.h.s8.bf16 %v618
        %v781 = vunpack.c.h.s8.bf16 %v619
        %v782 = vunpack.c.l.s8.bf16 %v620
        %v783 = vunpack.c.l.s8.bf16 %v621
        %v784 = vunpack.c.l.s8.bf16 %v622
        %v785 = vunpack.c.l.s8.bf16 %v623
        %v786 = vunpack.c.l.s8.bf16 %v624
        %v787 = vunpack.c.l.s8.bf16 %v625
        %v788 = vunpack.c.h.s8.bf16 %v620
        %v789 = vunpack.c.h.s8.bf16 %v621
        %v790 = vunpack.c.h.s8.bf16 %v622
        %v791 = vunpack.c.h.s8.bf16 %v623
        %v792 = vunpack.c.h.s8.bf16 %v624
        %v793 = vunpack.c.h.s8.bf16 %v625
        %v794 = vunpack.c.l.s8.bf16 %v626
        %v795 = vunpack.c.l.s8.bf16 %v627
        %v796 = vunpack.c.l.s8.bf16 %v628
        %v797 = vunpack.c.l.s8.bf16 %v629
        %v798 = vunpack.c.l.s8.bf16 %v630
        %v799 = vunpack.c.l.s8.bf16 %v631
        %v800 = vunpack.c.h.s8.bf16 %v626
        %v801 = vunpack.c.h.s8.bf16 %v627
        %v802 = vunpack.c.h.s8.bf16 %v628
        %v803 = vunpack.c.h.s8.bf16 %v629
        %v804 = vunpack.c.h.s8.bf16 %v630
        %v805 = vunpack.c.h.s8.bf16 %v631
        %v806 = vunpack.c.l.s8.bf16 %v632
        %v807 = vunpack.c.l.s8.bf16 %v633
        %v808 = vunpack.c.l.s8.bf16 %v634
        %v809 = vunpack.c.l.s8.bf16 %v635
        %v810 = vunpack.c.l.s8.bf16 %v636
        %v811 = vunpack.c.l.s8.bf16 %v637
        %v812 = vunpack.c.h.s8.bf16 %v632
        %v813 = vunpack.c.h.s8.bf16 %v633
        %v814 = vunpack.c.h.s8.bf16 %v634
        %v815 = vunpack.c.h.s8.bf16 %v635
        %v816 = vunpack.c.h.s8.bf16 %v636
        %v817 = vunpack.c.h.s8.bf16 %v637
        %v818 = vunpack.c.l.s8.bf16 %v638
        %v819 = vunpack.c.l.s8.bf16 %v639
        %v820 = vunpack.c.l.s8.bf16 %v640
        %v821 = vunpack.c.l.s8.bf16 %v641
        %v822 = vunpack.c.l.s8.bf16 %v642
        %v823 = vunpack.c.l.s8.bf16 %v643
        %v824 = vunpack.c.h.s8.bf16 %v638
        %v825 = vunpack.c.h.s8.bf16 %v639
        %v826 = vunpack.c.h.s8.bf16 %v640
        %v827 = vunpack.c.h.s8.bf16 %v641
        %v828 = vunpack.c.h.s8.bf16 %v642
        %v829 = vunpack.c.h.s8.bf16 %v643
        %v830 = vunpack.c.l.s8.bf16 %v644
        %v831 = vunpack.c.l.s8.bf16 %v645
        %v832 = vunpack.c.l.s8.bf16 %v646
        %v833 = vunpack.c.l.s8.bf16 %v647
        %v834 = vunpack.c.l.s8.bf16 %v648
        %v835 = vunpack.c.l.s8.bf16 %v649
        %v836 = vunpack.c.h.s8.bf16 %v644
        %v837 = vunpack.c.h.s8.bf16 %v645
        %v838 = vunpack.c.h.s8.bf16 %v646
        %v839 = vunpack.c.h.s8.bf16 %v647
        %v840 = vunpack.c.h.s8.bf16 %v648
        %v841 = vunpack.c.h.s8.bf16 %v649
        %v874 = vunpack.c.l.b16 %v522
        %v875 = vunpack.c.h.b16 %v522
        %v876 = vunpack.c.l.b16 %v523
        %v877 = vunpack.c.h.b16 %v523
        %v878 = vunpack.c.l.b16 %v524
        %v879 = vunpack.c.h.b16 %v524
        %v880 = vunpack.c.l.b16 %v525
        %v881 = vunpack.c.h.b16 %v525
        %v882 = vunpack.c.l.b16 %v526
        %v883 = vunpack.c.h.b16 %v526
        %v884 = vunpack.c.l.b16 %v527
        %v885 = vunpack.c.h.b16 %v527
        %v886 = vunpack.c.l.b16 %v528
        %v887 = vunpack.c.h.b16 %v528
        %v888 = vunpack.c.l.b16 %v529
        %v889 = vunpack.c.h.b16 %v529
        %v890 = vunpack.c.l.b16 %v530
        %v891 = vunpack.c.h.b16 %v530
        %v892 = vunpack.c.l.b16 %v531
        %v893 = vunpack.c.h.b16 %v531
        %v894 = vunpack.c.l.b16 %v532
        %v895 = vunpack.c.h.b16 %v532
        %v896 = vunpack.c.l.b16 %v533
        %v897 = vunpack.c.h.b16 %v533
        %v898 = vunpack.c.l.b16 %v534
        %v899 = vunpack.c.h.b16 %v534
        %v900 = vunpack.c.l.b16 %v535
        %v901 = vunpack.c.h.b16 %v535
        %v902 = vunpack.c.l.b16 %v536
        %v903 = vunpack.c.h.b16 %v536
        %v904 = vunpack.c.l.b16 %v537
        %v905 = vunpack.c.h.b16 %v537
        %v906 = vunpack.c.l.b16 %v538
        %v907 = vunpack.c.h.b16 %v538
        %v908 = vunpack.c.l.b16 %v539
        %v909 = vunpack.c.h.b16 %v539
        %v910 = vunpack.c.l.b16 %v540
        %v911 = vunpack.c.h.b16 %v540
        %v912 = vunpack.c.l.b16 %v541
        %v913 = vunpack.c.h.b16 %v541
        %v914 = vunpack.c.l.b16 %v542
        %v915 = vunpack.c.h.b16 %v542
        %v916 = vunpack.c.l.b16 %v543
        %v917 = vunpack.c.h.b16 %v543
        %v918 = vunpack.c.l.b16 %v544
        %v919 = vunpack.c.h.b16 %v544
        %v920 = vunpack.c.l.b16 %v545
        %v921 = vunpack.c.h.b16 %v545
        %v922 = vunpack.c.l.b16 %v546
        %v923 = vunpack.c.h.b16 %v546
        %v924 = vunpack.c.l.b16 %v547
        %v925 = vunpack.c.h.b16 %v547
        %v926 = vunpack.c.l.b16 %v548
        %v927 = vunpack.c.h.b16 %v548
        %v928 = vunpack.c.l.b16 %v549
        %v929 = vunpack.c.h.b16 %v549
        %v930 = vunpack.c.l.b16 %v550
        %v931 = vunpack.c.h.b16 %v550
        %v932 = vunpack.c.l.b16 %v551
        %v933 = vunpack.c.h.b16 %v551
        %v934 = vunpack.c.l.b16 %v552
        %v935 = vunpack.c.h.b16 %v552
        %v936 = vunpack.c.l.b16 %v553
        %v937 = vunpack.c.h.b16 %v553
        %v938 = vpack.c.b16 %v878, %v874
        %v939 = vpack.c.b16 %v879, %v875
        %v940 = vpack.c.b16 %v880, %v876
        %v941 = vpack.c.b16 %v881, %v877
        %v942 = vpack.c.b16 %v886, %v882
        %v943 = vpack.c.b16 %v887, %v883
        %v944 = vpack.c.b16 %v888, %v884
        %v945 = vpack.c.b16 %v889, %v885
        %v946 = vpack.c.b16 %v894, %v890
        %v947 = vpack.c.b16 %v895, %v891
        %v948 = vpack.c.b16 %v896, %v892
        %v949 = vpack.c.b16 %v897, %v893
        %v950 = vpack.c.b16 %v902, %v898
        %v951 = vpack.c.b16 %v903, %v899
        %v952 = vpack.c.b16 %v904, %v900
        %v953 = vpack.c.b16 %v905, %v901
        %v954 = vpack.c.b16 %v910, %v906
        %v955 = vpack.c.b16 %v911, %v907
        %v956 = vpack.c.b16 %v912, %v908
        %v957 = vpack.c.b16 %v913, %v909
        %v958 = vpack.c.b16 %v918, %v914
        %v959 = vpack.c.b16 %v919, %v915
        %v960 = vpack.c.b16 %v920, %v916
        %v961 = vpack.c.b16 %v921, %v917
        %v962 = vpack.c.b16 %v926, %v922
        %v963 = vpack.c.b16 %v927, %v923
        %v964 = vpack.c.b16 %v928, %v924
        %v965 = vpack.c.b16 %v929, %v925
        %v966 = vpack.c.b16 %v934, %v930
        %v967 = vpack.c.b16 %v935, %v931
        %v968 = vpack.c.b16 %v936, %v932
        %v969 = vpack.c.b16 %v937, %v933
        %1002 = vmatprep.subr.bf16.mxu0 %v693
        %1003 = vmatpush1.bf16.msra.mxu0 %v692
        %1004 = vmatprep.subr.bf16.mxu0 %v687
        %1005 = vmatpush1.bf16.msra.mxu0 %v686
        %1006 = vmatprep.subr.bf16.mxu0 %v681
        %1007 = vmatpush1.bf16.msra.mxu0 %v680
        %1008 = vmatprep.subr.bf16.mxu0 %v675
        %1009 = vmatpush1.bf16.msra.mxu0 %v674
        %1010 = vmatprep.subr.bf16.mxu0 %v669
        %1011 = vmatpush1.bf16.msra.mxu0 %v668
        %1012 = vmatprep.subr.bf16.mxu0 %v663
        %1013 = vmatpush1.bf16.msra.mxu0 %v662
        %1014 = vmatprep.subr.bf16.mxu0 %v657
        %1015 = vmatpush1.bf16.msra.mxu0 %v656
        %1016 = vmatprep.subr.bf16.mxu0 %v651
        %1017 = vmatpush1.bf16.msra.mxu0 %v650
        %1018 = vmatprep.subr.bf16.mxu0 %v741
        %1019 = vmatpush2.bf16.msra.mxu0 %v740
        %1020 = vmatprep.subr.bf16.mxu0 %v735
        %1021 = vmatpush2.bf16.msra.mxu0 %v734
        %1022 = vmatprep.subr.bf16.mxu0 %v729
        %1023 = vmatpush2.bf16.msra.mxu0 %v728
        %1024 = vmatprep.subr.bf16.mxu0 %v723
        %1025 = vmatpush2.bf16.msra.mxu0 %v722
        %1026 = vmatprep.subr.bf16.mxu0 %v717
        %1027 = vmatpush2.bf16.msra.mxu0 %v716
        %1028 = vmatprep.subr.bf16.mxu0 %v711
        %1029 = vmatpush2.bf16.msra.mxu0 %v710
        %1030 = vmatprep.subr.bf16.mxu0 %v705
        %1031 = vmatpush2.bf16.msra.mxu0 %v704
        %1032 = vmatprep.subr.bf16.mxu0 %v699
        %1033 = vmatpush2.bf16.msra.mxu0 %v698
        %1034 = vmatprep.mubr.bf16.mxu0 %v939
        %1035 = vmatmul.mubr.bf16.gmra.mxu0 %v938
        %v1036 = vpop.f32.mrf.mxu0
        %v1037 = vadd.f32 0.0, %v1036
        %v1038 = vpop.f32.mrf.mxu0
        %v1039 = vadd.f32 0.0, %v1038
        %v1040 = vpop.f32.mrf.mxu0
        %v1041 = vadd.f32 0.0, %v1040
        %v1042 = vpop.f32.mrf.mxu0
        %v1043 = vadd.f32 0.0, %v1042
        %1044 = vmatprep.mubr.bf16.mxu0 %v943
        %1045 = vmatmul.mubr.bf16.gmra.mxu0 %v942
        %v1046 = vpop.f32.mrf.mxu0
        %v1047 = vadd.f32 0.0, %v1046
        %v1048 = vpop.f32.mrf.mxu0
        %v1049 = vadd.f32 0.0, %v1048
        %v1050 = vpop.f32.mrf.mxu0
        %v1051 = vadd.f32 0.0, %v1050
        %v1052 = vpop.f32.mrf.mxu0
        %v1053 = vadd.f32 0.0, %v1052
        %1054 = vmatprep.mubr.bf16.mxu0 %v947
        %1055 = vmatmul.mubr.bf16.gmra.mxu0 %v946
        %v1056 = vpop.f32.mrf.mxu0
        %v1057 = vadd.f32 0.0, %v1056
        %v1058 = vpop.f32.mrf.mxu0
        %v1059 = vadd.f32 0.0, %v1058
        %v1060 = vpop.f32.mrf.mxu0
        %v1061 = vadd.f32 0.0, %v1060
        %v1062 = vpop.f32.mrf.mxu0
        %v1063 = vadd.f32 0.0, %v1062
        %1064 = vmatprep.mubr.bf16.mxu0 %v951
        %1065 = vmatmul.mubr.bf16.gmra.mxu0 %v950
        %v1066 = vpop.f32.mrf.mxu0
        %v1067 = vadd.f32 0.0, %v1066
        %v1068 = vpop.f32.mrf.mxu0
        %v1069 = vadd.f32 0.0, %v1068
        %v1070 = vpop.f32.mrf.mxu0
        %v1071 = vadd.f32 0.0, %v1070
        %v1072 = vpop.f32.mrf.mxu0
        %v1073 = vadd.f32 0.0, %v1072
        %1074 = vmatprep.mubr.bf16.mxu0 %v955
        %1075 = vmatmul.mubr.bf16.gmra.mxu0 %v954
        %v1076 = vpop.f32.mrf.mxu0
        %v1077 = vadd.f32 0.0, %v1076
        %v1078 = vpop.f32.mrf.mxu0
        %v1079 = vadd.f32 0.0, %v1078
        %v1080 = vpop.f32.mrf.mxu0
        %v1081 = vadd.f32 0.0, %v1080
        %v1082 = vpop.f32.mrf.mxu0
        %v1083 = vadd.f32 0.0, %v1082
        %1084 = vmatprep.mubr.bf16.mxu0 %v959
        %1085 = vmatmul.mubr.bf16.gmra.mxu0 %v958
        %v1086 = vpop.f32.mrf.mxu0
        %v1087 = vadd.f32 0.0, %v1086
        %v1088 = vpop.f32.mrf.mxu0
        %v1089 = vadd.f32 0.0, %v1088
        %v1090 = vpop.f32.mrf.mxu0
        %v1091 = vadd.f32 0.0, %v1090
        %v1092 = vpop.f32.mrf.mxu0
        %v1093 = vadd.f32 0.0, %v1092
        %1094 = vmatprep.mubr.bf16.mxu0 %v963
        %1095 = vmatmul.mubr.bf16.gmra.mxu0 %v962
        %v1096 = vpop.f32.mrf.mxu0
        %v1097 = vadd.f32 0.0, %v1096
        %v1098 = vpop.f32.mrf.mxu0
        %v1099 = vadd.f32 0.0, %v1098
        %v1100 = vpop.f32.mrf.mxu0
        %v1101 = vadd.f32 0.0, %v1100
        %v1102 = vpop.f32.mrf.mxu0
        %v1103 = vadd.f32 0.0, %v1102
        %1104 = vmatprep.mubr.bf16.mxu0 %v967
        %1105 = vmatmul.mubr.bf16.gmra.mxu0 %v966
        %v1106 = vpop.f32.mrf.mxu0
        %v1107 = vadd.f32 0.0, %v1106
        %v1108 = vpop.f32.mrf.mxu0
        %v1109 = vadd.f32 0.0, %v1108
        %v1110 = vpop.f32.mrf.mxu0
        %v1111 = vadd.f32 0.0, %v1110
        %v1112 = vpop.f32.mrf.mxu0
        %v1113 = vadd.f32 0.0, %v1112
        %1114 = vdwg.mxu0
        %1115 = vmatprep.subr.bf16.mxu0 %v789
        %1116 = vmatpush1.bf16.msra.mxu0 %v788
        %1117 = vmatprep.subr.bf16.mxu0 %v783
        %1118 = vmatpush1.bf16.msra.mxu0 %v782
        %1119 = vmatprep.subr.bf16.mxu0 %v777
        %1120 = vmatpush1.bf16.msra.mxu0 %v776
        %1121 = vmatprep.subr.bf16.mxu0 %v771
        %1122 = vmatpush1.bf16.msra.mxu0 %v770
        %1123 = vmatprep.subr.bf16.mxu0 %v765
        %1124 = vmatpush1.bf16.msra.mxu0 %v764
        %1125 = vmatprep.subr.bf16.mxu0 %v759
        %1126 = vmatpush1.bf16.msra.mxu0 %v758
        %1127 = vmatprep.subr.bf16.mxu0 %v753
        %1128 = vmatpush1.bf16.msra.mxu0 %v752
        %1129 = vmatprep.subr.bf16.mxu0 %v747
        %1130 = vmatpush1.bf16.msra.mxu0 %v746
        %1131 = vmatprep.subr.bf16.mxu0 %v837
        %1132 = vmatpush2.bf16.msra.mxu0 %v836
        %1133 = vmatprep.subr.bf16.mxu0 %v831
        %1134 = vmatpush2.bf16.msra.mxu0 %v830
        %1135 = vmatprep.subr.bf16.mxu0 %v825
        %1136 = vmatpush2.bf16.msra.mxu0 %v824
        %1137 = vmatprep.subr.bf16.mxu0 %v819
        %1138 = vmatpush2.bf16.msra.mxu0 %v818
        %1139 = vmatprep.subr.bf16.mxu0 %v813
        %1140 = vmatpush2.bf16.msra.mxu0 %v812
        %1141 = vmatprep.subr.bf16.mxu0 %v807
        %1142 = vmatpush2.bf16.msra.mxu0 %v806
        %1143 = vmatprep.subr.bf16.mxu0 %v801
        %1144 = vmatpush2.bf16.msra.mxu0 %v800
        %1145 = vmatprep.subr.bf16.mxu0 %v795
        %1146 = vmatpush2.bf16.msra.mxu0 %v794
        %1147 = vmatprep.mubr.bf16.mxu0 %v941
        %1148 = vmatmul.mubr.bf16.gmra.mxu0 %v940
        %v1149 = vpop.f32.mrf.mxu0
        %v1150 = vadd.f32 %v1037, %v1149
        %v1151 = vpop.f32.mrf.mxu0
        %v1152 = vadd.f32 %v1039, %v1151
        %v1153 = vpop.f32.mrf.mxu0
        %v1154 = vadd.f32 %v1041, %v1153
        %v1155 = vpop.f32.mrf.mxu0
        %v1156 = vadd.f32 %v1043, %v1155
        %1157 = vmatprep.mubr.bf16.mxu0 %v945
        %1158 = vmatmul.mubr.bf16.gmra.mxu0 %v944
        %v1159 = vpop.f32.mrf.mxu0
        %v1160 = vadd.f32 %v1047, %v1159
        %v1161 = vpop.f32.mrf.mxu0
        %v1162 = vadd.f32 %v1049, %v1161
        %v1163 = vpop.f32.mrf.mxu0
        %v1164 = vadd.f32 %v1051, %v1163
        %v1165 = vpop.f32.mrf.mxu0
        %v1166 = vadd.f32 %v1053, %v1165
        %1167 = vmatprep.mubr.bf16.mxu0 %v949
        %1168 = vmatmul.mubr.bf16.gmra.mxu0 %v948
        %v1169 = vpop.f32.mrf.mxu0
        %v1170 = vadd.f32 %v1057, %v1169
        %v1171 = vpop.f32.mrf.mxu0
        %v1172 = vadd.f32 %v1059, %v1171
        %v1173 = vpop.f32.mrf.mxu0
        %v1174 = vadd.f32 %v1061, %v1173
        %v1175 = vpop.f32.mrf.mxu0
        %v1176 = vadd.f32 %v1063, %v1175
        %1177 = vmatprep.mubr.bf16.mxu0 %v953
        %1178 = vmatmul.mubr.bf16.gmra.mxu0 %v952
        %v1179 = vpop.f32.mrf.mxu0
        %v1180 = vadd.f32 %v1067, %v1179
        %v1181 = vpop.f32.mrf.mxu0
        %v1182 = vadd.f32 %v1069, %v1181
        %v1183 = vpop.f32.mrf.mxu0
        %v1184 = vadd.f32 %v1071, %v1183
        %v1185 = vpop.f32.mrf.mxu0
        %v1186 = vadd.f32 %v1073, %v1185
        %1187 = vmatprep.mubr.bf16.mxu0 %v957
        %1188 = vmatmul.mubr.bf16.gmra.mxu0 %v956
        %v1189 = vpop.f32.mrf.mxu0
        %v1190 = vadd.f32 %v1077, %v1189
        %v1191 = vpop.f32.mrf.mxu0
        %v1192 = vadd.f32 %v1079, %v1191
        %v1193 = vpop.f32.mrf.mxu0
        %v1194 = vadd.f32 %v1081, %v1193
        %v1195 = vpop.f32.mrf.mxu0
        %v1196 = vadd.f32 %v1083, %v1195
        %1197 = vmatprep.mubr.bf16.mxu0 %v961
        %1198 = vmatmul.mubr.bf16.gmra.mxu0 %v960
        %v1199 = vpop.f32.mrf.mxu0
        %v1200 = vadd.f32 %v1087, %v1199
        %v1201 = vpop.f32.mrf.mxu0
        %v1202 = vadd.f32 %v1089, %v1201
        %v1203 = vpop.f32.mrf.mxu0
        %v1204 = vadd.f32 %v1091, %v1203
        %v1205 = vpop.f32.mrf.mxu0
        %v1206 = vadd.f32 %v1093, %v1205
        %1207 = vmatprep.mubr.bf16.mxu0 %v965
        %1208 = vmatmul.mubr.bf16.gmra.mxu0 %v964
        %v1209 = vpop.f32.mrf.mxu0
        %v1210 = vadd.f32 %v1097, %v1209
        %v1211 = vpop.f32.mrf.mxu0
        %v1212 = vadd.f32 %v1099, %v1211
        %v1213 = vpop.f32.mrf.mxu0
        %v1214 = vadd.f32 %v1101, %v1213
        %v1215 = vpop.f32.mrf.mxu0
        %v1216 = vadd.f32 %v1103, %v1215
        %1217 = vmatprep.mubr.bf16.mxu0 %v969
        %1218 = vmatmul.mubr.bf16.gmra.mxu0 %v968
        %v1219 = vpop.f32.mrf.mxu0
        %v1220 = vadd.f32 %v1107, %v1219
        %v1221 = vpop.f32.mrf.mxu0
        %v1222 = vadd.f32 %v1109, %v1221
        %v1223 = vpop.f32.mrf.mxu0
        %v1224 = vadd.f32 %v1111, %v1223
        %v1225 = vpop.f32.mrf.mxu0
        %v1226 = vadd.f32 %v1113, %v1225
        %1227 = vdwg.mxu0
        %1228 = vmatprep.subr.bf16.mxu0 %v695
        %1229 = vmatpush1.bf16.msra.mxu0 %v694
        %1230 = vmatprep.subr.bf16.mxu0 %v689
        %1231 = vmatpush1.bf16.msra.mxu0 %v688
        %1232 = vmatprep.subr.bf16.mxu0 %v683
        %1233 = vmatpush1.bf16.msra.mxu0 %v682
        %1234 = vmatprep.subr.bf16.mxu0 %v677
        %1235 = vmatpush1.bf16.msra.mxu0 %v676
        %1236 = vmatprep.subr.bf16.mxu0 %v671
        %1237 = vmatpush1.bf16.msra.mxu0 %v670
        %1238 = vmatprep.subr.bf16.mxu0 %v665
        %1239 = vmatpush1.bf16.msra.mxu0 %v664
        %1240 = vmatprep.subr.bf16.mxu0 %v659
        %1241 = vmatpush1.bf16.msra.mxu0 %v658
        %1242 = vmatprep.subr.bf16.mxu0 %v653
        %1243 = vmatpush1.bf16.msra.mxu0 %v652
        %1244 = vmatprep.subr.bf16.mxu0 %v743
        %1245 = vmatpush2.bf16.msra.mxu0 %v742
        %1246 = vmatprep.subr.bf16.mxu0 %v737
        %1247 = vmatpush2.bf16.msra.mxu0 %v736
        %1248 = vmatprep.subr.bf16.mxu0 %v731
        %1249 = vmatpush2.bf16.msra.mxu0 %v730
        %1250 = vmatprep.subr.bf16.mxu0 %v725
        %1251 = vmatpush2.bf16.msra.mxu0 %v724
        %1252 = vmatprep.subr.bf16.mxu0 %v719
        %1253 = vmatpush2.bf16.msra.mxu0 %v718
        %1254 = vmatprep.subr.bf16.mxu0 %v713
        %1255 = vmatpush2.bf16.msra.mxu0 %v712
        %1256 = vmatprep.subr.bf16.mxu0 %v707
        %1257 = vmatpush2.bf16.msra.mxu0 %v706
        %1258 = vmatprep.subr.bf16.mxu0 %v701
        %1259 = vmatpush2.bf16.msra.mxu0 %v700
        %1260 = vmatprep.mubr.bf16.mxu0 %v939
        %1261 = vmatmul.mubr.bf16.gmra.mxu0 %v938
        %v1262 = vpop.f32.mrf.mxu0
        %v1263 = vadd.f32 0.0, %v1262
        %v1264 = vpop.f32.mrf.mxu0
        %v1265 = vadd.f32 0.0, %v1264
        %v1266 = vpop.f32.mrf.mxu0
        %v1267 = vadd.f32 0.0, %v1266
        %v1268 = vpop.f32.mrf.mxu0
        %v1269 = vadd.f32 0.0, %v1268
        %1270 = vmatprep.mubr.bf16.mxu0 %v943
        %1271 = vmatmul.mubr.bf16.gmra.mxu0 %v942
        %v1272 = vpop.f32.mrf.mxu0
        %v1273 = vadd.f32 0.0, %v1272
        %v1274 = vpop.f32.mrf.mxu0
        %v1275 = vadd.f32 0.0, %v1274
        %v1276 = vpop.f32.mrf.mxu0
        %v1277 = vadd.f32 0.0, %v1276
        %v1278 = vpop.f32.mrf.mxu0
        %v1279 = vadd.f32 0.0, %v1278
        %1280 = vmatprep.mubr.bf16.mxu0 %v947
        %1281 = vmatmul.mubr.bf16.gmra.mxu0 %v946
        %v1282 = vpop.f32.mrf.mxu0
        %v1283 = vadd.f32 0.0, %v1282
        %v1284 = vpop.f32.mrf.mxu0
        %v1285 = vadd.f32 0.0, %v1284
        %v1286 = vpop.f32.mrf.mxu0
        %v1287 = vadd.f32 0.0, %v1286
        %v1288 = vpop.f32.mrf.mxu0
        %v1289 = vadd.f32 0.0, %v1288
        %1290 = vmatprep.mubr.bf16.mxu0 %v951
        %1291 = vmatmul.mubr.bf16.gmra.mxu0 %v950
        %v1292 = vpop.f32.mrf.mxu0
        %v1293 = vadd.f32 0.0, %v1292
        %v1294 = vpop.f32.mrf.mxu0
        %v1295 = vadd.f32 0.0, %v1294
        %v1296 = vpop.f32.mrf.mxu0
        %v1297 = vadd.f32 0.0, %v1296
        %v1298 = vpop.f32.mrf.mxu0
        %v1299 = vadd.f32 0.0, %v1298
        %1300 = vmatprep.mubr.bf16.mxu0 %v955
        %1301 = vmatmul.mubr.bf16.gmra.mxu0 %v954
        %v1302 = vpop.f32.mrf.mxu0
        %v1303 = vadd.f32 0.0, %v1302
        %v1304 = vpop.f32.mrf.mxu0
        %v1305 = vadd.f32 0.0, %v1304
        %v1306 = vpop.f32.mrf.mxu0
        %v1307 = vadd.f32 0.0, %v1306
        %v1308 = vpop.f32.mrf.mxu0
        %v1309 = vadd.f32 0.0, %v1308
        %1310 = vmatprep.mubr.bf16.mxu0 %v959
        %1311 = vmatmul.mubr.bf16.gmra.mxu0 %v958
        %v1312 = vpop.f32.mrf.mxu0
        %v1313 = vadd.f32 0.0, %v1312
        %v1314 = vpop.f32.mrf.mxu0
        %v1315 = vadd.f32 0.0, %v1314
        %v1316 = vpop.f32.mrf.mxu0
        %v1317 = vadd.f32 0.0, %v1316
        %v1318 = vpop.f32.mrf.mxu0
        %v1319 = vadd.f32 0.0, %v1318
        %1320 = vmatprep.mubr.bf16.mxu0 %v963
        %1321 = vmatmul.mubr.bf16.gmra.mxu0 %v962
        %v1322 = vpop.f32.mrf.mxu0
        %v1323 = vadd.f32 0.0, %v1322
        %v1324 = vpop.f32.mrf.mxu0
        %v1325 = vadd.f32 0.0, %v1324
        %v1326 = vpop.f32.mrf.mxu0
        %v1327 = vadd.f32 0.0, %v1326
        %v1328 = vpop.f32.mrf.mxu0
        %v1329 = vadd.f32 0.0, %v1328
        %1330 = vmatprep.mubr.bf16.mxu0 %v967
        %1331 = vmatmul.mubr.bf16.gmra.mxu0 %v966
        %v1332 = vpop.f32.mrf.mxu0
        %v1333 = vadd.f32 0.0, %v1332
        %v1334 = vpop.f32.mrf.mxu0
        %v1335 = vadd.f32 0.0, %v1334
        %v1336 = vpop.f32.mrf.mxu0
        %v1337 = vadd.f32 0.0, %v1336
        %v1338 = vpop.f32.mrf.mxu0
        %v1339 = vadd.f32 0.0, %v1338
        %1340 = vdwg.mxu0
        %1341 = vmatprep.subr.bf16.mxu0 %v791
        %1342 = vmatpush1.bf16.msra.mxu0 %v790
        %1343 = vmatprep.subr.bf16.mxu0 %v785
        %1344 = vmatpush1.bf16.msra.mxu0 %v784
        %1345 = vmatprep.subr.bf16.mxu0 %v779
        %1346 = vmatpush1.bf16.msra.mxu0 %v778
        %1347 = vmatprep.subr.bf16.mxu0 %v773
        %1348 = vmatpush1.bf16.msra.mxu0 %v772
        %1349 = vmatprep.subr.bf16.mxu0 %v767
        %1350 = vmatpush1.bf16.msra.mxu0 %v766
        %1351 = vmatprep.subr.bf16.mxu0 %v761
        %1352 = vmatpush1.bf16.msra.mxu0 %v760
        %1353 = vmatprep.subr.bf16.mxu0 %v755
        %1354 = vmatpush1.bf16.msra.mxu0 %v754
        %1355 = vmatprep.subr.bf16.mxu0 %v749
        %1356 = vmatpush1.bf16.msra.mxu0 %v748
        %1357 = vmatprep.subr.bf16.mxu0 %v839
        %1358 = vmatpush2.bf16.msra.mxu0 %v838
        %1359 = vmatprep.subr.bf16.mxu0 %v833
        %1360 = vmatpush2.bf16.msra.mxu0 %v832
        %1361 = vmatprep.subr.bf16.mxu0 %v827
        %1362 = vmatpush2.bf16.msra.mxu0 %v826
        %1363 = vmatprep.subr.bf16.mxu0 %v821
        %1364 = vmatpush2.bf16.msra.mxu0 %v820
        %1365 = vmatprep.subr.bf16.mxu0 %v815
        %1366 = vmatpush2.bf16.msra.mxu0 %v814
        %1367 = vmatprep.subr.bf16.mxu0 %v809
        %1368 = vmatpush2.bf16.msra.mxu0 %v808
        %1369 = vmatprep.subr.bf16.mxu0 %v803
        %1370 = vmatpush2.bf16.msra.mxu0 %v802
        %1371 = vmatprep.subr.bf16.mxu0 %v797
        %1372 = vmatpush2.bf16.msra.mxu0 %v796
        %1373 = vmatprep.mubr.bf16.mxu0 %v941
        %1374 = vmatmul.mubr.bf16.gmra.mxu0 %v940
        %v1375 = vpop.f32.mrf.mxu0
        %v1376 = vadd.f32 %v1263, %v1375
        %v1377 = vpop.f32.mrf.mxu0
        %v1378 = vadd.f32 %v1265, %v1377
        %v1379 = vpop.f32.mrf.mxu0
        %v1380 = vadd.f32 %v1267, %v1379
        %v1381 = vpop.f32.mrf.mxu0
        %v1382 = vadd.f32 %v1269, %v1381
        %1383 = vmatprep.mubr.bf16.mxu0 %v945
        %1384 = vmatmul.mubr.bf16.gmra.mxu0 %v944
        %v1385 = vpop.f32.mrf.mxu0
        %v1386 = vadd.f32 %v1273, %v1385
        %v1387 = vpop.f32.mrf.mxu0
        %v1388 = vadd.f32 %v1275, %v1387
        %v1389 = vpop.f32.mrf.mxu0
        %v1390 = vadd.f32 %v1277, %v1389
        %v1391 = vpop.f32.mrf.mxu0
        %v1392 = vadd.f32 %v1279, %v1391
        %1393 = vmatprep.mubr.bf16.mxu0 %v949
        %1394 = vmatmul.mubr.bf16.gmra.mxu0 %v948
        %v1395 = vpop.f32.mrf.mxu0
        %v1396 = vadd.f32 %v1283, %v1395
        %v1397 = vpop.f32.mrf.mxu0
        %v1398 = vadd.f32 %v1285, %v1397
        %v1399 = vpop.f32.mrf.mxu0
        %v1400 = vadd.f32 %v1287, %v1399
        %v1401 = vpop.f32.mrf.mxu0
        %v1402 = vadd.f32 %v1289, %v1401
        %1403 = vmatprep.mubr.bf16.mxu0 %v953
        %1404 = vmatmul.mubr.bf16.gmra.mxu0 %v952
        %v1405 = vpop.f32.mrf.mxu0
        %v1406 = vadd.f32 %v1293, %v1405
        %v1407 = vpop.f32.mrf.mxu0
        %v1408 = vadd.f32 %v1295, %v1407
        %v1409 = vpop.f32.mrf.mxu0
        %v1410 = vadd.f32 %v1297, %v1409
        %v1411 = vpop.f32.mrf.mxu0
        %v1412 = vadd.f32 %v1299, %v1411
        %1413 = vmatprep.mubr.bf16.mxu0 %v957
        %1414 = vmatmul.mubr.bf16.gmra.mxu0 %v956
        %v1415 = vpop.f32.mrf.mxu0
        %v1416 = vadd.f32 %v1303, %v1415
        %v1417 = vpop.f32.mrf.mxu0
        %v1418 = vadd.f32 %v1305, %v1417
        %v1419 = vpop.f32.mrf.mxu0
        %v1420 = vadd.f32 %v1307, %v1419
        %v1421 = vpop.f32.mrf.mxu0
        %v1422 = vadd.f32 %v1309, %v1421
        %1423 = vmatprep.mubr.bf16.mxu0 %v961
        %1424 = vmatmul.mubr.bf16.gmra.mxu0 %v960
        %v1425 = vpop.f32.mrf.mxu0
        %v1426 = vadd.f32 %v1313, %v1425
        %v1427 = vpop.f32.mrf.mxu0
        %v1428 = vadd.f32 %v1315, %v1427
        %v1429 = vpop.f32.mrf.mxu0
        %v1430 = vadd.f32 %v1317, %v1429
        %v1431 = vpop.f32.mrf.mxu0
        %v1432 = vadd.f32 %v1319, %v1431
        %1433 = vmatprep.mubr.bf16.mxu0 %v965
        %1434 = vmatmul.mubr.bf16.gmra.mxu0 %v964
        %v1435 = vpop.f32.mrf.mxu0
        %v1436 = vadd.f32 %v1323, %v1435
        %v1437 = vpop.f32.mrf.mxu0
        %v1438 = vadd.f32 %v1325, %v1437
        %v1439 = vpop.f32.mrf.mxu0
        %v1440 = vadd.f32 %v1327, %v1439
        %v1441 = vpop.f32.mrf.mxu0
        %v1442 = vadd.f32 %v1329, %v1441
        %1443 = vmatprep.mubr.bf16.mxu0 %v969
        %1444 = vmatmul.mubr.bf16.gmra.mxu0 %v968
        %v1445 = vpop.f32.mrf.mxu0
        %v1446 = vadd.f32 %v1333, %v1445
        %v1447 = vpop.f32.mrf.mxu0
        %v1448 = vadd.f32 %v1335, %v1447
        %v1449 = vpop.f32.mrf.mxu0
        %v1450 = vadd.f32 %v1337, %v1449
        %v1451 = vpop.f32.mrf.mxu0
        %v1452 = vadd.f32 %v1339, %v1451
        %1453 = vdwg.mxu0
        %1454 = vmatprep.subr.bf16.mxu0 %v697
        %1455 = vmatpush1.bf16.msra.mxu0 %v696
        %1456 = vmatprep.subr.bf16.mxu0 %v691
        %1457 = vmatpush1.bf16.msra.mxu0 %v690
        %1458 = vmatprep.subr.bf16.mxu0 %v685
        %1459 = vmatpush1.bf16.msra.mxu0 %v684
        %1460 = vmatprep.subr.bf16.mxu0 %v679
        %1461 = vmatpush1.bf16.msra.mxu0 %v678
        %1462 = vmatprep.subr.bf16.mxu0 %v673
        %1463 = vmatpush1.bf16.msra.mxu0 %v672
        %1464 = vmatprep.subr.bf16.mxu0 %v667
        %1465 = vmatpush1.bf16.msra.mxu0 %v666
        %1466 = vmatprep.subr.bf16.mxu0 %v661
        %1467 = vmatpush1.bf16.msra.mxu0 %v660
        %1468 = vmatprep.subr.bf16.mxu0 %v655
        %1469 = vmatpush1.bf16.msra.mxu0 %v654
        %1470 = vmatprep.subr.bf16.mxu0 %v745
        %1471 = vmatpush2.bf16.msra.mxu0 %v744
        %1472 = vmatprep.subr.bf16.mxu0 %v739
        %1473 = vmatpush2.bf16.msra.mxu0 %v738
        %1474 = vmatprep.subr.bf16.mxu0 %v733
        %1475 = vmatpush2.bf16.msra.mxu0 %v732
        %1476 = vmatprep.subr.bf16.mxu0 %v727
        %1477 = vmatpush2.bf16.msra.mxu0 %v726
        %1478 = vmatprep.subr.bf16.mxu0 %v721
        %1479 = vmatpush2.bf16.msra.mxu0 %v720
        %1480 = vmatprep.subr.bf16.mxu0 %v715
        %1481 = vmatpush2.bf16.msra.mxu0 %v714
        %1482 = vmatprep.subr.bf16.mxu0 %v709
        %1483 = vmatpush2.bf16.msra.mxu0 %v708
        %1484 = vmatprep.subr.bf16.mxu0 %v703
        %1485 = vmatpush2.bf16.msra.mxu0 %v702
        %1486 = vmatprep.mubr.bf16.mxu0 %v939
        %1487 = vmatmul.mubr.bf16.gmra.mxu0 %v938
        %v1488 = vpop.f32.mrf.mxu0
        %v1489 = vadd.f32 0.0, %v1488
        %v1490 = vpop.f32.mrf.mxu0
        %v1491 = vadd.f32 0.0, %v1490
        %v1492 = vpop.f32.mrf.mxu0
        %v1493 = vadd.f32 0.0, %v1492
        %v1494 = vpop.f32.mrf.mxu0
        %v1495 = vadd.f32 0.0, %v1494
        %1496 = vmatprep.mubr.bf16.mxu0 %v943
        %1497 = vmatmul.mubr.bf16.gmra.mxu0 %v942
        %v1498 = vpop.f32.mrf.mxu0
        %v1499 = vadd.f32 0.0, %v1498
        %v1500 = vpop.f32.mrf.mxu0
        %v1501 = vadd.f32 0.0, %v1500
        %v1502 = vpop.f32.mrf.mxu0
        %v1503 = vadd.f32 0.0, %v1502
        %v1504 = vpop.f32.mrf.mxu0
        %v1505 = vadd.f32 0.0, %v1504
        %1506 = vmatprep.mubr.bf16.mxu0 %v947
        %1507 = vmatmul.mubr.bf16.gmra.mxu0 %v946
        %v1508 = vpop.f32.mrf.mxu0
        %v1509 = vadd.f32 0.0, %v1508
        %v1510 = vpop.f32.mrf.mxu0
        %v1511 = vadd.f32 0.0, %v1510
        %v1512 = vpop.f32.mrf.mxu0
        %v1513 = vadd.f32 0.0, %v1512
        %v1514 = vpop.f32.mrf.mxu0
        %v1515 = vadd.f32 0.0, %v1514
        %1516 = vmatprep.mubr.bf16.mxu0 %v951
        %1517 = vmatmul.mubr.bf16.gmra.mxu0 %v950
        %v1518 = vpop.f32.mrf.mxu0
        %v1519 = vadd.f32 0.0, %v1518
        %v1520 = vpop.f32.mrf.mxu0
        %v1521 = vadd.f32 0.0, %v1520
        %v1522 = vpop.f32.mrf.mxu0
        %v1523 = vadd.f32 0.0, %v1522
        %v1524 = vpop.f32.mrf.mxu0
        %v1525 = vadd.f32 0.0, %v1524
        %1526 = vmatprep.mubr.bf16.mxu0 %v955
        %1527 = vmatmul.mubr.bf16.gmra.mxu0 %v954
        %v1528 = vpop.f32.mrf.mxu0
        %v1529 = vadd.f32 0.0, %v1528
        %v1530 = vpop.f32.mrf.mxu0
        %v1531 = vadd.f32 0.0, %v1530
        %v1532 = vpop.f32.mrf.mxu0
        %v1533 = vadd.f32 0.0, %v1532
        %v1534 = vpop.f32.mrf.mxu0
        %v1535 = vadd.f32 0.0, %v1534
        %1536 = vmatprep.mubr.bf16.mxu0 %v959
        %1537 = vmatmul.mubr.bf16.gmra.mxu0 %v958
        %v1538 = vpop.f32.mrf.mxu0
        %v1539 = vadd.f32 0.0, %v1538
        %v1540 = vpop.f32.mrf.mxu0
        %v1541 = vadd.f32 0.0, %v1540
        %v1542 = vpop.f32.mrf.mxu0
        %v1543 = vadd.f32 0.0, %v1542
        %v1544 = vpop.f32.mrf.mxu0
        %v1545 = vadd.f32 0.0, %v1544
        %1546 = vmatprep.mubr.bf16.mxu0 %v963
        %1547 = vmatmul.mubr.bf16.gmra.mxu0 %v962
        %v1548 = vpop.f32.mrf.mxu0
        %v1549 = vadd.f32 0.0, %v1548
        %v1550 = vpop.f32.mrf.mxu0
        %v1551 = vadd.f32 0.0, %v1550
        %v1552 = vpop.f32.mrf.mxu0
        %v1553 = vadd.f32 0.0, %v1552
        %v1554 = vpop.f32.mrf.mxu0
        %v1555 = vadd.f32 0.0, %v1554
        %1556 = vmatprep.mubr.bf16.mxu0 %v967
        %1557 = vmatmul.mubr.bf16.gmra.mxu0 %v966
        %v1558 = vpop.f32.mrf.mxu0
        %v1559 = vadd.f32 0.0, %v1558
        %v1560 = vpop.f32.mrf.mxu0
        %v1561 = vadd.f32 0.0, %v1560
        %v1562 = vpop.f32.mrf.mxu0
        %v1563 = vadd.f32 0.0, %v1562
        %v1564 = vpop.f32.mrf.mxu0
        %v1565 = vadd.f32 0.0, %v1564
        %1566 = vdwg.mxu0
        %1567 = vmatprep.subr.bf16.mxu0 %v793
        %1568 = vmatpush1.bf16.msra.mxu0 %v792
        %1569 = vmatprep.subr.bf16.mxu0 %v787
        %1570 = vmatpush1.bf16.msra.mxu0 %v786
        %1571 = vmatprep.subr.bf16.mxu0 %v781
        %1572 = vmatpush1.bf16.msra.mxu0 %v780
        %1573 = vmatprep.subr.bf16.mxu0 %v775
        %1574 = vmatpush1.bf16.msra.mxu0 %v774
        %1575 = vmatprep.subr.bf16.mxu0 %v769
        %1576 = vmatpush1.bf16.msra.mxu0 %v768
        %1577 = vmatprep.subr.bf16.mxu0 %v763
        %1578 = vmatpush1.bf16.msra.mxu0 %v762
        %1579 = vmatprep.subr.bf16.mxu0 %v757
        %1580 = vmatpush1.bf16.msra.mxu0 %v756
        %1581 = vmatprep.subr.bf16.mxu0 %v751
        %1582 = vmatpush1.bf16.msra.mxu0 %v750
        %1583 = vmatprep.subr.bf16.mxu0 %v841
        %1584 = vmatpush2.bf16.msra.mxu0 %v840
        %1585 = vmatprep.subr.bf16.mxu0 %v835
        %1586 = vmatpush2.bf16.msra.mxu0 %v834
        %1587 = vmatprep.subr.bf16.mxu0 %v829
        %1588 = vmatpush2.bf16.msra.mxu0 %v828
        %1589 = vmatprep.subr.bf16.mxu0 %v823
        %1590 = vmatpush2.bf16.msra.mxu0 %v822
        %1591 = vmatprep.subr.bf16.mxu0 %v817
        %1592 = vmatpush2.bf16.msra.mxu0 %v816
        %1593 = vmatprep.subr.bf16.mxu0 %v811
        %1594 = vmatpush2.bf16.msra.mxu0 %v810
        %1595 = vmatprep.subr.bf16.mxu0 %v805
        %1596 = vmatpush2.bf16.msra.mxu0 %v804
        %1597 = vmatprep.subr.bf16.mxu0 %v799
        %1598 = vmatpush2.bf16.msra.mxu0 %v798
        %1599 = vmatprep.mubr.bf16.mxu0 %v941
        %1600 = vmatmul.mubr.bf16.gmra.mxu0 %v940
        %v1601 = vpop.f32.mrf.mxu0
        %v1602 = vadd.f32 %v1489, %v1601
        %v1603 = vpop.f32.mrf.mxu0
        %v1604 = vadd.f32 %v1491, %v1603
        %v1605 = vpop.f32.mrf.mxu0
        %v1606 = vadd.f32 %v1493, %v1605
        %v1607 = vpop.f32.mrf.mxu0
        %v1608 = vadd.f32 %v1495, %v1607
        %1609 = vmatprep.mubr.bf16.mxu0 %v945
        %1610 = vmatmul.mubr.bf16.gmra.mxu0 %v944
        %v1611 = vpop.f32.mrf.mxu0
        %v1612 = vadd.f32 %v1499, %v1611
        %v1613 = vpop.f32.mrf.mxu0
        %v1614 = vadd.f32 %v1501, %v1613
        %v1615 = vpop.f32.mrf.mxu0
        %v1616 = vadd.f32 %v1503, %v1615
        %v1617 = vpop.f32.mrf.mxu0
        %v1618 = vadd.f32 %v1505, %v1617
        %1619 = vmatprep.mubr.bf16.mxu0 %v949
        %1620 = vmatmul.mubr.bf16.gmra.mxu0 %v948
        %v1621 = vpop.f32.mrf.mxu0
        %v1622 = vadd.f32 %v1509, %v1621
        %v1623 = vpop.f32.mrf.mxu0
        %v1624 = vadd.f32 %v1511, %v1623
        %v1625 = vpop.f32.mrf.mxu0
        %v1626 = vadd.f32 %v1513, %v1625
        %v1627 = vpop.f32.mrf.mxu0
        %v1628 = vadd.f32 %v1515, %v1627
        %1629 = vmatprep.mubr.bf16.mxu0 %v953
        %1630 = vmatmul.mubr.bf16.gmra.mxu0 %v952
        %v1631 = vpop.f32.mrf.mxu0
        %v1632 = vadd.f32 %v1519, %v1631
        %v1633 = vpop.f32.mrf.mxu0
        %v1634 = vadd.f32 %v1521, %v1633
        %v1635 = vpop.f32.mrf.mxu0
        %v1636 = vadd.f32 %v1523, %v1635
        %v1637 = vpop.f32.mrf.mxu0
        %v1638 = vadd.f32 %v1525, %v1637
        %1639 = vmatprep.mubr.bf16.mxu0 %v957
        %1640 = vmatmul.mubr.bf16.gmra.mxu0 %v956
        %v1641 = vpop.f32.mrf.mxu0
        %v1642 = vadd.f32 %v1529, %v1641
        %v1643 = vpop.f32.mrf.mxu0
        %v1644 = vadd.f32 %v1531, %v1643
        %v1645 = vpop.f32.mrf.mxu0
        %v1646 = vadd.f32 %v1533, %v1645
        %v1647 = vpop.f32.mrf.mxu0
        %v1648 = vadd.f32 %v1535, %v1647
        %1649 = vmatprep.mubr.bf16.mxu0 %v961
        %1650 = vmatmul.mubr.bf16.gmra.mxu0 %v960
        %v1651 = vpop.f32.mrf.mxu0
        %v1652 = vadd.f32 %v1539, %v1651
        %v1653 = vpop.f32.mrf.mxu0
        %v1654 = vadd.f32 %v1541, %v1653
        %v1655 = vpop.f32.mrf.mxu0
        %v1656 = vadd.f32 %v1543, %v1655
        %v1657 = vpop.f32.mrf.mxu0
        %v1658 = vadd.f32 %v1545, %v1657
        %1659 = vmatprep.mubr.bf16.mxu0 %v965
        %1660 = vmatmul.mubr.bf16.gmra.mxu0 %v964
        %v1661 = vpop.f32.mrf.mxu0
        %v1662 = vadd.f32 %v1549, %v1661
        %v1663 = vpop.f32.mrf.mxu0
        %v1664 = vadd.f32 %v1551, %v1663
        %v1665 = vpop.f32.mrf.mxu0
        %v1666 = vadd.f32 %v1553, %v1665
        %v1667 = vpop.f32.mrf.mxu0
        %v1668 = vadd.f32 %v1555, %v1667
        %1669 = vmatprep.mubr.bf16.mxu0 %v969
        %1670 = vmatmul.mubr.bf16.gmra.mxu0 %v968
        %v1671 = vpop.f32.mrf.mxu0
        %v1672 = vadd.f32 %v1559, %v1671
        %v1673 = vpop.f32.mrf.mxu0
        %v1674 = vadd.f32 %v1561, %v1673
        %v1675 = vpop.f32.mrf.mxu0
        %v1676 = vadd.f32 %v1563, %v1675
        %v1677 = vpop.f32.mrf.mxu0
        %v1678 = vadd.f32 %v1565, %v1677
        %1679 = vdwg.mxu0
        %v1680 = vld [vmem:[%s390] sm:$0x3f]
        %v1682 = vlaneseq
        %v1683 = vshrl.u32 %v1682, 7
        %v1684 = vsub.s32 0, %v1683
        %v1685 = vrot.slane %v1680, %v1684
        %v1686 = vlaneseq
        %v1687 = vshrl.u32 %v1686, 7
        %v1688 = vsub.s32 1, %v1687
        %v1689 = vrot.slane %v1680, %v1688
        %v1690 = vlaneseq
        %v1691 = vshrl.u32 %v1690, 7
        %v1692 = vsub.s32 2, %v1691
        %v1693 = vrot.slane %v1680, %v1692
        %v1694 = vlaneseq
        %v1695 = vshrl.u32 %v1694, 7
        %v1696 = vsub.s32 3, %v1695
        %v1697 = vrot.slane %v1680, %v1696
        %v1698 = vlaneseq
        %v1699 = vshrl.u32 %v1698, 7
        %v1700 = vsub.s32 4, %v1699
        %v1701 = vrot.slane %v1680, %v1700
        %v1702 = vlaneseq
        %v1703 = vshrl.u32 %v1702, 7
        %v1704 = vsub.s32 5, %v1703
        %v1705 = vrot.slane %v1680, %v1704
        %v1712 = vmul.f32 %v1150, %v1685
        %v1713 = vmul.f32 %v1152, %v1689
        %v1714 = vmul.f32 %v1376, %v1693
        %v1715 = vmul.f32 %v1378, %v1697
        %v1716 = vmul.f32 %v1602, %v1701
        %v1717 = vmul.f32 %v1604, %v1705
        %v1718 = vmul.f32 %v1154, %v1685
        %v1719 = vmul.f32 %v1156, %v1689
        %v1720 = vmul.f32 %v1380, %v1693
        %v1721 = vmul.f32 %v1382, %v1697
        %v1722 = vmul.f32 %v1606, %v1701
        %v1723 = vmul.f32 %v1608, %v1705
        %v1724 = vmul.f32 %v1160, %v1685
        %v1725 = vmul.f32 %v1162, %v1689
        %v1726 = vmul.f32 %v1386, %v1693
        %v1727 = vmul.f32 %v1388, %v1697
        %v1728 = vmul.f32 %v1612, %v1701
        %v1729 = vmul.f32 %v1614, %v1705
        %v1730 = vmul.f32 %v1164, %v1685
        %v1731 = vmul.f32 %v1166, %v1689
        %v1732 = vmul.f32 %v1390, %v1693
        %v1733 = vmul.f32 %v1392, %v1697
        %v1734 = vmul.f32 %v1616, %v1701
        %v1735 = vmul.f32 %v1618, %v1705
        %v1736 = vmul.f32 %v1170, %v1685
        %v1737 = vmul.f32 %v1172, %v1689
        %v1738 = vmul.f32 %v1396, %v1693
        %v1739 = vmul.f32 %v1398, %v1697
        %v1740 = vmul.f32 %v1622, %v1701
        %v1741 = vmul.f32 %v1624, %v1705
        %v1742 = vmul.f32 %v1174, %v1685
        %v1743 = vmul.f32 %v1176, %v1689
        %v1744 = vmul.f32 %v1400, %v1693
        %v1745 = vmul.f32 %v1402, %v1697
        %v1746 = vmul.f32 %v1626, %v1701
        %v1747 = vmul.f32 %v1628, %v1705
        %v1748 = vmul.f32 %v1180, %v1685
        %v1749 = vmul.f32 %v1182, %v1689
        %v1750 = vmul.f32 %v1406, %v1693
        %v1751 = vmul.f32 %v1408, %v1697
        %v1752 = vmul.f32 %v1632, %v1701
        %v1753 = vmul.f32 %v1634, %v1705
        %v1754 = vmul.f32 %v1184, %v1685
        %v1755 = vmul.f32 %v1186, %v1689
        %v1756 = vmul.f32 %v1410, %v1693
        %v1757 = vmul.f32 %v1412, %v1697
        %v1758 = vmul.f32 %v1636, %v1701
        %v1759 = vmul.f32 %v1638, %v1705
        %v1760 = vmul.f32 %v1190, %v1685
        %v1761 = vmul.f32 %v1192, %v1689
        %v1762 = vmul.f32 %v1416, %v1693
        %v1763 = vmul.f32 %v1418, %v1697
        %v1764 = vmul.f32 %v1642, %v1701
        %v1765 = vmul.f32 %v1644, %v1705
        %v1766 = vmul.f32 %v1194, %v1685
        %v1767 = vmul.f32 %v1196, %v1689
        %v1768 = vmul.f32 %v1420, %v1693
        %v1769 = vmul.f32 %v1422, %v1697
        %v1770 = vmul.f32 %v1646, %v1701
        %v1771 = vmul.f32 %v1648, %v1705
        %v1772 = vmul.f32 %v1200, %v1685
        %v1773 = vmul.f32 %v1202, %v1689
        %v1774 = vmul.f32 %v1426, %v1693
        %v1775 = vmul.f32 %v1428, %v1697
        %v1776 = vmul.f32 %v1652, %v1701
        %v1777 = vmul.f32 %v1654, %v1705
        %v1778 = vmul.f32 %v1204, %v1685
        %v1779 = vmul.f32 %v1206, %v1689
        %v1780 = vmul.f32 %v1430, %v1693
        %v1781 = vmul.f32 %v1432, %v1697
        %v1782 = vmul.f32 %v1656, %v1701
        %v1783 = vmul.f32 %v1658, %v1705
        %v1784 = vmul.f32 %v1210, %v1685
        %v1785 = vmul.f32 %v1212, %v1689
        %v1786 = vmul.f32 %v1436, %v1693
        %v1787 = vmul.f32 %v1438, %v1697
        %v1788 = vmul.f32 %v1662, %v1701
        %v1789 = vmul.f32 %v1664, %v1705
        %v1790 = vmul.f32 %v1214, %v1685
        %v1791 = vmul.f32 %v1216, %v1689
        %v1792 = vmul.f32 %v1440, %v1693
        %v1793 = vmul.f32 %v1442, %v1697
        %v1794 = vmul.f32 %v1666, %v1701
        %v1795 = vmul.f32 %v1668, %v1705
        %v1796 = vmul.f32 %v1220, %v1685
        %v1797 = vmul.f32 %v1222, %v1689
        %v1798 = vmul.f32 %v1446, %v1693
        %v1799 = vmul.f32 %v1448, %v1697
        %v1800 = vmul.f32 %v1672, %v1701
        %v1801 = vmul.f32 %v1674, %v1705
        %v1802 = vmul.f32 %v1224, %v1685
        %v1803 = vmul.f32 %v1226, %v1689
        %v1804 = vmul.f32 %v1450, %v1693
        %v1805 = vmul.f32 %v1452, %v1697
        %v1806 = vmul.f32 %v1676, %v1701
        %v1807 = vmul.f32 %v1678, %v1705
        %v1808 = vlaneseq
        %v1809 = vshrl.u32 %v1808, 7
        %v1810 = vadd.s32 %v1809, 8
        %v1811 = vadd.s32 %v1809, 16
        %v1812 = vadd.s32 %v1809, 24
        %v1813 = vadd.s32 %v1809, 32
        %v1814 = vadd.s32 %v1809, 40
        %v1815 = vadd.s32 %v1809, 48
        %v1816 = vadd.s32 %v1809, 56
        %v1817 = vadd.s32 %v1809, 64
        %v1818 = vadd.s32 %v1809, 72
        %v1819 = vadd.s32 %v1809, 80
        %v1820 = vadd.s32 %v1809, 88
        %v1821 = vadd.s32 %v1809, 96
        %v1822 = vadd.s32 %v1809, 104
        %v1823 = vadd.s32 %v1809, 112
        %v1824 = vadd.s32 %v1809, 120
        %v1825 = vlaneseq
        %v1826 = vand.u32 %v1825, 127
        %vm1827 = vcmp.ge.s32.totalorder %v1809, %v1826
        %vm1828 = vcmp.ge.s32.totalorder %v1810, %v1826
        %vm1829 = vcmp.ge.s32.totalorder %v1811, %v1826
        %vm1830 = vcmp.ge.s32.totalorder %v1812, %v1826
        %vm1831 = vcmp.ge.s32.totalorder %v1813, %v1826
        %vm1832 = vcmp.ge.s32.totalorder %v1814, %v1826
        %vm1833 = vcmp.ge.s32.totalorder %v1815, %v1826
        %vm1834 = vcmp.ge.s32.totalorder %v1816, %v1826
        %vm1835 = vcmp.ge.s32.totalorder %v1817, %v1826
        %vm1836 = vcmp.ge.s32.totalorder %v1818, %v1826
        %vm1837 = vcmp.ge.s32.totalorder %v1819, %v1826
        %vm1838 = vcmp.ge.s32.totalorder %v1820, %v1826
        %vm1839 = vcmp.ge.s32.totalorder %v1821, %v1826
        %vm1840 = vcmp.ge.s32.totalorder %v1822, %v1826
        %vm1841 = vcmp.ge.s32.totalorder %v1823, %v1826
        %vm1842 = vcmp.ge.s32.totalorder %v1824, %v1826
        %v1843 = vsel %vm1827, 0.0, -1e+30
        %v1844 = vsel %vm1828, 0.0, -1e+30
        %v1845 = vsel %vm1829, 0.0, -1e+30
        %v1846 = vsel %vm1830, 0.0, -1e+30
        %v1847 = vsel %vm1831, 0.0, -1e+30
        %v1848 = vsel %vm1832, 0.0, -1e+30
        %v1849 = vsel %vm1833, 0.0, -1e+30
        %v1850 = vsel %vm1834, 0.0, -1e+30
        %v1851 = vsel %vm1835, 0.0, -1e+30
        %v1852 = vsel %vm1836, 0.0, -1e+30
        %v1853 = vsel %vm1837, 0.0, -1e+30
        %v1854 = vsel %vm1838, 0.0, -1e+30
        %v1855 = vsel %vm1839, 0.0, -1e+30
        %v1856 = vsel %vm1840, 0.0, -1e+30
        %v1857 = vsel %vm1841, 0.0, -1e+30
        %v1858 = vsel %vm1842, 0.0, -1e+30
        %v1859 = vld [vmem:[#allocation11] sm:$0xff]
        %v1860 = vld [vmem:[#allocation11 + $0x8] sm:$0xff]
        %v1861 = vld [vmem:[#allocation11 + $0x10] sm:$0xff]
        %v1862 = vld [vmem:[#allocation11 + $0x18] sm:$0xff]
        %v1863 = vld [vmem:[#allocation11 + $0x20] sm:$0xff]
        %v1864 = vld [vmem:[#allocation11 + $0x28] sm:$0xff]
        %v1865 = vld [vmem:[#allocation11 + $0x30] sm:$0xff]
        %v1866 = vld [vmem:[#allocation11 + $0x38] sm:$0xff]
        %v1867 = vld [vmem:[#allocation11 + $0x40] sm:$0xff]
        %v1868 = vld [vmem:[#allocation11 + $0x48] sm:$0xff]
        %v1869 = vld [vmem:[#allocation11 + $0x50] sm:$0xff]
        %v1870 = vld [vmem:[#allocation11 + $0x58] sm:$0xff]
        %v1871 = vld [vmem:[#allocation11 + $0x60] sm:$0xff]
        %v1872 = vld [vmem:[#allocation11 + $0x68] sm:$0xff]
        %v1873 = vld [vmem:[#allocation11 + $0x70] sm:$0xff]
        %v1874 = vld [vmem:[#allocation11 + $0x78] sm:$0xff]
        %v1875 = vld [vmem:[#allocation12] sm:$0xff]
        %v1876 = vld [vmem:[#allocation12 + $0x8] sm:$0xff]
        %v1877 = vld [vmem:[#allocation12 + $0x10] sm:$0xff]
        %v1878 = vld [vmem:[#allocation12 + $0x18] sm:$0xff]
        %v1879 = vld [vmem:[#allocation12 + $0x20] sm:$0xff]
        %v1880 = vld [vmem:[#allocation12 + $0x28] sm:$0xff]
        %v1881 = vld [vmem:[#allocation12 + $0x30] sm:$0xff]
        %v1882 = vld [vmem:[#allocation12 + $0x38] sm:$0xff]
        %v1883 = vld [vmem:[#allocation12 + $0x40] sm:$0xff]
        %v1884 = vld [vmem:[#allocation12 + $0x48] sm:$0xff]
        %v1885 = vld [vmem:[#allocation12 + $0x50] sm:$0xff]
        %v1886 = vld [vmem:[#allocation12 + $0x58] sm:$0xff]
        %v1887 = vld [vmem:[#allocation12 + $0x60] sm:$0xff]
        %v1888 = vld [vmem:[#allocation12 + $0x68] sm:$0xff]
        %v1889 = vld [vmem:[#allocation12 + $0x70] sm:$0xff]
        %v1890 = vld [vmem:[#allocation12 + $0x78] sm:$0xff]
        %v1891 = vmul.f32 %v1712, %v1859
        %v1892 = vmul.f32 %v1718, %v1860
        %v1893 = vmul.f32 %v1724, %v1861
        %v1894 = vmul.f32 %v1730, %v1862
        %v1895 = vmul.f32 %v1736, %v1863
        %v1896 = vmul.f32 %v1742, %v1864
        %v1897 = vmul.f32 %v1748, %v1865
        %v1898 = vmul.f32 %v1754, %v1866
        %v1899 = vmul.f32 %v1760, %v1867
        %v1900 = vmul.f32 %v1766, %v1868
        %v1901 = vmul.f32 %v1772, %v1869
        %v1902 = vmul.f32 %v1778, %v1870
        %v1903 = vmul.f32 %v1784, %v1871
        %v1904 = vmul.f32 %v1790, %v1872
        %v1905 = vmul.f32 %v1796, %v1873
        %v1906 = vmul.f32 %v1802, %v1874
        %1907 = vrot.lane.b32.xlu0 %v1712, 64
        %v1908 = vpop.permute.xlu0 %1907
        %1909 = vrot.lane.b32.xlu0 %v1718, 64
        %v1910 = vpop.permute.xlu0 %1909
        %1911 = vrot.lane.b32.xlu0 %v1724, 64
        %v1912 = vpop.permute.xlu0 %1911
        %1913 = vrot.lane.b32.xlu0 %v1730, 64
        %v1914 = vpop.permute.xlu0 %1913
        %1915 = vrot.lane.b32.xlu0 %v1736, 64
        %v1916 = vpop.permute.xlu0 %1915
        %1917 = vrot.lane.b32.xlu0 %v1742, 64
        %v1918 = vpop.permute.xlu0 %1917
        %1919 = vrot.lane.b32.xlu0 %v1748, 64
        %v1920 = vpop.permute.xlu0 %1919
        %1921 = vrot.lane.b32.xlu0 %v1754, 64
        %v1922 = vpop.permute.xlu0 %1921
        %1923 = vrot.lane.b32.xlu0 %v1760, 64
        %v1924 = vpop.permute.xlu0 %1923
        %1925 = vrot.lane.b32.xlu0 %v1766, 64
        %v1926 = vpop.permute.xlu0 %1925
        %1927 = vrot.lane.b32.xlu0 %v1772, 64
        %v1928 = vpop.permute.xlu0 %1927
        %1929 = vrot.lane.b32.xlu0 %v1778, 64
        %v1930 = vpop.permute.xlu0 %1929
        %1931 = vrot.lane.b32.xlu0 %v1784, 64
        %v1932 = vpop.permute.xlu0 %1931
        %1933 = vrot.lane.b32.xlu0 %v1790, 64
        %v1934 = vpop.permute.xlu0 %1933
        %1935 = vrot.lane.b32.xlu0 %v1796, 64
        %v1936 = vpop.permute.xlu0 %1935
        %1937 = vrot.lane.b32.xlu0 %v1802, 64
        %v1938 = vpop.permute.xlu0 %1937
        %v1939 = vmul.f32 %v1908, %v1875
        %v1940 = vmul.f32 %v1910, %v1876
        %v1941 = vmul.f32 %v1912, %v1877
        %v1942 = vmul.f32 %v1914, %v1878
        %v1943 = vmul.f32 %v1916, %v1879
        %v1944 = vmul.f32 %v1918, %v1880
        %v1945 = vmul.f32 %v1920, %v1881
        %v1946 = vmul.f32 %v1922, %v1882
        %v1947 = vmul.f32 %v1924, %v1883
        %v1948 = vmul.f32 %v1926, %v1884
        %v1949 = vmul.f32 %v1928, %v1885
        %v1950 = vmul.f32 %v1930, %v1886
        %v1951 = vmul.f32 %v1932, %v1887
        %v1952 = vmul.f32 %v1934, %v1888
        %v1953 = vmul.f32 %v1936, %v1889
        %v1954 = vmul.f32 %v1938, %v1890
        %v1955 = vadd.f32 %v1891, %v1939
        %v1956 = vadd.f32 %v1892, %v1940
        %v1957 = vadd.f32 %v1893, %v1941
        %v1958 = vadd.f32 %v1894, %v1942
        %v1959 = vadd.f32 %v1895, %v1943
        %v1960 = vadd.f32 %v1896, %v1944
        %v1961 = vadd.f32 %v1897, %v1945
        %v1962 = vadd.f32 %v1898, %v1946
        %v1963 = vadd.f32 %v1899, %v1947
        %v1964 = vadd.f32 %v1900, %v1948
        %v1965 = vadd.f32 %v1901, %v1949
        %v1966 = vadd.f32 %v1902, %v1950
        %v1967 = vadd.f32 %v1903, %v1951
        %v1968 = vadd.f32 %v1904, %v1952
        %v1969 = vadd.f32 %v1905, %v1953
        %v1970 = vadd.f32 %v1906, %v1954
        %v1971 = vmul.f32 %v1714, %v1859
        %v1972 = vmul.f32 %v1720, %v1860
        %v1973 = vmul.f32 %v1726, %v1861
        %v1974 = vmul.f32 %v1732, %v1862
        %v1975 = vmul.f32 %v1738, %v1863
        %v1976 = vmul.f32 %v1744, %v1864
        %v1977 = vmul.f32 %v1750, %v1865
        %v1978 = vmul.f32 %v1756, %v1866
        %v1979 = vmul.f32 %v1762, %v1867
        %v1980 = vmul.f32 %v1768, %v1868
        %v1981 = vmul.f32 %v1774, %v1869
        %v1982 = vmul.f32 %v1780, %v1870
        %v1983 = vmul.f32 %v1786, %v1871
        %v1984 = vmul.f32 %v1792, %v1872
        %v1985 = vmul.f32 %v1798, %v1873
        %v1986 = vmul.f32 %v1804, %v1874
        %1987 = vrot.lane.b32.xlu0 %v1714, 64
        %v1988 = vpop.permute.xlu0 %1987
        %1989 = vrot.lane.b32.xlu0 %v1720, 64
        %v1990 = vpop.permute.xlu0 %1989
        %1991 = vrot.lane.b32.xlu0 %v1726, 64
        %v1992 = vpop.permute.xlu0 %1991
        %1993 = vrot.lane.b32.xlu0 %v1732, 64
        %v1994 = vpop.permute.xlu0 %1993
        %1995 = vrot.lane.b32.xlu0 %v1738, 64
        %v1996 = vpop.permute.xlu0 %1995
        %1997 = vrot.lane.b32.xlu0 %v1744, 64
        %v1998 = vpop.permute.xlu0 %1997
        %1999 = vrot.lane.b32.xlu0 %v1750, 64
        %v2000 = vpop.permute.xlu0 %1999
        %2001 = vrot.lane.b32.xlu0 %v1756, 64
        %v2002 = vpop.permute.xlu0 %2001
        %2003 = vrot.lane.b32.xlu0 %v1762, 64
        %v2004 = vpop.permute.xlu0 %2003
        %2005 = vrot.lane.b32.xlu0 %v1768, 64
        %v2006 = vpop.permute.xlu0 %2005
        %2007 = vrot.lane.b32.xlu0 %v1774, 64
        %v2008 = vpop.permute.xlu0 %2007
        %2009 = vrot.lane.b32.xlu0 %v1780, 64
        %v2010 = vpop.permute.xlu0 %2009
        %2011 = vrot.lane.b32.xlu0 %v1786, 64
        %v2012 = vpop.permute.xlu0 %2011
        %2013 = vrot.lane.b32.xlu0 %v1792, 64
        %v2014 = vpop.permute.xlu0 %2013
        %2015 = vrot.lane.b32.xlu0 %v1798, 64
        %v2016 = vpop.permute.xlu0 %2015
        %2017 = vrot.lane.b32.xlu0 %v1804, 64
        %v2018 = vpop.permute.xlu0 %2017
        %v2019 = vmul.f32 %v1988, %v1875
        %v2020 = vmul.f32 %v1990, %v1876
        %v2021 = vmul.f32 %v1992, %v1877
        %v2022 = vmul.f32 %v1994, %v1878
        %v2023 = vmul.f32 %v1996, %v1879
        %v2024 = vmul.f32 %v1998, %v1880
        %v2025 = vmul.f32 %v2000, %v1881
        %v2026 = vmul.f32 %v2002, %v1882
        %v2027 = vmul.f32 %v2004, %v1883
        %v2028 = vmul.f32 %v2006, %v1884
        %v2029 = vmul.f32 %v2008, %v1885
        %v2030 = vmul.f32 %v2010, %v1886
        %v2031 = vmul.f32 %v2012, %v1887
        %v2032 = vmul.f32 %v2014, %v1888
        %v2033 = vmul.f32 %v2016, %v1889
        %v2034 = vmul.f32 %v2018, %v1890
        %v2035 = vadd.f32 %v1971, %v2019
        %v2036 = vadd.f32 %v1972, %v2020
        %v2037 = vadd.f32 %v1973, %v2021
        %v2038 = vadd.f32 %v1974, %v2022
        %v2039 = vadd.f32 %v1975, %v2023
        %v2040 = vadd.f32 %v1976, %v2024
        %v2041 = vadd.f32 %v1977, %v2025
        %v2042 = vadd.f32 %v1978, %v2026
        %v2043 = vadd.f32 %v1979, %v2027
        %v2044 = vadd.f32 %v1980, %v2028
        %v2045 = vadd.f32 %v1981, %v2029
        %v2046 = vadd.f32 %v1982, %v2030
        %v2047 = vadd.f32 %v1983, %v2031
        %v2048 = vadd.f32 %v1984, %v2032
        %v2049 = vadd.f32 %v1985, %v2033
        %v2050 = vadd.f32 %v1986, %v2034
        %v2051 = vpack.c.bf16 %v1956, %v1955
        %v2052 = vpack.c.bf16 %v1958, %v1957
        %v2053 = vpack.c.bf16 %v1960, %v1959
        %v2054 = vpack.c.bf16 %v1962, %v1961
        %v2055 = vpack.c.bf16 %v1964, %v1963
        %v2056 = vpack.c.bf16 %v1966, %v1965
        %v2057 = vpack.c.bf16 %v1968, %v1967
        %v2058 = vpack.c.bf16 %v1970, %v1969
        %v2059 = vpack.c.bf16 %v2036, %v2035
        %v2060 = vpack.c.bf16 %v2038, %v2037
        %v2061 = vpack.c.bf16 %v2040, %v2039
        %v2062 = vpack.c.bf16 %v2042, %v2041
        %v2063 = vpack.c.bf16 %v2044, %v2043
        %v2064 = vpack.c.bf16 %v2046, %v2045
        %v2065 = vpack.c.bf16 %v2048, %v2047
        %v2066 = vpack.c.bf16 %v2050, %v2049
        %2067 = vmatprep.subr.bf16.mxu0 0
        %2068 = vmatpush1.bf16.xpose.msra.mxu0 %v2066
        %2069 = vmatprep.subr.bf16.mxu0 0
        %2070 = vmatpush1.bf16.xpose.msra.mxu0 %v2065
        %2071 = vmatprep.subr.bf16.mxu0 0
        %2072 = vmatpush1.bf16.xpose.msra.mxu0 %v2064
        %2073 = vmatprep.subr.bf16.mxu0 0
        %2074 = vmatpush1.bf16.xpose.msra.mxu0 %v2063
        %2075 = vmatprep.subr.bf16.mxu0 0
        %2076 = vmatpush1.bf16.xpose.msra.mxu0 %v2062
        %2077 = vmatprep.subr.bf16.mxu0 0
        %2078 = vmatpush1.bf16.xpose.msra.mxu0 %v2061
        %2079 = vmatprep.subr.bf16.mxu0 0
        %2080 = vmatpush1.bf16.xpose.msra.mxu0 %v2060
        %2081 = vmatprep.subr.bf16.mxu0 0
        %2082 = vmatpush1.bf16.xpose.msra.mxu0 %v2059
        %2083 = vmatprep.subr.bf16.mxu0 0
        %2084 = vmatpush2.bf16.xpose.msra.mxu0 0
        %2085 = vmatprep.subr.bf16.mxu0 0
        %2086 = vmatpush2.bf16.xpose.msra.mxu0 0
        %2087 = vmatprep.subr.bf16.mxu0 0
        %2088 = vmatpush2.bf16.xpose.msra.mxu0 0
        %2089 = vmatprep.subr.bf16.mxu0 0
        %2090 = vmatpush2.bf16.xpose.msra.mxu0 0
        %2091 = vmatprep.subr.bf16.mxu0 0
        %2092 = vmatpush2.bf16.xpose.msra.mxu0 0
        %2093 = vmatprep.subr.bf16.mxu0 0
        %2094 = vmatpush2.bf16.xpose.msra.mxu0 0
        %2095 = vmatprep.subr.bf16.mxu0 0
        %2096 = vmatpush2.bf16.xpose.msra.mxu0 0
        %2097 = vmatprep.subr.bf16.mxu0 0
        %2098 = vmatpush2.bf16.xpose.msra.mxu0 0
        %2099 = vmatprep.mubr.bf16.mxu0 0
        %2100 = vmatmul.mubr.bf16.gmra.mxu0 %v2051
        %v2101 = vpop.f32.mrf.mxu0
        %v2102 = vadd.f32 %v1843, %v2101
        %v2103 = vpop.f32.mrf.mxu0
        %v2104 = vpop.f32.mrf.mxu0
        %v2105 = vadd.f32 %v1844, %v2104
        %v2106 = vpop.f32.mrf.mxu0
        %2107 = vmatprep.mubr.bf16.mxu0 0
        %2108 = vmatmul.mubr.bf16.gmra.mxu0 %v2052
        %v2109 = vpop.f32.mrf.mxu0
        %v2110 = vadd.f32 %v1845, %v2109
        %v2111 = vpop.f32.mrf.mxu0
        %v2112 = vpop.f32.mrf.mxu0
        %v2113 = vadd.f32 %v1846, %v2112
        %v2114 = vpop.f32.mrf.mxu0
        %2115 = vmatprep.mubr.bf16.mxu0 0
        %2116 = vmatmul.mubr.bf16.gmra.mxu0 %v2053
        %v2117 = vpop.f32.mrf.mxu0
        %v2118 = vadd.f32 %v1847, %v2117
        %v2119 = vpop.f32.mrf.mxu0
        %v2120 = vpop.f32.mrf.mxu0
        %v2121 = vadd.f32 %v1848, %v2120
        %v2122 = vpop.f32.mrf.mxu0
        %2123 = vmatprep.mubr.bf16.mxu0 0
        %2124 = vmatmul.mubr.bf16.gmra.mxu0 %v2054
        %v2125 = vpop.f32.mrf.mxu0
        %v2126 = vadd.f32 %v1849, %v2125
        %v2127 = vpop.f32.mrf.mxu0
        %v2128 = vpop.f32.mrf.mxu0
        %v2129 = vadd.f32 %v1850, %v2128
        %v2130 = vpop.f32.mrf.mxu0
        %2131 = vmatprep.mubr.bf16.mxu0 0
        %2132 = vmatmul.mubr.bf16.gmra.mxu0 %v2055
        %v2133 = vpop.f32.mrf.mxu0
        %v2134 = vadd.f32 %v1851, %v2133
        %v2135 = vpop.f32.mrf.mxu0
        %v2136 = vpop.f32.mrf.mxu0
        %v2137 = vadd.f32 %v1852, %v2136
        %v2138 = vpop.f32.mrf.mxu0
        %2139 = vmatprep.mubr.bf16.mxu0 0
        %2140 = vmatmul.mubr.bf16.gmra.mxu0 %v2056
        %v2141 = vpop.f32.mrf.mxu0
        %v2142 = vadd.f32 %v1853, %v2141
        %v2143 = vpop.f32.mrf.mxu0
        %v2144 = vpop.f32.mrf.mxu0
        %v2145 = vadd.f32 %v1854, %v2144
        %v2146 = vpop.f32.mrf.mxu0
        %2147 = vmatprep.mubr.bf16.mxu0 0
        %2148 = vmatmul.mubr.bf16.gmra.mxu0 %v2057
        %v2149 = vpop.f32.mrf.mxu0
        %v2150 = vadd.f32 %v1855, %v2149
        %v2151 = vpop.f32.mrf.mxu0
        %v2152 = vpop.f32.mrf.mxu0
        %v2153 = vadd.f32 %v1856, %v2152
        %v2154 = vpop.f32.mrf.mxu0
        %2155 = vmatprep.mubr.bf16.mxu0 0
        %2156 = vmatmul.mubr.bf16.gmra.mxu0 %v2058
        %v2157 = vpop.f32.mrf.mxu0
        %v2158 = vadd.f32 %v1857, %v2157
        %v2159 = vpop.f32.mrf.mxu0
        %v2160 = vpop.f32.mrf.mxu0
        %v2161 = vadd.f32 %v1858, %v2160
        %v2162 = vpop.f32.mrf.mxu0
        %2163 = vdwg.mxu0
        %2164 = vmax.xlane.f32.xlu0 %v2102
        %v2165 = vpop.xlane.xlu0 %2164
        %2166 = vmax.xlane.f32.xlu0 %v2105
        %v2167 = vpop.xlane.xlu0 %2166
        %2168 = vmax.xlane.f32.xlu0 %v2110
        %v2169 = vpop.xlane.xlu0 %2168
        %2170 = vmax.xlane.f32.xlu0 %v2113
        %v2171 = vpop.xlane.xlu0 %2170
        %2172 = vmax.xlane.f32.xlu0 %v2118
        %v2173 = vpop.xlane.xlu0 %2172
        %2174 = vmax.xlane.f32.xlu0 %v2121
        %v2175 = vpop.xlane.xlu0 %2174
        %2176 = vmax.xlane.f32.xlu0 %v2126
        %v2177 = vpop.xlane.xlu0 %2176
        %2178 = vmax.xlane.f32.xlu0 %v2129
        %v2179 = vpop.xlane.xlu0 %2178
        %2180 = vmax.xlane.f32.xlu0 %v2134
        %v2181 = vpop.xlane.xlu0 %2180
        %2182 = vmax.xlane.f32.xlu0 %v2137
        %v2183 = vpop.xlane.xlu0 %2182
        %2184 = vmax.xlane.f32.xlu0 %v2142
        %v2185 = vpop.xlane.xlu0 %2184
        %2186 = vmax.xlane.f32.xlu0 %v2145
        %v2187 = vpop.xlane.xlu0 %2186
        %2188 = vmax.xlane.f32.xlu0 %v2150
        %v2189 = vpop.xlane.xlu0 %2188
        %2190 = vmax.xlane.f32.xlu0 %v2153
        %v2191 = vpop.xlane.xlu0 %2190
        %2192 = vmax.xlane.f32.xlu0 %v2158
        %v2193 = vpop.xlane.xlu0 %2192
        %2194 = vmax.xlane.f32.xlu0 %v2161
        %v2195 = vpop.xlane.xlu0 %2194
        %v2196 = vsub.f32 %v2102, %v2165
        %v2197 = vsub.f32 %v2105, %v2167
        %v2198 = vsub.f32 %v2110, %v2169
        %v2199 = vsub.f32 %v2113, %v2171
        %v2200 = vsub.f32 %v2118, %v2173
        %v2201 = vsub.f32 %v2121, %v2175
        %v2202 = vsub.f32 %v2126, %v2177
        %v2203 = vsub.f32 %v2129, %v2179
        %v2204 = vsub.f32 %v2134, %v2181
        %v2205 = vsub.f32 %v2137, %v2183
        %v2206 = vsub.f32 %v2142, %v2185
        %v2207 = vsub.f32 %v2145, %v2187
        %v2208 = vsub.f32 %v2150, %v2189
        %v2209 = vsub.f32 %v2153, %v2191
        %v2210 = vsub.f32 %v2158, %v2193
        %v2211 = vsub.f32 %v2161, %v2195
        %v2212 = vmul.f32 %v2196, 1.442695
        %v2213 = vpow.pop %v2212
        %v2214 = vmul.f32 %v2197, 1.442695
        %v2215 = vpow.pop %v2214
        %v2216 = vmul.f32 %v2198, 1.442695
        %v2217 = vpow.pop %v2216
        %v2218 = vmul.f32 %v2199, 1.442695
        %v2219 = vpow.pop %v2218
        %v2220 = vmul.f32 %v2200, 1.442695
        %v2221 = vpow.pop %v2220
        %v2222 = vmul.f32 %v2201, 1.442695
        %v2223 = vpow.pop %v2222
        %v2224 = vmul.f32 %v2202, 1.442695
        %v2225 = vpow.pop %v2224
        %v2226 = vmul.f32 %v2203, 1.442695
        %v2227 = vpow.pop %v2226
        %v2228 = vmul.f32 %v2204, 1.442695
        %v2229 = vpow.pop %v2228
        %v2230 = vmul.f32 %v2205, 1.442695
        %v2231 = vpow.pop %v2230
        %v2232 = vmul.f32 %v2206, 1.442695
        %v2233 = vpow.pop %v2232
        %v2234 = vmul.f32 %v2207, 1.442695
        %v2235 = vpow.pop %v2234
        %v2236 = vmul.f32 %v2208, 1.442695
        %v2237 = vpow.pop %v2236
        %v2238 = vmul.f32 %v2209, 1.442695
        %v2239 = vpow.pop %v2238
        %v2240 = vmul.f32 %v2210, 1.442695
        %v2241 = vpow.pop %v2240
        %v2242 = vmul.f32 %v2211, 1.442695
        %v2243 = vpow.pop %v2242
        %2244 = vadd.xlane.f32.xlu0 %v2213
        %v2245 = vpop.xlane.xlu0 %2244
        %2246 = vadd.xlane.f32.xlu0 %v2215
        %v2247 = vpop.xlane.xlu0 %2246
        %2248 = vadd.xlane.f32.xlu0 %v2217
        %v2249 = vpop.xlane.xlu0 %2248
        %2250 = vadd.xlane.f32.xlu0 %v2219
        %v2251 = vpop.xlane.xlu0 %2250
        %2252 = vadd.xlane.f32.xlu0 %v2221
        %v2253 = vpop.xlane.xlu0 %2252
        %2254 = vadd.xlane.f32.xlu0 %v2223
        %v2255 = vpop.xlane.xlu0 %2254
        %2256 = vadd.xlane.f32.xlu0 %v2225
        %v2257 = vpop.xlane.xlu0 %2256
        %2258 = vadd.xlane.f32.xlu0 %v2227
        %v2259 = vpop.xlane.xlu0 %2258
        %2260 = vadd.xlane.f32.xlu0 %v2229
        %v2261 = vpop.xlane.xlu0 %2260
        %2262 = vadd.xlane.f32.xlu0 %v2231
        %v2263 = vpop.xlane.xlu0 %2262
        %2264 = vadd.xlane.f32.xlu0 %v2233
        %v2265 = vpop.xlane.xlu0 %2264
        %2266 = vadd.xlane.f32.xlu0 %v2235
        %v2267 = vpop.xlane.xlu0 %2266
        %2268 = vadd.xlane.f32.xlu0 %v2237
        %v2269 = vpop.xlane.xlu0 %2268
        %2270 = vadd.xlane.f32.xlu0 %v2239
        %v2271 = vpop.xlane.xlu0 %2270
        %2272 = vadd.xlane.f32.xlu0 %v2241
        %v2273 = vpop.xlane.xlu0 %2272
        %2274 = vadd.xlane.f32.xlu0 %v2243
        %v2275 = vpop.xlane.xlu0 %2274
        %v2276 = vpack.c.bf16 %v2215, %v2213
        %v2277 = vpack.c.bf16 %v2219, %v2217
        %v2278 = vpack.c.bf16 %v2223, %v2221
        %v2279 = vpack.c.bf16 %v2227, %v2225
        %v2280 = vpack.c.bf16 %v2231, %v2229
        %v2281 = vpack.c.bf16 %v2235, %v2233
        %v2282 = vpack.c.bf16 %v2239, %v2237
        %v2283 = vpack.c.bf16 %v2243, %v2241
        %v2284 = vpack.c.bf16 %v1722, %v1716
        %v2285 = vpack.c.bf16 %v1734, %v1728
        %v2286 = vpack.c.bf16 %v1746, %v1740
        %v2287 = vpack.c.bf16 %v1758, %v1752
        %v2288 = vpack.c.bf16 %v1770, %v1764
        %v2289 = vpack.c.bf16 %v1782, %v1776
        %v2290 = vpack.c.bf16 %v1794, %v1788
        %v2291 = vpack.c.bf16 %v1806, %v1800
        %2292 = vmatprep.subr.bf16.mxu0 0
        %2293 = vmatpush1.bf16.msra.mxu0 %v2291
        %2294 = vmatprep.subr.bf16.mxu0 0
        %2295 = vmatpush1.bf16.msra.mxu0 %v2290
        %2296 = vmatprep.subr.bf16.mxu0 0
        %2297 = vmatpush1.bf16.msra.mxu0 %v2289
        %2298 = vmatprep.subr.bf16.mxu0 0
        %2299 = vmatpush1.bf16.msra.mxu0 %v2288
        %2300 = vmatprep.subr.bf16.mxu0 0
        %2301 = vmatpush1.bf16.msra.mxu0 %v2287
        %2302 = vmatprep.subr.bf16.mxu0 0
        %2303 = vmatpush1.bf16.msra.mxu0 %v2286
        %2304 = vmatprep.subr.bf16.mxu0 0
        %2305 = vmatpush1.bf16.msra.mxu0 %v2285
        %2306 = vmatprep.subr.bf16.mxu0 0
        %2307 = vmatpush1.bf16.msra.mxu0 %v2284
        %2308 = vmatprep.subr.bf16.mxu0 0
        %2309 = vmatpush2.bf16.msra.mxu0 0
        %2310 = vmatprep.subr.bf16.mxu0 0
        %2311 = vmatpush2.bf16.msra.mxu0 0
        %2312 = vmatprep.subr.bf16.mxu0 0
        %2313 = vmatpush2.bf16.msra.mxu0 0
        %2314 = vmatprep.subr.bf16.mxu0 0
        %2315 = vmatpush2.bf16.msra.mxu0 0
        %2316 = vmatprep.subr.bf16.mxu0 0
        %2317 = vmatpush2.bf16.msra.mxu0 0
        %2318 = vmatprep.subr.bf16.mxu0 0
        %2319 = vmatpush2.bf16.msra.mxu0 0
        %2320 = vmatprep.subr.bf16.mxu0 0
        %2321 = vmatpush2.bf16.msra.mxu0 0
        %2322 = vmatprep.subr.bf16.mxu0 0
        %2323 = vmatpush2.bf16.msra.mxu0 0
        %2324 = vmatprep.mubr.bf16.mxu0 0
        %2325 = vmatmul.mubr.bf16.gmra.mxu0 %v2276
        %v2326 = vpop.f32.mrf.mxu0
        %v2327 = vadd.f32 0.0, %v2326
        %v2328 = vpop.f32.mrf.mxu0
        %v2329 = vpop.f32.mrf.mxu0
        %v2330 = vadd.f32 0.0, %v2329
        %v2331 = vpop.f32.mrf.mxu0
        %2332 = vmatprep.mubr.bf16.mxu0 0
        %2333 = vmatmul.mubr.bf16.gmra.mxu0 %v2277
        %v2334 = vpop.f32.mrf.mxu0
        %v2335 = vadd.f32 0.0, %v2334
        %v2336 = vpop.f32.mrf.mxu0
        %v2337 = vpop.f32.mrf.mxu0
        %v2338 = vadd.f32 0.0, %v2337
        %v2339 = vpop.f32.mrf.mxu0
        %2340 = vmatprep.mubr.bf16.mxu0 0
        %2341 = vmatmul.mubr.bf16.gmra.mxu0 %v2278
        %v2342 = vpop.f32.mrf.mxu0
        %v2343 = vadd.f32 0.0, %v2342
        %v2344 = vpop.f32.mrf.mxu0
        %v2345 = vpop.f32.mrf.mxu0
        %v2346 = vadd.f32 0.0, %v2345
        %v2347 = vpop.f32.mrf.mxu0
        %2348 = vmatprep.mubr.bf16.mxu0 0
        %2349 = vmatmul.mubr.bf16.gmra.mxu0 %v2279
        %v2350 = vpop.f32.mrf.mxu0
        %v2351 = vadd.f32 0.0, %v2350
        %v2352 = vpop.f32.mrf.mxu0
        %v2353 = vpop.f32.mrf.mxu0
        %v2354 = vadd.f32 0.0, %v2353
        %v2355 = vpop.f32.mrf.mxu0
        %2356 = vmatprep.mubr.bf16.mxu0 0
        %2357 = vmatmul.mubr.bf16.gmra.mxu0 %v2280
        %v2358 = vpop.f32.mrf.mxu0
        %v2359 = vadd.f32 0.0, %v2358
        %v2360 = vpop.f32.mrf.mxu0
        %v2361 = vpop.f32.mrf.mxu0
        %v2362 = vadd.f32 0.0, %v2361
        %v2363 = vpop.f32.mrf.mxu0
        %2364 = vmatprep.mubr.bf16.mxu0 0
        %2365 = vmatmul.mubr.bf16.gmra.mxu0 %v2281
        %v2366 = vpop.f32.mrf.mxu0
        %v2367 = vadd.f32 0.0, %v2366
        %v2368 = vpop.f32.mrf.mxu0
        %v2369 = vpop.f32.mrf.mxu0
        %v2370 = vadd.f32 0.0, %v2369
        %v2371 = vpop.f32.mrf.mxu0
        %2372 = vmatprep.mubr.bf16.mxu0 0
        %2373 = vmatmul.mubr.bf16.gmra.mxu0 %v2282
        %v2374 = vpop.f32.mrf.mxu0
        %v2375 = vadd.f32 0.0, %v2374
        %v2376 = vpop.f32.mrf.mxu0
        %v2377 = vpop.f32.mrf.mxu0
        %v2378 = vadd.f32 0.0, %v2377
        %v2379 = vpop.f32.mrf.mxu0
        %2380 = vmatprep.mubr.bf16.mxu0 0
        %2381 = vmatmul.mubr.bf16.gmra.mxu0 %v2283
        %v2382 = vpop.f32.mrf.mxu0
        %v2383 = vadd.f32 0.0, %v2382
        %v2384 = vpop.f32.mrf.mxu0
        %v2385 = vpop.f32.mrf.mxu0
        %v2386 = vadd.f32 0.0, %v2385
        %v2387 = vpop.f32.mrf.mxu0
        %2388 = vdwg.mxu0
        %v2389 = vrcp.pop %v2245
        %v2390 = vrcp.pop %v2247
        %v2391 = vrcp.pop %v2249
        %v2392 = vrcp.pop %v2251
        %v2393 = vrcp.pop %v2253
        %v2394 = vrcp.pop %v2255
        %v2395 = vrcp.pop %v2257
        %v2396 = vrcp.pop %v2259
        %v2397 = vrcp.pop %v2261
        %v2398 = vrcp.pop %v2263
        %v2399 = vrcp.pop %v2265
        %v2400 = vrcp.pop %v2267
        %v2401 = vrcp.pop %v2269
        %v2402 = vrcp.pop %v2271
        %v2403 = vrcp.pop %v2273
        %v2404 = vrcp.pop %v2275
        %v2405 = vmul.f32 %v2327, %v2389
        %v2406 = vmul.f32 %v2330, %v2390
        %v2407 = vmul.f32 %v2335, %v2391
        %v2408 = vmul.f32 %v2338, %v2392
        %v2409 = vmul.f32 %v2343, %v2393
        %v2410 = vmul.f32 %v2346, %v2394
        %v2411 = vmul.f32 %v2351, %v2395
        %v2412 = vmul.f32 %v2354, %v2396
        %v2413 = vmul.f32 %v2359, %v2397
        %v2414 = vmul.f32 %v2362, %v2398
        %v2415 = vmul.f32 %v2367, %v2399
        %v2416 = vmul.f32 %v2370, %v2400
        %v2417 = vmul.f32 %v2375, %v2401
        %v2418 = vmul.f32 %v2378, %v2402
        %v2419 = vmul.f32 %v2383, %v2403
        %v2420 = vmul.f32 %v2386, %v2404
        %v2421 = vpack.c.bf16 %v2406, %v2405
        %v2422 = vpack.c.bf16 %v2408, %v2407
        %v2423 = vpack.c.bf16 %v2410, %v2409
        %v2424 = vpack.c.bf16 %v2412, %v2411
        %v2425 = vpack.c.bf16 %v2414, %v2413
        %v2426 = vpack.c.bf16 %v2416, %v2415
        %v2427 = vpack.c.bf16 %v2418, %v2417
        %v2428 = vpack.c.bf16 %v2420, %v2419
        %v2429 = vmul.f32 %v1713, %v1859
        %v2430 = vmul.f32 %v1719, %v1860
        %v2431 = vmul.f32 %v1725, %v1861
        %v2432 = vmul.f32 %v1731, %v1862
        %v2433 = vmul.f32 %v1737, %v1863
        %v2434 = vmul.f32 %v1743, %v1864
        %v2435 = vmul.f32 %v1749, %v1865
        %v2436 = vmul.f32 %v1755, %v1866
        %v2437 = vmul.f32 %v1761, %v1867
        %v2438 = vmul.f32 %v1767, %v1868
        %v2439 = vmul.f32 %v1773, %v1869
        %v2440 = vmul.f32 %v1779, %v1870
        %v2441 = vmul.f32 %v1785, %v1871
        %v2442 = vmul.f32 %v1791, %v1872
        %v2443 = vmul.f32 %v1797, %v1873
        %v2444 = vmul.f32 %v1803, %v1874
        %2445 = vrot.lane.b32.xlu0 %v1713, 64
        %v2446 = vpop.permute.xlu0 %2445
        %2447 = vrot.lane.b32.xlu0 %v1719, 64
        %v2448 = vpop.permute.xlu0 %2447
        %2449 = vrot.lane.b32.xlu0 %v1725, 64
        %v2450 = vpop.permute.xlu0 %2449
        %2451 = vrot.lane.b32.xlu0 %v1731, 64
        %v2452 = vpop.permute.xlu0 %2451
        %2453 = vrot.lane.b32.xlu0 %v1737, 64
        %v2454 = vpop.permute.xlu0 %2453
        %2455 = vrot.lane.b32.xlu0 %v1743, 64
        %v2456 = vpop.permute.xlu0 %2455
        %2457 = vrot.lane.b32.xlu0 %v1749, 64
        %v2458 = vpop.permute.xlu0 %2457
        %2459 = vrot.lane.b32.xlu0 %v1755, 64
        %v2460 = vpop.permute.xlu0 %2459
        %2461 = vrot.lane.b32.xlu0 %v1761, 64
        %v2462 = vpop.permute.xlu0 %2461
        %2463 = vrot.lane.b32.xlu0 %v1767, 64
        %v2464 = vpop.permute.xlu0 %2463
        %2465 = vrot.lane.b32.xlu0 %v1773, 64
        %v2466 = vpop.permute.xlu0 %2465
        %2467 = vrot.lane.b32.xlu0 %v1779, 64
        %v2468 = vpop.permute.xlu0 %2467
        %2469 = vrot.lane.b32.xlu0 %v1785, 64
        %v2470 = vpop.permute.xlu0 %2469
        %2471 = vrot.lane.b32.xlu0 %v1791, 64
        %v2472 = vpop.permute.xlu0 %2471
        %2473 = vrot.lane.b32.xlu0 %v1797, 64
        %v2474 = vpop.permute.xlu0 %2473
        %2475 = vrot.lane.b32.xlu0 %v1803, 64
        %v2476 = vpop.permute.xlu0 %2475
        %v2477 = vmul.f32 %v2446, %v1875
        %v2478 = vmul.f32 %v2448, %v1876
        %v2479 = vmul.f32 %v2450, %v1877
        %v2480 = vmul.f32 %v2452, %v1878
        %v2481 = vmul.f32 %v2454, %v1879
        %v2482 = vmul.f32 %v2456, %v1880
        %v2483 = vmul.f32 %v2458, %v1881
        %v2484 = vmul.f32 %v2460, %v1882
        %v2485 = vmul.f32 %v2462, %v1883
        %v2486 = vmul.f32 %v2464, %v1884
        %v2487 = vmul.f32 %v2466, %v1885
        %v2488 = vmul.f32 %v2468, %v1886
        %v2489 = vmul.f32 %v2470, %v1887
        %v2490 = vmul.f32 %v2472, %v1888
        %v2491 = vmul.f32 %v2474, %v1889
        %v2492 = vmul.f32 %v2476, %v1890
        %v2493 = vadd.f32 %v2429, %v2477
        %v2494 = vadd.f32 %v2430, %v2478
        %v2495 = vadd.f32 %v2431, %v2479
        %v2496 = vadd.f32 %v2432, %v2480
        %v2497 = vadd.f32 %v2433, %v2481
        %v2498 = vadd.f32 %v2434, %v2482
        %v2499 = vadd.f32 %v2435, %v2483
        %v2500 = vadd.f32 %v2436, %v2484
        %v2501 = vadd.f32 %v2437, %v2485
        %v2502 = vadd.f32 %v2438, %v2486
        %v2503 = vadd.f32 %v2439, %v2487
        %v2504 = vadd.f32 %v2440, %v2488
        %v2505 = vadd.f32 %v2441, %v2489
        %v2506 = vadd.f32 %v2442, %v2490
        %v2507 = vadd.f32 %v2443, %v2491
        %v2508 = vadd.f32 %v2444, %v2492
        %v2509 = vmul.f32 %v1715, %v1859
        %v2510 = vmul.f32 %v1721, %v1860
        %v2511 = vmul.f32 %v1727, %v1861
        %v2512 = vmul.f32 %v1733, %v1862
        %v2513 = vmul.f32 %v1739, %v1863
        %v2514 = vmul.f32 %v1745, %v1864
        %v2515 = vmul.f32 %v1751, %v1865
        %v2516 = vmul.f32 %v1757, %v1866
        %v2517 = vmul.f32 %v1763, %v1867
        %v2518 = vmul.f32 %v1769, %v1868
        %v2519 = vmul.f32 %v1775, %v1869
        %v2520 = vmul.f32 %v1781, %v1870
        %v2521 = vmul.f32 %v1787, %v1871
        %v2522 = vmul.f32 %v1793, %v1872
        %v2523 = vmul.f32 %v1799, %v1873
        %v2524 = vmul.f32 %v1805, %v1874
        %2525 = vrot.lane.b32.xlu0 %v1715, 64
        %v2526 = vpop.permute.xlu0 %2525
        %2527 = vrot.lane.b32.xlu0 %v1721, 64
        %v2528 = vpop.permute.xlu0 %2527
        %2529 = vrot.lane.b32.xlu0 %v1727, 64
        %v2530 = vpop.permute.xlu0 %2529
        %2531 = vrot.lane.b32.xlu0 %v1733, 64
        %v2532 = vpop.permute.xlu0 %2531
        %2533 = vrot.lane.b32.xlu0 %v1739, 64
        %v2534 = vpop.permute.xlu0 %2533
        %2535 = vrot.lane.b32.xlu0 %v1745, 64
        %v2536 = vpop.permute.xlu0 %2535
        %2537 = vrot.lane.b32.xlu0 %v1751, 64
        %v2538 = vpop.permute.xlu0 %2537
        %2539 = vrot.lane.b32.xlu0 %v1757, 64
        %v2540 = vpop.permute.xlu0 %2539
        %2541 = vrot.lane.b32.xlu0 %v1763, 64
        %v2542 = vpop.permute.xlu0 %2541
        %2543 = vrot.lane.b32.xlu0 %v1769, 64
        %v2544 = vpop.permute.xlu0 %2543
        %2545 = vrot.lane.b32.xlu0 %v1775, 64
        %v2546 = vpop.permute.xlu0 %2545
        %2547 = vrot.lane.b32.xlu0 %v1781, 64
        %v2548 = vpop.permute.xlu0 %2547
        %2549 = vrot.lane.b32.xlu0 %v1787, 64
        %v2550 = vpop.permute.xlu0 %2549
        %2551 = vrot.lane.b32.xlu0 %v1793, 64
        %v2552 = vpop.permute.xlu0 %2551
        %2553 = vrot.lane.b32.xlu0 %v1799, 64
        %v2554 = vpop.permute.xlu0 %2553
        %2555 = vrot.lane.b32.xlu0 %v1805, 64
        %v2556 = vpop.permute.xlu0 %2555
        %v2557 = vmul.f32 %v2526, %v1875
        %v2558 = vmul.f32 %v2528, %v1876
        %v2559 = vmul.f32 %v2530, %v1877
        %v2560 = vmul.f32 %v2532, %v1878
        %v2561 = vmul.f32 %v2534, %v1879
        %v2562 = vmul.f32 %v2536, %v1880
        %v2563 = vmul.f32 %v2538, %v1881
        %v2564 = vmul.f32 %v2540, %v1882
        %v2565 = vmul.f32 %v2542, %v1883
        %v2566 = vmul.f32 %v2544, %v1884
        %v2567 = vmul.f32 %v2546, %v1885
        %v2568 = vmul.f32 %v2548, %v1886
        %v2569 = vmul.f32 %v2550, %v1887
        %v2570 = vmul.f32 %v2552, %v1888
        %v2571 = vmul.f32 %v2554, %v1889
        %v2572 = vmul.f32 %v2556, %v1890
        %v2573 = vadd.f32 %v2509, %v2557
        %v2574 = vadd.f32 %v2510, %v2558
        %v2575 = vadd.f32 %v2511, %v2559
        %v2576 = vadd.f32 %v2512, %v2560
        %v2577 = vadd.f32 %v2513, %v2561
        %v2578 = vadd.f32 %v2514, %v2562
        %v2579 = vadd.f32 %v2515, %v2563
        %v2580 = vadd.f32 %v2516, %v2564
        %v2581 = vadd.f32 %v2517, %v2565
        %v2582 = vadd.f32 %v2518, %v2566
        %v2583 = vadd.f32 %v2519, %v2567
        %v2584 = vadd.f32 %v2520, %v2568
        %v2585 = vadd.f32 %v2521, %v2569
        %v2586 = vadd.f32 %v2522, %v2570
        %v2587 = vadd.f32 %v2523, %v2571
        %v2588 = vadd.f32 %v2524, %v2572
        %v2589 = vpack.c.bf16 %v2494, %v2493
        %v2590 = vpack.c.bf16 %v2496, %v2495
        %v2591 = vpack.c.bf16 %v2498, %v2497
        %v2592 = vpack.c.bf16 %v2500, %v2499
        %v2593 = vpack.c.bf16 %v2502, %v2501
        %v2594 = vpack.c.bf16 %v2504, %v2503
        %v2595 = vpack.c.bf16 %v2506, %v2505
        %v2596 = vpack.c.bf16 %v2508, %v2507
        %v2597 = vpack.c.bf16 %v2574, %v2573
        %v2598 = vpack.c.bf16 %v2576, %v2575
        %v2599 = vpack.c.bf16 %v2578, %v2577
        %v2600 = vpack.c.bf16 %v2580, %v2579
        %v2601 = vpack.c.bf16 %v2582, %v2581
        %v2602 = vpack.c.bf16 %v2584, %v2583
        %v2603 = vpack.c.bf16 %v2586, %v2585
        %v2604 = vpack.c.bf16 %v2588, %v2587
        %2605 = vmatprep.subr.bf16.mxu0 0
        %2606 = vmatpush1.bf16.xpose.msra.mxu0 %v2604
        %2607 = vmatprep.subr.bf16.mxu0 0
        %2608 = vmatpush1.bf16.xpose.msra.mxu0 %v2603
        %2609 = vmatprep.subr.bf16.mxu0 0
        %2610 = vmatpush1.bf16.xpose.msra.mxu0 %v2602
        %2611 = vmatprep.subr.bf16.mxu0 0
        %2612 = vmatpush1.bf16.xpose.msra.mxu0 %v2601
        %2613 = vmatprep.subr.bf16.mxu0 0
        %2614 = vmatpush1.bf16.xpose.msra.mxu0 %v2600
        %2615 = vmatprep.subr.bf16.mxu0 0
        %2616 = vmatpush1.bf16.xpose.msra.mxu0 %v2599
        %2617 = vmatprep.subr.bf16.mxu0 0
        %2618 = vmatpush1.bf16.xpose.msra.mxu0 %v2598
        %2619 = vmatprep.subr.bf16.mxu0 0
        %2620 = vmatpush1.bf16.xpose.msra.mxu0 %v2597
        %2621 = vmatprep.subr.bf16.mxu0 0
        %2622 = vmatpush2.bf16.xpose.msra.mxu0 0
        %2623 = vmatprep.subr.bf16.mxu0 0
        %2624 = vmatpush2.bf16.xpose.msra.mxu0 0
        %2625 = vmatprep.subr.bf16.mxu0 0
        %2626 = vmatpush2.bf16.xpose.msra.mxu0 0
        %2627 = vmatprep.subr.bf16.mxu0 0
        %2628 = vmatpush2.bf16.xpose.msra.mxu0 0
        %2629 = vmatprep.subr.bf16.mxu0 0
        %2630 = vmatpush2.bf16.xpose.msra.mxu0 0
        %2631 = vmatprep.subr.bf16.mxu0 0
        %2632 = vmatpush2.bf16.xpose.msra.mxu0 0
        %2633 = vmatprep.subr.bf16.mxu0 0
        %2634 = vmatpush2.bf16.xpose.msra.mxu0 0
        %2635 = vmatprep.subr.bf16.mxu0 0
        %2636 = vmatpush2.bf16.xpose.msra.mxu0 0
        %2637 = vmatprep.mubr.bf16.mxu0 0
        %2638 = vmatmul.mubr.bf16.gmra.mxu0 %v2589
        %v2639 = vpop.f32.mrf.mxu0
        %v2640 = vadd.f32 %v1843, %v2639
        %v2641 = vpop.f32.mrf.mxu0
        %v2642 = vpop.f32.mrf.mxu0
        %v2643 = vadd.f32 %v1844, %v2642
        %v2644 = vpop.f32.mrf.mxu0
        %2645 = vmatprep.mubr.bf16.mxu0 0
        %2646 = vmatmul.mubr.bf16.gmra.mxu0 %v2590
        %v2647 = vpop.f32.mrf.mxu0
        %v2648 = vadd.f32 %v1845, %v2647
        %v2649 = vpop.f32.mrf.mxu0
        %v2650 = vpop.f32.mrf.mxu0
        %v2651 = vadd.f32 %v1846, %v2650
        %v2652 = vpop.f32.mrf.mxu0
        %2653 = vmatprep.mubr.bf16.mxu0 0
        %2654 = vmatmul.mubr.bf16.gmra.mxu0 %v2591
        %v2655 = vpop.f32.mrf.mxu0
        %v2656 = vadd.f32 %v1847, %v2655
        %v2657 = vpop.f32.mrf.mxu0
        %v2658 = vpop.f32.mrf.mxu0
        %v2659 = vadd.f32 %v1848, %v2658
        %v2660 = vpop.f32.mrf.mxu0
        %2661 = vmatprep.mubr.bf16.mxu0 0
        %2662 = vmatmul.mubr.bf16.gmra.mxu0 %v2592
        %v2663 = vpop.f32.mrf.mxu0
        %v2664 = vadd.f32 %v1849, %v2663
        %v2665 = vpop.f32.mrf.mxu0
        %v2666 = vpop.f32.mrf.mxu0
        %v2667 = vadd.f32 %v1850, %v2666
        %v2668 = vpop.f32.mrf.mxu0
        %2669 = vmatprep.mubr.bf16.mxu0 0
        %2670 = vmatmul.mubr.bf16.gmra.mxu0 %v2593
        %v2671 = vpop.f32.mrf.mxu0
        %v2672 = vadd.f32 %v1851, %v2671
        %v2673 = vpop.f32.mrf.mxu0
        %v2674 = vpop.f32.mrf.mxu0
        %v2675 = vadd.f32 %v1852, %v2674
        %v2676 = vpop.f32.mrf.mxu0
        %2677 = vmatprep.mubr.bf16.mxu0 0
        %2678 = vmatmul.mubr.bf16.gmra.mxu0 %v2594
        %v2679 = vpop.f32.mrf.mxu0
        %v2680 = vadd.f32 %v1853, %v2679
        %v2681 = vpop.f32.mrf.mxu0
        %v2682 = vpop.f32.mrf.mxu0
        %v2683 = vadd.f32 %v1854, %v2682
        %v2684 = vpop.f32.mrf.mxu0
        %2685 = vmatprep.mubr.bf16.mxu0 0
        %2686 = vmatmul.mubr.bf16.gmra.mxu0 %v2595
        %v2687 = vpop.f32.mrf.mxu0
        %v2688 = vadd.f32 %v1855, %v2687
        %v2689 = vpop.f32.mrf.mxu0
        %v2690 = vpop.f32.mrf.mxu0
        %v2691 = vadd.f32 %v1856, %v2690
        %v2692 = vpop.f32.mrf.mxu0
        %2693 = vmatprep.mubr.bf16.mxu0 0
        %2694 = vmatmul.mubr.bf16.gmra.mxu0 %v2596
        %v2695 = vpop.f32.mrf.mxu0
        %v2696 = vadd.f32 %v1857, %v2695
        %v2697 = vpop.f32.mrf.mxu0
        %v2698 = vpop.f32.mrf.mxu0
        %v2699 = vadd.f32 %v1858, %v2698
        %v2700 = vpop.f32.mrf.mxu0
        %2701 = vdwg.mxu0
        %2702 = vmax.xlane.f32.xlu0 %v2640
        %v2703 = vpop.xlane.xlu0 %2702
        %2704 = vmax.xlane.f32.xlu0 %v2643
        %v2705 = vpop.xlane.xlu0 %2704
        %2706 = vmax.xlane.f32.xlu0 %v2648
        %v2707 = vpop.xlane.xlu0 %2706
        %2708 = vmax.xlane.f32.xlu0 %v2651
        %v2709 = vpop.xlane.xlu0 %2708
        %2710 = vmax.xlane.f32.xlu0 %v2656
        %v2711 = vpop.xlane.xlu0 %2710
        %2712 = vmax.xlane.f32.xlu0 %v2659
        %v2713 = vpop.xlane.xlu0 %2712
        %2714 = vmax.xlane.f32.xlu0 %v2664
        %v2715 = vpop.xlane.xlu0 %2714
        %2716 = vmax.xlane.f32.xlu0 %v2667
        %v2717 = vpop.xlane.xlu0 %2716
        %2718 = vmax.xlane.f32.xlu0 %v2672
        %v2719 = vpop.xlane.xlu0 %2718
        %2720 = vmax.xlane.f32.xlu0 %v2675
        %v2721 = vpop.xlane.xlu0 %2720
        %2722 = vmax.xlane.f32.xlu0 %v2680
        %v2723 = vpop.xlane.xlu0 %2722
        %2724 = vmax.xlane.f32.xlu0 %v2683
        %v2725 = vpop.xlane.xlu0 %2724
        %2726 = vmax.xlane.f32.xlu0 %v2688
        %v2727 = vpop.xlane.xlu0 %2726
        %2728 = vmax.xlane.f32.xlu0 %v2691
        %v2729 = vpop.xlane.xlu0 %2728
        %2730 = vmax.xlane.f32.xlu0 %v2696
        %v2731 = vpop.xlane.xlu0 %2730
        %2732 = vmax.xlane.f32.xlu0 %v2699
        %v2733 = vpop.xlane.xlu0 %2732
        %v2734 = vsub.f32 %v2640, %v2703
        %v2735 = vsub.f32 %v2643, %v2705
        %v2736 = vsub.f32 %v2648, %v2707
        %v2737 = vsub.f32 %v2651, %v2709
        %v2738 = vsub.f32 %v2656, %v2711
        %v2739 = vsub.f32 %v2659, %v2713
        %v2740 = vsub.f32 %v2664, %v2715
        %v2741 = vsub.f32 %v2667, %v2717
        %v2742 = vsub.f32 %v2672, %v2719
        %v2743 = vsub.f32 %v2675, %v2721
        %v2744 = vsub.f32 %v2680, %v2723
        %v2745 = vsub.f32 %v2683, %v2725
        %v2746 = vsub.f32 %v2688, %v2727
        %v2747 = vsub.f32 %v2691, %v2729
        %v2748 = vsub.f32 %v2696, %v2731
        %v2749 = vsub.f32 %v2699, %v2733
        %v2750 = vmul.f32 %v2734, 1.442695
        %v2751 = vpow.pop %v2750
        %v2752 = vmul.f32 %v2735, 1.442695
        %v2753 = vpow.pop %v2752
        %v2754 = vmul.f32 %v2736, 1.442695
        %v2755 = vpow.pop %v2754
        %v2756 = vmul.f32 %v2737, 1.442695
        %v2757 = vpow.pop %v2756
        %v2758 = vmul.f32 %v2738, 1.442695
        %v2759 = vpow.pop %v2758
        %v2760 = vmul.f32 %v2739, 1.442695
        %v2761 = vpow.pop %v2760
        %v2762 = vmul.f32 %v2740, 1.442695
        %v2763 = vpow.pop %v2762
        %v2764 = vmul.f32 %v2741, 1.442695
        %v2765 = vpow.pop %v2764
        %v2766 = vmul.f32 %v2742, 1.442695
        %v2767 = vpow.pop %v2766
        %v2768 = vmul.f32 %v2743, 1.442695
        %v2769 = vpow.pop %v2768
        %v2770 = vmul.f32 %v2744, 1.442695
        %v2771 = vpow.pop %v2770
        %v2772 = vmul.f32 %v2745, 1.442695
        %v2773 = vpow.pop %v2772
        %v2774 = vmul.f32 %v2746, 1.442695
        %v2775 = vpow.pop %v2774
        %v2776 = vmul.f32 %v2747, 1.442695
        %v2777 = vpow.pop %v2776
        %v2778 = vmul.f32 %v2748, 1.442695
        %v2779 = vpow.pop %v2778
        %v2780 = vmul.f32 %v2749, 1.442695
        %v2781 = vpow.pop %v2780
        %2782 = vadd.xlane.f32.xlu0 %v2751
        %v2783 = vpop.xlane.xlu0 %2782
        %2784 = vadd.xlane.f32.xlu0 %v2753
        %v2785 = vpop.xlane.xlu0 %2784
        %2786 = vadd.xlane.f32.xlu0 %v2755
        %v2787 = vpop.xlane.xlu0 %2786
        %2788 = vadd.xlane.f32.xlu0 %v2757
        %v2789 = vpop.xlane.xlu0 %2788
        %2790 = vadd.xlane.f32.xlu0 %v2759
        %v2791 = vpop.xlane.xlu0 %2790
        %2792 = vadd.xlane.f32.xlu0 %v2761
        %v2793 = vpop.xlane.xlu0 %2792
        %2794 = vadd.xlane.f32.xlu0 %v2763
        %v2795 = vpop.xlane.xlu0 %2794
        %2796 = vadd.xlane.f32.xlu0 %v2765
        %v2797 = vpop.xlane.xlu0 %2796
        %2798 = vadd.xlane.f32.xlu0 %v2767
        %v2799 = vpop.xlane.xlu0 %2798
        %2800 = vadd.xlane.f32.xlu0 %v2769
        %v2801 = vpop.xlane.xlu0 %2800
        %2802 = vadd.xlane.f32.xlu0 %v2771
        %v2803 = vpop.xlane.xlu0 %2802
        %2804 = vadd.xlane.f32.xlu0 %v2773
        %v2805 = vpop.xlane.xlu0 %2804
        %2806 = vadd.xlane.f32.xlu0 %v2775
        %v2807 = vpop.xlane.xlu0 %2806
        %2808 = vadd.xlane.f32.xlu0 %v2777
        %v2809 = vpop.xlane.xlu0 %2808
        %2810 = vadd.xlane.f32.xlu0 %v2779
        %v2811 = vpop.xlane.xlu0 %2810
        %2812 = vadd.xlane.f32.xlu0 %v2781
        %v2813 = vpop.xlane.xlu0 %2812
        %v2814 = vpack.c.bf16 %v2753, %v2751
        %v2815 = vpack.c.bf16 %v2757, %v2755
        %v2816 = vpack.c.bf16 %v2761, %v2759
        %v2817 = vpack.c.bf16 %v2765, %v2763
        %v2818 = vpack.c.bf16 %v2769, %v2767
        %v2819 = vpack.c.bf16 %v2773, %v2771
        %v2820 = vpack.c.bf16 %v2777, %v2775
        %v2821 = vpack.c.bf16 %v2781, %v2779
        %v2822 = vpack.c.bf16 %v1723, %v1717
        %v2823 = vpack.c.bf16 %v1735, %v1729
        %v2824 = vpack.c.bf16 %v1747, %v1741
        %v2825 = vpack.c.bf16 %v1759, %v1753
        %v2826 = vpack.c.bf16 %v1771, %v1765
        %v2827 = vpack.c.bf16 %v1783, %v1777
        %v2828 = vpack.c.bf16 %v1795, %v1789
        %v2829 = vpack.c.bf16 %v1807, %v1801
        %2830 = vmatprep.subr.bf16.mxu0 0
        %2831 = vmatpush1.bf16.msra.mxu0 %v2829
        %2832 = vmatprep.subr.bf16.mxu0 0
        %2833 = vmatpush1.bf16.msra.mxu0 %v2828
        %2834 = vmatprep.subr.bf16.mxu0 0
        %2835 = vmatpush1.bf16.msra.mxu0 %v2827
        %2836 = vmatprep.subr.bf16.mxu0 0
        %2837 = vmatpush1.bf16.msra.mxu0 %v2826
        %2838 = vmatprep.subr.bf16.mxu0 0
        %2839 = vmatpush1.bf16.msra.mxu0 %v2825
        %2840 = vmatprep.subr.bf16.mxu0 0
        %2841 = vmatpush1.bf16.msra.mxu0 %v2824
        %2842 = vmatprep.subr.bf16.mxu0 0
        %2843 = vmatpush1.bf16.msra.mxu0 %v2823
        %2844 = vmatprep.subr.bf16.mxu0 0
        %2845 = vmatpush1.bf16.msra.mxu0 %v2822
        %2846 = vmatprep.subr.bf16.mxu0 0
        %2847 = vmatpush2.bf16.msra.mxu0 0
        %2848 = vmatprep.subr.bf16.mxu0 0
        %2849 = vmatpush2.bf16.msra.mxu0 0
        %2850 = vmatprep.subr.bf16.mxu0 0
        %2851 = vmatpush2.bf16.msra.mxu0 0
        %2852 = vmatprep.subr.bf16.mxu0 0
        %2853 = vmatpush2.bf16.msra.mxu0 0
        %2854 = vmatprep.subr.bf16.mxu0 0
        %2855 = vmatpush2.bf16.msra.mxu0 0
        %2856 = vmatprep.subr.bf16.mxu0 0
        %2857 = vmatpush2.bf16.msra.mxu0 0
        %2858 = vmatprep.subr.bf16.mxu0 0
        %2859 = vmatpush2.bf16.msra.mxu0 0
        %2860 = vmatprep.subr.bf16.mxu0 0
        %2861 = vmatpush2.bf16.msra.mxu0 0
        %2862 = vmatprep.mubr.bf16.mxu0 0
        %2863 = vmatmul.mubr.bf16.gmra.mxu0 %v2814
        %v2864 = vpop.f32.mrf.mxu0
        %v2865 = vadd.f32 0.0, %v2864
        %v2866 = vpop.f32.mrf.mxu0
        %v2867 = vpop.f32.mrf.mxu0
        %v2868 = vadd.f32 0.0, %v2867
        %v2869 = vpop.f32.mrf.mxu0
        %2870 = vmatprep.mubr.bf16.mxu0 0
        %2871 = vmatmul.mubr.bf16.gmra.mxu0 %v2815
        %v2872 = vpop.f32.mrf.mxu0
        %v2873 = vadd.f32 0.0, %v2872
        %v2874 = vpop.f32.mrf.mxu0
        %v2875 = vpop.f32.mrf.mxu0
        %v2876 = vadd.f32 0.0, %v2875
        %v2877 = vpop.f32.mrf.mxu0
        %2878 = vmatprep.mubr.bf16.mxu0 0
        %2879 = vmatmul.mubr.bf16.gmra.mxu0 %v2816
        %v2880 = vpop.f32.mrf.mxu0
        %v2881 = vadd.f32 0.0, %v2880
        %v2882 = vpop.f32.mrf.mxu0
        %v2883 = vpop.f32.mrf.mxu0
        %v2884 = vadd.f32 0.0, %v2883
        %v2885 = vpop.f32.mrf.mxu0
        %2886 = vmatprep.mubr.bf16.mxu0 0
        %2887 = vmatmul.mubr.bf16.gmra.mxu0 %v2817
        %v2888 = vpop.f32.mrf.mxu0
        %v2889 = vadd.f32 0.0, %v2888
        %v2890 = vpop.f32.mrf.mxu0
        %v2891 = vpop.f32.mrf.mxu0
        %v2892 = vadd.f32 0.0, %v2891
        %v2893 = vpop.f32.mrf.mxu0
        %2894 = vmatprep.mubr.bf16.mxu0 0
        %2895 = vmatmul.mubr.bf16.gmra.mxu0 %v2818
        %v2896 = vpop.f32.mrf.mxu0
        %v2897 = vadd.f32 0.0, %v2896
        %v2898 = vpop.f32.mrf.mxu0
        %v2899 = vpop.f32.mrf.mxu0
        %v2900 = vadd.f32 0.0, %v2899
        %v2901 = vpop.f32.mrf.mxu0
        %2902 = vmatprep.mubr.bf16.mxu0 0
        %2903 = vmatmul.mubr.bf16.gmra.mxu0 %v2819
        %v2904 = vpop.f32.mrf.mxu0
        %v2905 = vadd.f32 0.0, %v2904
        %v2906 = vpop.f32.mrf.mxu0
        %v2907 = vpop.f32.mrf.mxu0
        %v2908 = vadd.f32 0.0, %v2907
        %v2909 = vpop.f32.mrf.mxu0
        %2910 = vmatprep.mubr.bf16.mxu0 0
        %2911 = vmatmul.mubr.bf16.gmra.mxu0 %v2820
        %v2912 = vpop.f32.mrf.mxu0
        %v2913 = vadd.f32 0.0, %v2912
        %v2914 = vpop.f32.mrf.mxu0
        %v2915 = vpop.f32.mrf.mxu0
        %v2916 = vadd.f32 0.0, %v2915
        %v2917 = vpop.f32.mrf.mxu0
        %2918 = vmatprep.mubr.bf16.mxu0 0
        %2919 = vmatmul.mubr.bf16.gmra.mxu0 %v2821
        %v2920 = vpop.f32.mrf.mxu0
        %v2921 = vadd.f32 0.0, %v2920
        %v2922 = vpop.f32.mrf.mxu0
        %v2923 = vpop.f32.mrf.mxu0
        %v2924 = vadd.f32 0.0, %v2923
        %v2925 = vpop.f32.mrf.mxu0
        %2926 = vdwg.mxu0
        %v2927 = vrcp.pop %v2783
        %v2928 = vrcp.pop %v2785
        %v2929 = vrcp.pop %v2787
        %v2930 = vrcp.pop %v2789
        %v2931 = vrcp.pop %v2791
        %v2932 = vrcp.pop %v2793
        %v2933 = vrcp.pop %v2795
        %v2934 = vrcp.pop %v2797
        %v2935 = vrcp.pop %v2799
        %v2936 = vrcp.pop %v2801
        %v2937 = vrcp.pop %v2803
        %v2938 = vrcp.pop %v2805
        %v2939 = vrcp.pop %v2807
        %v2940 = vrcp.pop %v2809
        %v2941 = vrcp.pop %v2811
        %v2942 = vrcp.pop %v2813
        %v2943 = vmul.f32 %v2865, %v2927
        %v2944 = vmul.f32 %v2868, %v2928
        %v2945 = vmul.f32 %v2873, %v2929
        %v2946 = vmul.f32 %v2876, %v2930
        %v2947 = vmul.f32 %v2881, %v2931
        %v2948 = vmul.f32 %v2884, %v2932
        %v2949 = vmul.f32 %v2889, %v2933
        %v2950 = vmul.f32 %v2892, %v2934
        %v2951 = vmul.f32 %v2897, %v2935
        %v2952 = vmul.f32 %v2900, %v2936
        %v2953 = vmul.f32 %v2905, %v2937
        %v2954 = vmul.f32 %v2908, %v2938
        %v2955 = vmul.f32 %v2913, %v2939
        %v2956 = vmul.f32 %v2916, %v2940
        %v2957 = vmul.f32 %v2921, %v2941
        %v2958 = vmul.f32 %v2924, %v2942
        %v2959 = vpack.c.bf16 %v2944, %v2943
        %v2960 = vpack.c.bf16 %v2946, %v2945
        %v2961 = vpack.c.bf16 %v2948, %v2947
        %v2962 = vpack.c.bf16 %v2950, %v2949
        %v2963 = vpack.c.bf16 %v2952, %v2951
        %v2964 = vpack.c.bf16 %v2954, %v2953
        %v2965 = vpack.c.bf16 %v2956, %v2955
        %v2966 = vpack.c.bf16 %v2958, %v2957
        %v2967 = vld [vmem:[%s399] sm:$0xff]
        %v2968 = vld [vmem:[%s399 + $0x8] sm:$0xff]
        %v2969 = vld [vmem:[%s399 + $0x10] sm:$0xff]
        %v2970 = vld [vmem:[%s399 + $0x18] sm:$0xff]
        %v2971 = vld [vmem:[%s399 + $0x20] sm:$0xff]
        %v2972 = vld [vmem:[%s399 + $0x28] sm:$0xff]
        %v2973 = vld [vmem:[%s399 + $0x30] sm:$0xff]
        %v2974 = vld [vmem:[%s399 + $0x38] sm:$0xff]
        %v2975 = vld [vmem:[%s399 + $0x40] sm:$0xff]
        %v2976 = vld [vmem:[%s399 + $0x48] sm:$0xff]
        %v2977 = vld [vmem:[%s399 + $0x50] sm:$0xff]
        %v2978 = vld [vmem:[%s399 + $0x58] sm:$0xff]
        %v2979 = vld [vmem:[%s399 + $0x60] sm:$0xff]
        %v2980 = vld [vmem:[%s399 + $0x68] sm:$0xff]
        %v2981 = vld [vmem:[%s399 + $0x70] sm:$0xff]
        %v2982 = vld [vmem:[%s399 + $0x78] sm:$0xff]
        %v2983 = vld [vmem:[%s399 + $0x80] sm:$0xff]
        %v2984 = vld [vmem:[%s399 + $0x88] sm:$0xff]
        %v2985 = vld [vmem:[%s399 + $0x90] sm:$0xff]
        %v2986 = vld [vmem:[%s399 + $0x98] sm:$0xff]
        %v2987 = vld [vmem:[%s399 + $0xa0] sm:$0xff]
        %v2988 = vld [vmem:[%s399 + $0xa8] sm:$0xff]
        %v2989 = vld [vmem:[%s399 + $0xb0] sm:$0xff]
        %v2990 = vld [vmem:[%s399 + $0xb8] sm:$0xff]
        %v2991 = vld [vmem:[%s399 + $0xc0] sm:$0xff]
        %v2992 = vld [vmem:[%s399 + $0xc8] sm:$0xff]
        %v2993 = vld [vmem:[%s399 + $0xd0] sm:$0xff]
        %v2994 = vld [vmem:[%s399 + $0xd8] sm:$0xff]
        %v2995 = vld [vmem:[%s399 + $0xe0] sm:$0xff]
        %v2996 = vld [vmem:[%s399 + $0xe8] sm:$0xff]
        %v2997 = vld [vmem:[%s399 + $0xf0] sm:$0xff]
        %v2998 = vld [vmem:[%s399 + $0xf8] sm:$0xff]
        %v2999 = vunpack.c.l.s8.bf16 %v2967
        %v3000 = vunpack.c.l.s8.bf16 %v2968
        %v3001 = vunpack.c.l.s8.bf16 %v2969
        %v3002 = vunpack.c.l.s8.bf16 %v2970
        %v3003 = vunpack.c.h.s8.bf16 %v2967
        %v3004 = vunpack.c.h.s8.bf16 %v2968
        %v3005 = vunpack.c.h.s8.bf16 %v2969
        %v3006 = vunpack.c.h.s8.bf16 %v2970
        %v3007 = vunpack.c.l.s8.bf16 %v2971
        %v3008 = vunpack.c.l.s8.bf16 %v2972
        %v3009 = vunpack.c.l.s8.bf16 %v2973
        %v3010 = vunpack.c.l.s8.bf16 %v2974
        %v3011 = vunpack.c.h.s8.bf16 %v2971
        %v3012 = vunpack.c.h.s8.bf16 %v2972
        %v3013 = vunpack.c.h.s8.bf16 %v2973
        %v3014 = vunpack.c.h.s8.bf16 %v2974
        %v3015 = vunpack.c.l.s8.bf16 %v2975
        %v3016 = vunpack.c.l.s8.bf16 %v2976
        %v3017 = vunpack.c.l.s8.bf16 %v2977
        %v3018 = vunpack.c.l.s8.bf16 %v2978
        %v3019 = vunpack.c.h.s8.bf16 %v2975
        %v3020 = vunpack.c.h.s8.bf16 %v2976
        %v3021 = vunpack.c.h.s8.bf16 %v2977
        %v3022 = vunpack.c.h.s8.bf16 %v2978
        %v3023 = vunpack.c.l.s8.bf16 %v2979
        %v3024 = vunpack.c.l.s8.bf16 %v2980
        %v3025 = vunpack.c.l.s8.bf16 %v2981
        %v3026 = vunpack.c.l.s8.bf16 %v2982
        %v3027 = vunpack.c.h.s8.bf16 %v2979
        %v3028 = vunpack.c.h.s8.bf16 %v2980
        %v3029 = vunpack.c.h.s8.bf16 %v2981
        %v3030 = vunpack.c.h.s8.bf16 %v2982
        %v3031 = vunpack.c.l.s8.bf16 %v2983
        %v3032 = vunpack.c.l.s8.bf16 %v2984
        %v3033 = vunpack.c.l.s8.bf16 %v2985
        %v3034 = vunpack.c.l.s8.bf16 %v2986
        %v3035 = vunpack.c.h.s8.bf16 %v2983
        %v3036 = vunpack.c.h.s8.bf16 %v2984
        %v3037 = vunpack.c.h.s8.bf16 %v2985
        %v3038 = vunpack.c.h.s8.bf16 %v2986
        %v3039 = vunpack.c.l.s8.bf16 %v2987
        %v3040 = vunpack.c.l.s8.bf16 %v2988
        %v3041 = vunpack.c.l.s8.bf16 %v2989
        %v3042 = vunpack.c.l.s8.bf16 %v2990
        %v3043 = vunpack.c.h.s8.bf16 %v2987
        %v3044 = vunpack.c.h.s8.bf16 %v2988
        %v3045 = vunpack.c.h.s8.bf16 %v2989
        %v3046 = vunpack.c.h.s8.bf16 %v2990
        %v3047 = vunpack.c.l.s8.bf16 %v2991
        %v3048 = vunpack.c.l.s8.bf16 %v2992
        %v3049 = vunpack.c.l.s8.bf16 %v2993
        %v3050 = vunpack.c.l.s8.bf16 %v2994
        %v3051 = vunpack.c.h.s8.bf16 %v2991
        %v3052 = vunpack.c.h.s8.bf16 %v2992
        %v3053 = vunpack.c.h.s8.bf16 %v2993
        %v3054 = vunpack.c.h.s8.bf16 %v2994
        %v3055 = vunpack.c.l.s8.bf16 %v2995
        %v3056 = vunpack.c.l.s8.bf16 %v2996
        %v3057 = vunpack.c.l.s8.bf16 %v2997
        %v3058 = vunpack.c.l.s8.bf16 %v2998
        %v3059 = vunpack.c.h.s8.bf16 %v2995
        %v3060 = vunpack.c.h.s8.bf16 %v2996
        %v3061 = vunpack.c.h.s8.bf16 %v2997
        %v3062 = vunpack.c.h.s8.bf16 %v2998
        %v3063 = vld [vmem:[#allocation2] sm:$0xff]
        %v3064 = vld [vmem:[#allocation2 + $0x8] sm:$0xff]
        %v3065 = vld [vmem:[#allocation2 + $0x10] sm:$0xff]
        %v3066 = vld [vmem:[#allocation2 + $0x18] sm:$0xff]
        %v3067 = vld [vmem:[#allocation2 + $0x20] sm:$0xff]
        %v3068 = vld [vmem:[#allocation2 + $0x28] sm:$0xff]
        %v3069 = vld [vmem:[#allocation2 + $0x30] sm:$0xff]
        %v3070 = vld [vmem:[#allocation2 + $0x38] sm:$0xff]
        %v3071 = vld [vmem:[#allocation2 + $0x40] sm:$0xff]
        %v3072 = vld [vmem:[#allocation2 + $0x48] sm:$0xff]
        %v3073 = vld [vmem:[#allocation2 + $0x50] sm:$0xff]
        %v3074 = vld [vmem:[#allocation2 + $0x58] sm:$0xff]
        %v3075 = vld [vmem:[#allocation2 + $0x60] sm:$0xff]
        %v3076 = vld [vmem:[#allocation2 + $0x68] sm:$0xff]
        %v3077 = vld [vmem:[#allocation2 + $0x70] sm:$0xff]
        %v3078 = vld [vmem:[#allocation2 + $0x78] sm:$0xff]
        %v3079 = vld [vmem:[#allocation2 + $0x80] sm:$0xff]
        %v3080 = vld [vmem:[#allocation2 + $0x88] sm:$0xff]
        %v3081 = vld [vmem:[#allocation2 + $0x90] sm:$0xff]
        %v3082 = vld [vmem:[#allocation2 + $0x98] sm:$0xff]
        %v3083 = vld [vmem:[#allocation2 + $0xa0] sm:$0xff]
        %v3084 = vld [vmem:[#allocation2 + $0xa8] sm:$0xff]
        %v3085 = vld [vmem:[#allocation2 + $0xb0] sm:$0xff]
        %v3086 = vld [vmem:[#allocation2 + $0xb8] sm:$0xff]
        %v3087 = vld [vmem:[#allocation2 + $0xc0] sm:$0xff]
        %v3088 = vld [vmem:[#allocation2 + $0xc8] sm:$0xff]
        %v3089 = vld [vmem:[#allocation2 + $0xd0] sm:$0xff]
        %v3090 = vld [vmem:[#allocation2 + $0xd8] sm:$0xff]
        %v3091 = vld [vmem:[#allocation2 + $0xe0] sm:$0xff]
        %v3092 = vld [vmem:[#allocation2 + $0xe8] sm:$0xff]
        %v3093 = vld [vmem:[#allocation2 + $0xf0] sm:$0xff]
        %v3094 = vld [vmem:[#allocation2 + $0xf8] sm:$0xff]
        %v3095 = vld [vmem:[#allocation2 + $0x100] sm:$0xff]
        %v3096 = vld [vmem:[#allocation2 + $0x108] sm:$0xff]
        %v3097 = vld [vmem:[#allocation2 + $0x110] sm:$0xff]
        %v3098 = vld [vmem:[#allocation2 + $0x118] sm:$0xff]
        %v3099 = vld [vmem:[#allocation2 + $0x120] sm:$0xff]
        %v3100 = vld [vmem:[#allocation2 + $0x128] sm:$0xff]
        %v3101 = vld [vmem:[#allocation2 + $0x130] sm:$0xff]
        %v3102 = vld [vmem:[#allocation2 + $0x138] sm:$0xff]
        %v3103 = vld [vmem:[#allocation2 + $0x140] sm:$0xff]
        %v3104 = vld [vmem:[#allocation2 + $0x148] sm:$0xff]
        %v3105 = vld [vmem:[#allocation2 + $0x150] sm:$0xff]
        %v3106 = vld [vmem:[#allocation2 + $0x158] sm:$0xff]
        %v3107 = vld [vmem:[#allocation2 + $0x160] sm:$0xff]
        %v3108 = vld [vmem:[#allocation2 + $0x168] sm:$0xff]
        %v3109 = vld [vmem:[#allocation2 + $0x170] sm:$0xff]
        %v3110 = vld [vmem:[#allocation2 + $0x178] sm:$0xff]
        %v3111 = vld [vmem:[#allocation2 + $0x180] sm:$0xff]
        %v3112 = vld [vmem:[#allocation2 + $0x188] sm:$0xff]
        %v3113 = vld [vmem:[#allocation2 + $0x190] sm:$0xff]
        %v3114 = vld [vmem:[#allocation2 + $0x198] sm:$0xff]
        %v3115 = vld [vmem:[#allocation2 + $0x1a0] sm:$0xff]
        %v3116 = vld [vmem:[#allocation2 + $0x1a8] sm:$0xff]
        %v3117 = vld [vmem:[#allocation2 + $0x1b0] sm:$0xff]
        %v3118 = vld [vmem:[#allocation2 + $0x1b8] sm:$0xff]
        %v3119 = vld [vmem:[#allocation2 + $0x1c0] sm:$0xff]
        %v3120 = vld [vmem:[#allocation2 + $0x1c8] sm:$0xff]
        %v3121 = vld [vmem:[#allocation2 + $0x1d0] sm:$0xff]
        %v3122 = vld [vmem:[#allocation2 + $0x1d8] sm:$0xff]
        %v3123 = vld [vmem:[#allocation2 + $0x1e0] sm:$0xff]
        %v3124 = vld [vmem:[#allocation2 + $0x1e8] sm:$0xff]
        %v3125 = vld [vmem:[#allocation2 + $0x1f0] sm:$0xff]
        %v3126 = vld [vmem:[#allocation2 + $0x1f8] sm:$0xff]
        %3127 = vmatprep.subr.bf16.mxu0 %v3028
        %3128 = vmatpush1.bf16.msra.mxu0 %v3027
        %3129 = vmatprep.subr.bf16.mxu0 %v3024
        %3130 = vmatpush1.bf16.msra.mxu0 %v3023
        %3131 = vmatprep.subr.bf16.mxu0 %v3020
        %3132 = vmatpush1.bf16.msra.mxu0 %v3019
        %3133 = vmatprep.subr.bf16.mxu0 %v3016
        %3134 = vmatpush1.bf16.msra.mxu0 %v3015
        %3135 = vmatprep.subr.bf16.mxu0 %v3012
        %3136 = vmatpush1.bf16.msra.mxu0 %v3011
        %3137 = vmatprep.subr.bf16.mxu0 %v3008
        %3138 = vmatpush1.bf16.msra.mxu0 %v3007
        %3139 = vmatprep.subr.bf16.mxu0 %v3004
        %3140 = vmatpush1.bf16.msra.mxu0 %v3003
        %3141 = vmatprep.subr.bf16.mxu0 %v3000
        %3142 = vmatpush1.bf16.msra.mxu0 %v2999
        %3143 = vmatprep.subr.bf16.mxu0 %v3060
        %3144 = vmatpush2.bf16.msra.mxu0 %v3059
        %3145 = vmatprep.subr.bf16.mxu0 %v3056
        %3146 = vmatpush2.bf16.msra.mxu0 %v3055
        %3147 = vmatprep.subr.bf16.mxu0 %v3052
        %3148 = vmatpush2.bf16.msra.mxu0 %v3051
        %3149 = vmatprep.subr.bf16.mxu0 %v3048
        %3150 = vmatpush2.bf16.msra.mxu0 %v3047
        %3151 = vmatprep.subr.bf16.mxu0 %v3044
        %3152 = vmatpush2.bf16.msra.mxu0 %v3043
        %3153 = vmatprep.subr.bf16.mxu0 %v3040
        %3154 = vmatpush2.bf16.msra.mxu0 %v3039
        %3155 = vmatprep.subr.bf16.mxu0 %v3036
        %3156 = vmatpush2.bf16.msra.mxu0 %v3035
        %3157 = vmatprep.subr.bf16.mxu0 %v3032
        %3158 = vmatpush2.bf16.msra.mxu0 %v3031
        %3159 = vmatprep.mubr.bf16.mxu0 %v2959
        %3160 = vmatmul.mubr.bf16.gmra.mxu0 %v2421
        %v3161 = vpop.f32.mrf.mxu0
        %v3162 = vadd.f32 0.0, %v3161
        %v3163 = vpop.f32.mrf.mxu0
        %v3164 = vadd.f32 0.0, %v3163
        %v3165 = vpop.f32.mrf.mxu0
        %v3166 = vadd.f32 0.0, %v3165
        %v3167 = vpop.f32.mrf.mxu0
        %v3168 = vadd.f32 0.0, %v3167
        %3169 = vmatprep.mubr.bf16.mxu0 %v2960
        %3170 = vmatmul.mubr.bf16.gmra.mxu0 %v2422
        %v3171 = vpop.f32.mrf.mxu0
        %v3172 = vadd.f32 0.0, %v3171
        %v3173 = vpop.f32.mrf.mxu0
        %v3174 = vadd.f32 0.0, %v3173
        %v3175 = vpop.f32.mrf.mxu0
        %v3176 = vadd.f32 0.0, %v3175
        %v3177 = vpop.f32.mrf.mxu0
        %v3178 = vadd.f32 0.0, %v3177
        %3179 = vmatprep.mubr.bf16.mxu0 %v2961
        %3180 = vmatmul.mubr.bf16.gmra.mxu0 %v2423
        %v3181 = vpop.f32.mrf.mxu0
        %v3182 = vadd.f32 0.0, %v3181
        %v3183 = vpop.f32.mrf.mxu0
        %v3184 = vadd.f32 0.0, %v3183
        %v3185 = vpop.f32.mrf.mxu0
        %v3186 = vadd.f32 0.0, %v3185
        %v3187 = vpop.f32.mrf.mxu0
        %v3188 = vadd.f32 0.0, %v3187
        %3189 = vmatprep.mubr.bf16.mxu0 %v2962
        %3190 = vmatmul.mubr.bf16.gmra.mxu0 %v2424
        %v3191 = vpop.f32.mrf.mxu0
        %v3192 = vadd.f32 0.0, %v3191
        %v3193 = vpop.f32.mrf.mxu0
        %v3194 = vadd.f32 0.0, %v3193
        %v3195 = vpop.f32.mrf.mxu0
        %v3196 = vadd.f32 0.0, %v3195
        %v3197 = vpop.f32.mrf.mxu0
        %v3198 = vadd.f32 0.0, %v3197
        %3199 = vmatprep.mubr.bf16.mxu0 %v2963
        %3200 = vmatmul.mubr.bf16.gmra.mxu0 %v2425
        %v3201 = vpop.f32.mrf.mxu0
        %v3202 = vadd.f32 0.0, %v3201
        %v3203 = vpop.f32.mrf.mxu0
        %v3204 = vadd.f32 0.0, %v3203
        %v3205 = vpop.f32.mrf.mxu0
        %v3206 = vadd.f32 0.0, %v3205
        %v3207 = vpop.f32.mrf.mxu0
        %v3208 = vadd.f32 0.0, %v3207
        %3209 = vmatprep.mubr.bf16.mxu0 %v2964
        %3210 = vmatmul.mubr.bf16.gmra.mxu0 %v2426
        %v3211 = vpop.f32.mrf.mxu0
        %v3212 = vadd.f32 0.0, %v3211
        %v3213 = vpop.f32.mrf.mxu0
        %v3214 = vadd.f32 0.0, %v3213
        %v3215 = vpop.f32.mrf.mxu0
        %v3216 = vadd.f32 0.0, %v3215
        %v3217 = vpop.f32.mrf.mxu0
        %v3218 = vadd.f32 0.0, %v3217
        %3219 = vmatprep.mubr.bf16.mxu0 %v2965
        %3220 = vmatmul.mubr.bf16.gmra.mxu0 %v2427
        %v3221 = vpop.f32.mrf.mxu0
        %v3222 = vadd.f32 0.0, %v3221
        %v3223 = vpop.f32.mrf.mxu0
        %v3224 = vadd.f32 0.0, %v3223
        %v3225 = vpop.f32.mrf.mxu0
        %v3226 = vadd.f32 0.0, %v3225
        %v3227 = vpop.f32.mrf.mxu0
        %v3228 = vadd.f32 0.0, %v3227
        %3229 = vmatprep.mubr.bf16.mxu0 %v2966
        %3230 = vmatmul.mubr.bf16.gmra.mxu0 %v2428
        %v3231 = vpop.f32.mrf.mxu0
        %v3232 = vadd.f32 0.0, %v3231
        %v3233 = vpop.f32.mrf.mxu0
        %v3234 = vadd.f32 0.0, %v3233
        %v3235 = vpop.f32.mrf.mxu0
        %v3236 = vadd.f32 0.0, %v3235
        %v3237 = vpop.f32.mrf.mxu0
        %v3238 = vadd.f32 0.0, %v3237
        %3239 = vdwg.mxu0
        %3240 = vmatprep.subr.bf16.mxu0 %v3030
        %3241 = vmatpush1.bf16.msra.mxu0 %v3029
        %3242 = vmatprep.subr.bf16.mxu0 %v3026
        %3243 = vmatpush1.bf16.msra.mxu0 %v3025
        %3244 = vmatprep.subr.bf16.mxu0 %v3022
        %3245 = vmatpush1.bf16.msra.mxu0 %v3021
        %3246 = vmatprep.subr.bf16.mxu0 %v3018
        %3247 = vmatpush1.bf16.msra.mxu0 %v3017
        %3248 = vmatprep.subr.bf16.mxu0 %v3014
        %3249 = vmatpush1.bf16.msra.mxu0 %v3013
        %3250 = vmatprep.subr.bf16.mxu0 %v3010
        %3251 = vmatpush1.bf16.msra.mxu0 %v3009
        %3252 = vmatprep.subr.bf16.mxu0 %v3006
        %3253 = vmatpush1.bf16.msra.mxu0 %v3005
        %3254 = vmatprep.subr.bf16.mxu0 %v3002
        %3255 = vmatpush1.bf16.msra.mxu0 %v3001
        %3256 = vmatprep.subr.bf16.mxu0 %v3062
        %3257 = vmatpush2.bf16.msra.mxu0 %v3061
        %3258 = vmatprep.subr.bf16.mxu0 %v3058
        %3259 = vmatpush2.bf16.msra.mxu0 %v3057
        %3260 = vmatprep.subr.bf16.mxu0 %v3054
        %3261 = vmatpush2.bf16.msra.mxu0 %v3053
        %3262 = vmatprep.subr.bf16.mxu0 %v3050
        %3263 = vmatpush2.bf16.msra.mxu0 %v3049
        %3264 = vmatprep.subr.bf16.mxu0 %v3046
        %3265 = vmatpush2.bf16.msra.mxu0 %v3045
        %3266 = vmatprep.subr.bf16.mxu0 %v3042
        %3267 = vmatpush2.bf16.msra.mxu0 %v3041
        %3268 = vmatprep.subr.bf16.mxu0 %v3038
        %3269 = vmatpush2.bf16.msra.mxu0 %v3037
        %3270 = vmatprep.subr.bf16.mxu0 %v3034
        %3271 = vmatpush2.bf16.msra.mxu0 %v3033
        %3272 = vmatprep.mubr.bf16.mxu0 %v2959
        %3273 = vmatmul.mubr.bf16.gmra.mxu0 %v2421
        %v3274 = vpop.f32.mrf.mxu0
        %v3275 = vadd.f32 0.0, %v3274
        %v3276 = vpop.f32.mrf.mxu0
        %v3277 = vadd.f32 0.0, %v3276
        %v3278 = vpop.f32.mrf.mxu0
        %v3279 = vadd.f32 0.0, %v3278
        %v3280 = vpop.f32.mrf.mxu0
        %v3281 = vadd.f32 0.0, %v3280
        %3282 = vmatprep.mubr.bf16.mxu0 %v2960
        %3283 = vmatmul.mubr.bf16.gmra.mxu0 %v2422
        %v3284 = vpop.f32.mrf.mxu0
        %v3285 = vadd.f32 0.0, %v3284
        %v3286 = vpop.f32.mrf.mxu0
        %v3287 = vadd.f32 0.0, %v3286
        %v3288 = vpop.f32.mrf.mxu0
        %v3289 = vadd.f32 0.0, %v3288
        %v3290 = vpop.f32.mrf.mxu0
        %v3291 = vadd.f32 0.0, %v3290
        %3292 = vmatprep.mubr.bf16.mxu0 %v2961
        %3293 = vmatmul.mubr.bf16.gmra.mxu0 %v2423
        %v3294 = vpop.f32.mrf.mxu0
        %v3295 = vadd.f32 0.0, %v3294
        %v3296 = vpop.f32.mrf.mxu0
        %v3297 = vadd.f32 0.0, %v3296
        %v3298 = vpop.f32.mrf.mxu0
        %v3299 = vadd.f32 0.0, %v3298
        %v3300 = vpop.f32.mrf.mxu0
        %v3301 = vadd.f32 0.0, %v3300
        %3302 = vmatprep.mubr.bf16.mxu0 %v2962
        %3303 = vmatmul.mubr.bf16.gmra.mxu0 %v2424
        %v3304 = vpop.f32.mrf.mxu0
        %v3305 = vadd.f32 0.0, %v3304
        %v3306 = vpop.f32.mrf.mxu0
        %v3307 = vadd.f32 0.0, %v3306
        %v3308 = vpop.f32.mrf.mxu0
        %v3309 = vadd.f32 0.0, %v3308
        %v3310 = vpop.f32.mrf.mxu0
        %v3311 = vadd.f32 0.0, %v3310
        %3312 = vmatprep.mubr.bf16.mxu0 %v2963
        %3313 = vmatmul.mubr.bf16.gmra.mxu0 %v2425
        %v3314 = vpop.f32.mrf.mxu0
        %v3315 = vadd.f32 0.0, %v3314
        %v3316 = vpop.f32.mrf.mxu0
        %v3317 = vadd.f32 0.0, %v3316
        %v3318 = vpop.f32.mrf.mxu0
        %v3319 = vadd.f32 0.0, %v3318
        %v3320 = vpop.f32.mrf.mxu0
        %v3321 = vadd.f32 0.0, %v3320
        %3322 = vmatprep.mubr.bf16.mxu0 %v2964
        %3323 = vmatmul.mubr.bf16.gmra.mxu0 %v2426
        %v3324 = vpop.f32.mrf.mxu0
        %v3325 = vadd.f32 0.0, %v3324
        %v3326 = vpop.f32.mrf.mxu0
        %v3327 = vadd.f32 0.0, %v3326
        %v3328 = vpop.f32.mrf.mxu0
        %v3329 = vadd.f32 0.0, %v3328
        %v3330 = vpop.f32.mrf.mxu0
        %v3331 = vadd.f32 0.0, %v3330
        %3332 = vmatprep.mubr.bf16.mxu0 %v2965
        %3333 = vmatmul.mubr.bf16.gmra.mxu0 %v2427
        %v3334 = vpop.f32.mrf.mxu0
        %v3335 = vadd.f32 0.0, %v3334
        %v3336 = vpop.f32.mrf.mxu0
        %v3337 = vadd.f32 0.0, %v3336
        %v3338 = vpop.f32.mrf.mxu0
        %v3339 = vadd.f32 0.0, %v3338
        %v3340 = vpop.f32.mrf.mxu0
        %v3341 = vadd.f32 0.0, %v3340
        %3342 = vmatprep.mubr.bf16.mxu0 %v2966
        %3343 = vmatmul.mubr.bf16.gmra.mxu0 %v2428
        %v3344 = vpop.f32.mrf.mxu0
        %v3345 = vadd.f32 0.0, %v3344
        %v3346 = vpop.f32.mrf.mxu0
        %v3347 = vadd.f32 0.0, %v3346
        %v3348 = vpop.f32.mrf.mxu0
        %v3349 = vadd.f32 0.0, %v3348
        %v3350 = vpop.f32.mrf.mxu0
        %v3351 = vadd.f32 0.0, %v3350
        %3352 = vdwg.mxu0
        %v3353 = vadd.f32 %v3063, %v3162
        %v3354 = vadd.f32 %v3064, %v3164
        %v3355 = vadd.f32 %v3065, %v3275
        %v3356 = vadd.f32 %v3066, %v3277
        %v3357 = vadd.f32 %v3067, %v3166
        %v3358 = vadd.f32 %v3068, %v3168
        %v3359 = vadd.f32 %v3069, %v3279
        %v3360 = vadd.f32 %v3070, %v3281
        %v3361 = vadd.f32 %v3071, %v3172
        %v3362 = vadd.f32 %v3072, %v3174
        %v3363 = vadd.f32 %v3073, %v3285
        %v3364 = vadd.f32 %v3074, %v3287
        %v3365 = vadd.f32 %v3075, %v3176
        %v3366 = vadd.f32 %v3076, %v3178
        %v3367 = vadd.f32 %v3077, %v3289
        %v3368 = vadd.f32 %v3078, %v3291
        %v3369 = vadd.f32 %v3079, %v3182
        %v3370 = vadd.f32 %v3080, %v3184
        %v3371 = vadd.f32 %v3081, %v3295
        %v3372 = vadd.f32 %v3082, %v3297
        %v3373 = vadd.f32 %v3083, %v3186
        %v3374 = vadd.f32 %v3084, %v3188
        %v3375 = vadd.f32 %v3085, %v3299
        %v3376 = vadd.f32 %v3086, %v3301
        %v3377 = vadd.f32 %v3087, %v3192
        %v3378 = vadd.f32 %v3088, %v3194
        %v3379 = vadd.f32 %v3089, %v3305
        %v3380 = vadd.f32 %v3090, %v3307
        %v3381 = vadd.f32 %v3091, %v3196
        %v3382 = vadd.f32 %v3092, %v3198
        %v3383 = vadd.f32 %v3093, %v3309
        %v3384 = vadd.f32 %v3094, %v3311
        %v3385 = vadd.f32 %v3095, %v3202
        %v3386 = vadd.f32 %v3096, %v3204
        %v3387 = vadd.f32 %v3097, %v3315
        %v3388 = vadd.f32 %v3098, %v3317
        %v3389 = vadd.f32 %v3099, %v3206
        %v3390 = vadd.f32 %v3100, %v3208
        %v3391 = vadd.f32 %v3101, %v3319
        %v3392 = vadd.f32 %v3102, %v3321
        %v3393 = vadd.f32 %v3103, %v3212
        %v3394 = vadd.f32 %v3104, %v3214
        %v3395 = vadd.f32 %v3105, %v3325
        %v3396 = vadd.f32 %v3106, %v3327
        %v3397 = vadd.f32 %v3107, %v3216
        %v3398 = vadd.f32 %v3108, %v3218
        %v3399 = vadd.f32 %v3109, %v3329
        %v3400 = vadd.f32 %v3110, %v3331
        %v3401 = vadd.f32 %v3111, %v3222
        %v3402 = vadd.f32 %v3112, %v3224
        %v3403 = vadd.f32 %v3113, %v3335
        %v3404 = vadd.f32 %v3114, %v3337
        %v3405 = vadd.f32 %v3115, %v3226
        %v3406 = vadd.f32 %v3116, %v3228
        %v3407 = vadd.f32 %v3117, %v3339
        %v3408 = vadd.f32 %v3118, %v3341
        %v3409 = vadd.f32 %v3119, %v3232
        %v3410 = vadd.f32 %v3120, %v3234
        %v3411 = vadd.f32 %v3121, %v3345
        %v3412 = vadd.f32 %v3122, %v3347
        %v3413 = vadd.f32 %v3123, %v3236
        %v3414 = vadd.f32 %v3124, %v3238
        %v3415 = vadd.f32 %v3125, %v3349
        %v3416 = vadd.f32 %v3126, %v3351
        %3417 = vst [vmem:[#allocation2] sm:$0xff] %v3353
        %3418 = vst [vmem:[#allocation2 + $0x8] sm:$0xff] %v3354
        %3419 = vst [vmem:[#allocation2 + $0x10] sm:$0xff] %v3355
        %3420 = vst [vmem:[#allocation2 + $0x18] sm:$0xff] %v3356
        %3421 = vst [vmem:[#allocation2 + $0x20] sm:$0xff] %v3357
        %3422 = vst [vmem:[#allocation2 + $0x28] sm:$0xff] %v3358
        %3423 = vst [vmem:[#allocation2 + $0x30] sm:$0xff] %v3359
        %3424 = vst [vmem:[#allocation2 + $0x38] sm:$0xff] %v3360
        %3425 = vst [vmem:[#allocation2 + $0x40] sm:$0xff] %v3361
        %3426 = vst [vmem:[#allocation2 + $0x48] sm:$0xff] %v3362
        %3427 = vst [vmem:[#allocation2 + $0x50] sm:$0xff] %v3363
        %3428 = vst [vmem:[#allocation2 + $0x58] sm:$0xff] %v3364
        %3429 = vst [vmem:[#allocation2 + $0x60] sm:$0xff] %v3365
        %3430 = vst [vmem:[#allocation2 + $0x68] sm:$0xff] %v3366
        %3431 = vst [vmem:[#allocation2 + $0x70] sm:$0xff] %v3367
        %3432 = vst [vmem:[#allocation2 + $0x78] sm:$0xff] %v3368
        %3433 = vst [vmem:[#allocation2 + $0x80] sm:$0xff] %v3369
        %3434 = vst [vmem:[#allocation2 + $0x88] sm:$0xff] %v3370
        %3435 = vst [vmem:[#allocation2 + $0x90] sm:$0xff] %v3371
        %3436 = vst [vmem:[#allocation2 + $0x98] sm:$0xff] %v3372
        %3437 = vst [vmem:[#allocation2 + $0xa0] sm:$0xff] %v3373
        %3438 = vst [vmem:[#allocation2 + $0xa8] sm:$0xff] %v3374
        %3439 = vst [vmem:[#allocation2 + $0xb0] sm:$0xff] %v3375
        %3440 = vst [vmem:[#allocation2 + $0xb8] sm:$0xff] %v3376
        %3441 = vst [vmem:[#allocation2 + $0xc0] sm:$0xff] %v3377
        %3442 = vst [vmem:[#allocation2 + $0xc8] sm:$0xff] %v3378
        %3443 = vst [vmem:[#allocation2 + $0xd0] sm:$0xff] %v3379
        %3444 = vst [vmem:[#allocation2 + $0xd8] sm:$0xff] %v3380
        %3445 = vst [vmem:[#allocation2 + $0xe0] sm:$0xff] %v3381
        %3446 = vst [vmem:[#allocation2 + $0xe8] sm:$0xff] %v3382
        %3447 = vst [vmem:[#allocation2 + $0xf0] sm:$0xff] %v3383
        %3448 = vst [vmem:[#allocation2 + $0xf8] sm:$0xff] %v3384
        %3449 = vst [vmem:[#allocation2 + $0x100] sm:$0xff] %v3385
        %3450 = vst [vmem:[#allocation2 + $0x108] sm:$0xff] %v3386
        %3451 = vst [vmem:[#allocation2 + $0x110] sm:$0xff] %v3387
        %3452 = vst [vmem:[#allocation2 + $0x118] sm:$0xff] %v3388
        %3453 = vst [vmem:[#allocation2 + $0x120] sm:$0xff] %v3389
        %3454 = vst [vmem:[#allocation2 + $0x128] sm:$0xff] %v3390
        %3455 = vst [vmem:[#allocation2 + $0x130] sm:$0xff] %v3391
        %3456 = vst [vmem:[#allocation2 + $0x138] sm:$0xff] %v3392
        %3457 = vst [vmem:[#allocation2 + $0x140] sm:$0xff] %v3393
        %3458 = vst [vmem:[#allocation2 + $0x148] sm:$0xff] %v3394
        %3459 = vst [vmem:[#allocation2 + $0x150] sm:$0xff] %v3395
        %3460 = vst [vmem:[#allocation2 + $0x158] sm:$0xff] %v3396
        %3461 = vst [vmem:[#allocation2 + $0x160] sm:$0xff] %v3397
        %3462 = vst [vmem:[#allocation2 + $0x168] sm:$0xff] %v3398
        %3463 = vst [vmem:[#allocation2 + $0x170] sm:$0xff] %v3399
        %3464 = vst [vmem:[#allocation2 + $0x178] sm:$0xff] %v3400
        %3465 = vst [vmem:[#allocation2 + $0x180] sm:$0xff] %v3401
        %3466 = vst [vmem:[#allocation2 + $0x188] sm:$0xff] %v3402
        %3467 = vst [vmem:[#allocation2 + $0x190] sm:$0xff] %v3403
        %3468 = vst [vmem:[#allocation2 + $0x198] sm:$0xff] %v3404
        %3469 = vst [vmem:[#allocation2 + $0x1a0] sm:$0xff] %v3405
        %3470 = vst [vmem:[#allocation2 + $0x1a8] sm:$0xff] %v3406
        %3471 = vst [vmem:[#allocation2 + $0x1b0] sm:$0xff] %v3407
        %3472 = vst [vmem:[#allocation2 + $0x1b8] sm:$0xff] %v3408
        %3473 = vst [vmem:[#allocation2 + $0x1c0] sm:$0xff] %v3409
        %3474 = vst [vmem:[#allocation2 + $0x1c8] sm:$0xff] %v3410
        %3475 = vst [vmem:[#allocation2 + $0x1d0] sm:$0xff] %v3411
        %3476 = vst [vmem:[#allocation2 + $0x1d8] sm:$0xff] %v3412
        %3477 = vst [vmem:[#allocation2 + $0x1e0] sm:$0xff] %v3413
        %3478 = vst [vmem:[#allocation2 + $0x1e8] sm:$0xff] %v3414
        %3479 = vst [vmem:[#allocation2 + $0x1f0] sm:$0xff] %v3415
        %3480 = vst [vmem:[#allocation2 + $0x1f8] sm:$0xff] %v3416
        %p3481 = scmp.eq.s32.totalorder %s36, 1
        // Predicated region
        $region77: #{tpu_custom_call.1} parent=47 // pred_check
          %p3482 = pneg %p3481
        $region78: #{tpu_custom_call.1} parent=47 // pred_check_branch
          %3484 = sbr.rel (%p3482) target = $region80
        $region79: #{tpu_custom_call.1} parent=47 // pred_region
          %v3485 = vld [vmem:[#allocation2] sm:$0xff]
          %v3486 = vld [vmem:[#allocation2 + $0x8] sm:$0xff]
          %v3487 = vld [vmem:[#allocation2 + $0x10] sm:$0xff]
          %v3488 = vld [vmem:[#allocation2 + $0x18] sm:$0xff]
          %v3489 = vld [vmem:[#allocation2 + $0x20] sm:$0xff]
          %v3490 = vld [vmem:[#allocation2 + $0x28] sm:$0xff]
          %v3491 = vld [vmem:[#allocation2 + $0x30] sm:$0xff]
          %v3492 = vld [vmem:[#allocation2 + $0x38] sm:$0xff]
          %v3493 = vld [vmem:[#allocation2 + $0x40] sm:$0xff]
          %v3494 = vld [vmem:[#allocation2 + $0x48] sm:$0xff]
          %v3495 = vld [vmem:[#allocation2 + $0x50] sm:$0xff]
          %v3496 = vld [vmem:[#allocation2 + $0x58] sm:$0xff]
          %v3497 = vld [vmem:[#allocation2 + $0x60] sm:$0xff]
          %v3498 = vld [vmem:[#allocation2 + $0x68] sm:$0xff]
          %v3499 = vld [vmem:[#allocation2 + $0x70] sm:$0xff]
          %v3500 = vld [vmem:[#allocation2 + $0x78] sm:$0xff]
          %v3501 = vld [vmem:[#allocation2 + $0x80] sm:$0xff]
          %v3502 = vld [vmem:[#allocation2 + $0x88] sm:$0xff]
          %v3503 = vld [vmem:[#allocation2 + $0x90] sm:$0xff]
          %v3504 = vld [vmem:[#allocation2 + $0x98] sm:$0xff]
          %v3505 = vld [vmem:[#allocation2 + $0xa0] sm:$0xff]
          %v3506 = vld [vmem:[#allocation2 + $0xa8] sm:$0xff]
          %v3507 = vld [vmem:[#allocation2 + $0xb0] sm:$0xff]
          %v3508 = vld [vmem:[#allocation2 + $0xb8] sm:$0xff]
          %v3509 = vld [vmem:[#allocation2 + $0xc0] sm:$0xff]
          %v3510 = vld [vmem:[#allocation2 + $0xc8] sm:$0xff]
          %v3511 = vld [vmem:[#allocation2 + $0xd0] sm:$0xff]
          %v3512 = vld [vmem:[#allocation2 + $0xd8] sm:$0xff]
          %v3513 = vld [vmem:[#allocation2 + $0xe0] sm:$0xff]
          %v3514 = vld [vmem:[#allocation2 + $0xe8] sm:$0xff]
          %v3515 = vld [vmem:[#allocation2 + $0xf0] sm:$0xff]
          %v3516 = vld [vmem:[#allocation2 + $0xf8] sm:$0xff]
          %v3517 = vld [vmem:[#allocation2 + $0x100] sm:$0xff]
          %v3518 = vld [vmem:[#allocation2 + $0x108] sm:$0xff]
          %v3519 = vld [vmem:[#allocation2 + $0x110] sm:$0xff]
          %v3520 = vld [vmem:[#allocation2 + $0x118] sm:$0xff]
          %v3521 = vld [vmem:[#allocation2 + $0x120] sm:$0xff]
          %v3522 = vld [vmem:[#allocation2 + $0x128] sm:$0xff]
          %v3523 = vld [vmem:[#allocation2 + $0x130] sm:$0xff]
          %v3524 = vld [vmem:[#allocation2 + $0x138] sm:$0xff]
          %v3525 = vld [vmem:[#allocation2 + $0x140] sm:$0xff]
          %v3526 = vld [vmem:[#allocation2 + $0x148] sm:$0xff]
          %v3527 = vld [vmem:[#allocation2 + $0x150] sm:$0xff]
          %v3528 = vld [vmem:[#allocation2 + $0x158] sm:$0xff]
          %v3529 = vld [vmem:[#allocation2 + $0x160] sm:$0xff]
          %v3530 = vld [vmem:[#allocation2 + $0x168] sm:$0xff]
          %v3531 = vld [vmem:[#allocation2 + $0x170] sm:$0xff]
          %v3532 = vld [vmem:[#allocation2 + $0x178] sm:$0xff]
          %v3533 = vld [vmem:[#allocation2 + $0x180] sm:$0xff]
          %v3534 = vld [vmem:[#allocation2 + $0x188] sm:$0xff]
          %v3535 = vld [vmem:[#allocation2 + $0x190] sm:$0xff]
          %v3536 = vld [vmem:[#allocation2 + $0x198] sm:$0xff]
          %v3537 = vld [vmem:[#allocation2 + $0x1a0] sm:$0xff]
          %v3538 = vld [vmem:[#allocation2 + $0x1a8] sm:$0xff]
          %v3539 = vld [vmem:[#allocation2 + $0x1b0] sm:$0xff]
          %v3540 = vld [vmem:[#allocation2 + $0x1b8] sm:$0xff]
          %v3541 = vld [vmem:[#allocation2 + $0x1c0] sm:$0xff]
          %v3542 = vld [vmem:[#allocation2 + $0x1c8] sm:$0xff]
          %v3543 = vld [vmem:[#allocation2 + $0x1d0] sm:$0xff]
          %v3544 = vld [vmem:[#allocation2 + $0x1d8] sm:$0xff]
          %v3545 = vld [vmem:[#allocation2 + $0x1e0] sm:$0xff]
          %v3546 = vld [vmem:[#allocation2 + $0x1e8] sm:$0xff]
          %v3547 = vld [vmem:[#allocation2 + $0x1f0] sm:$0xff]
          %v3548 = vld [vmem:[#allocation2 + $0x1f8] sm:$0xff]
          %v3549 = vld [vmem:[%s4] sm:$0xf]
          %v3551 = vlaneseq
          %v3552 = vshrl.u32 %v3551, 7
          %v3553 = vsub.s32 0, %v3552
          %v3554 = vrot.slane %v3549, %v3553
          %v3555 = vlaneseq
          %v3556 = vshrl.u32 %v3555, 7
          %v3557 = vsub.s32 1, %v3556
          %v3558 = vrot.slane %v3549, %v3557
          %v3559 = vlaneseq
          %v3560 = vshrl.u32 %v3559, 7
          %v3561 = vsub.s32 2, %v3560
          %v3562 = vrot.slane %v3549, %v3561
          %v3563 = vlaneseq
          %v3564 = vshrl.u32 %v3563, 7
          %v3565 = vsub.s32 3, %v3564
          %v3566 = vrot.slane %v3549, %v3565
          %v3571 = vmul.f32 %v3485, %v3554
          %v3572 = vmul.f32 %v3486, %v3558
          %v3573 = vmul.f32 %v3487, %v3562
          %v3574 = vmul.f32 %v3488, %v3566
          %v3575 = vmul.f32 %v3489, %v3554
          %v3576 = vmul.f32 %v3490, %v3558
          %v3577 = vmul.f32 %v3491, %v3562
          %v3578 = vmul.f32 %v3492, %v3566
          %v3579 = vmul.f32 %v3493, %v3554
          %v3580 = vmul.f32 %v3494, %v3558
          %v3581 = vmul.f32 %v3495, %v3562
          %v3582 = vmul.f32 %v3496, %v3566
          %v3583 = vmul.f32 %v3497, %v3554
          %v3584 = vmul.f32 %v3498, %v3558
          %v3585 = vmul.f32 %v3499, %v3562
          %v3586 = vmul.f32 %v3500, %v3566
          %v3587 = vmul.f32 %v3501, %v3554
          %v3588 = vmul.f32 %v3502, %v3558
          %v3589 = vmul.f32 %v3503, %v3562
          %v3590 = vmul.f32 %v3504, %v3566
          %v3591 = vmul.f32 %v3505, %v3554
          %v3592 = vmul.f32 %v3506, %v3558
          %v3593 = vmul.f32 %v3507, %v3562
          %v3594 = vmul.f32 %v3508, %v3566
          %v3595 = vmul.f32 %v3509, %v3554
          %v3596 = vmul.f32 %v3510, %v3558
          %v3597 = vmul.f32 %v3511, %v3562
          %v3598 = vmul.f32 %v3512, %v3566
          %v3599 = vmul.f32 %v3513, %v3554
          %v3600 = vmul.f32 %v3514, %v3558
          %v3601 = vmul.f32 %v3515, %v3562
          %v3602 = vmul.f32 %v3516, %v3566
          %v3603 = vmul.f32 %v3517, %v3554
          %v3604 = vmul.f32 %v3518, %v3558
          %v3605 = vmul.f32 %v3519, %v3562
          %v3606 = vmul.f32 %v3520, %v3566
          %v3607 = vmul.f32 %v3521, %v3554
          %v3608 = vmul.f32 %v3522, %v3558
          %v3609 = vmul.f32 %v3523, %v3562
          %v3610 = vmul.f32 %v3524, %v3566
          %v3611 = vmul.f32 %v3525, %v3554
          %v3612 = vmul.f32 %v3526, %v3558
          %v3613 = vmul.f32 %v3527, %v3562
          %v3614 = vmul.f32 %v3528, %v3566
          %v3615 = vmul.f32 %v3529, %v3554
          %v3616 = vmul.f32 %v3530, %v3558
          %v3617 = vmul.f32 %v3531, %v3562
          %v3618 = vmul.f32 %v3532, %v3566
          %v3619 = vmul.f32 %v3533, %v3554
          %v3620 = vmul.f32 %v3534, %v3558
          %v3621 = vmul.f32 %v3535, %v3562
          %v3622 = vmul.f32 %v3536, %v3566
          %v3623 = vmul.f32 %v3537, %v3554
          %v3624 = vmul.f32 %v3538, %v3558
          %v3625 = vmul.f32 %v3539, %v3562
          %v3626 = vmul.f32 %v3540, %v3566
          %v3627 = vmul.f32 %v3541, %v3554
          %v3628 = vmul.f32 %v3542, %v3558
          %v3629 = vmul.f32 %v3543, %v3562
          %v3630 = vmul.f32 %v3544, %v3566
          %v3631 = vmul.f32 %v3545, %v3554
          %v3632 = vmul.f32 %v3546, %v3558
          %v3633 = vmul.f32 %v3547, %v3562
          %v3634 = vmul.f32 %v3548, %v3566
          %3635 = vst [vmem:[%s452] sm:$0xff] %v3571
          %3636 = vst [vmem:[%s452 + $0x8] sm:$0xff] %v3572
          %3637 = vst [vmem:[%s452 + $0x10] sm:$0xff] %v3573
          %3638 = vst [vmem:[%s452 + $0x18] sm:$0xff] %v3574
          %3639 = vst [vmem:[%s452 + $0x20] sm:$0xff] %v3575
          %3640 = vst [vmem:[%s452 + $0x28] sm:$0xff] %v3576
          %3641 = vst [vmem:[%s452 + $0x30] sm:$0xff] %v3577
          %3642 = vst [vmem:[%s452 + $0x38] sm:$0xff] %v3578
          %3643 = vst [vmem:[%s452 + $0x40] sm:$0xff] %v3579
          %3644 = vst [vmem:[%s452 + $0x48] sm:$0xff] %v3580
          %3645 = vst [vmem:[%s452 + $0x50] sm:$0xff] %v3581
          %3646 = vst [vmem:[%s452 + $0x58] sm:$0xff] %v3582
          %3647 = vst [vmem:[%s452 + $0x60] sm:$0xff] %v3583
          %3648 = vst [vmem:[%s452 + $0x68] sm:$0xff] %v3584
          %3649 = vst [vmem:[%s452 + $0x70] sm:$0xff] %v3585
          %3650 = vst [vmem:[%s452 + $0x78] sm:$0xff] %v3586
          %3651 = vst [vmem:[%s452 + $0x80] sm:$0xff] %v3587
          %3652 = vst [vmem:[%s452 + $0x88] sm:$0xff] %v3588
          %3653 = vst [vmem:[%s452 + $0x90] sm:$0xff] %v3589
          %3654 = vst [vmem:[%s452 + $0x98] sm:$0xff] %v3590
          %3655 = vst [vmem:[%s452 + $0xa0] sm:$0xff] %v3591
          %3656 = vst [vmem:[%s452 + $0xa8] sm:$0xff] %v3592
          %3657 = vst [vmem:[%s452 + $0xb0] sm:$0xff] %v3593
          %3658 = vst [vmem:[%s452 + $0xb8] sm:$0xff] %v3594
          %3659 = vst [vmem:[%s452 + $0xc0] sm:$0xff] %v3595
          %3660 = vst [vmem:[%s452 + $0xc8] sm:$0xff] %v3596
          %3661 = vst [vmem:[%s452 + $0xd0] sm:$0xff] %v3597
          %3662 = vst [vmem:[%s452 + $0xd8] sm:$0xff] %v3598
          %3663 = vst [vmem:[%s452 + $0xe0] sm:$0xff] %v3599
          %3664 = vst [vmem:[%s452 + $0xe8] sm:$0xff] %v3600
          %3665 = vst [vmem:[%s452 + $0xf0] sm:$0xff] %v3601
          %3666 = vst [vmem:[%s452 + $0xf8] sm:$0xff] %v3602
          %3667 = vst [vmem:[%s452 + $0x100] sm:$0xff] %v3603
          %3668 = vst [vmem:[%s452 + $0x108] sm:$0xff] %v3604
          %3669 = vst [vmem:[%s452 + $0x110] sm:$0xff] %v3605
          %3670 = vst [vmem:[%s452 + $0x118] sm:$0xff] %v3606
          %3671 = vst [vmem:[%s452 + $0x120] sm:$0xff] %v3607
          %3672 = vst [vmem:[%s452 + $0x128] sm:$0xff] %v3608
          %3673 = vst [vmem:[%s452 + $0x130] sm:$0xff] %v3609
          %3674 = vst [vmem:[%s452 + $0x138] sm:$0xff] %v3610
          %3675 = vst [vmem:[%s452 + $0x140] sm:$0xff] %v3611
          %3676 = vst [vmem:[%s452 + $0x148] sm:$0xff] %v3612
          %3677 = vst [vmem:[%s452 + $0x150] sm:$0xff] %v3613
          %3678 = vst [vmem:[%s452 + $0x158] sm:$0xff] %v3614
          %3679 = vst [vmem:[%s452 + $0x160] sm:$0xff] %v3615
          %3680 = vst [vmem:[%s452 + $0x168] sm:$0xff] %v3616
          %3681 = vst [vmem:[%s452 + $0x170] sm:$0xff] %v3617
          %3682 = vst [vmem:[%s452 + $0x178] sm:$0xff] %v3618
          %3683 = vst [vmem:[%s452 + $0x180] sm:$0xff] %v3619
          %3684 = vst [vmem:[%s452 + $0x188] sm:$0xff] %v3620
          %3685 = vst [vmem:[%s452 + $0x190] sm:$0xff] %v3621
          %3686 = vst [vmem:[%s452 + $0x198] sm:$0xff] %v3622
          %3687 = vst [vmem:[%s452 + $0x1a0] sm:$0xff] %v3623
          %3688 = vst [vmem:[%s452 + $0x1a8] sm:$0xff] %v3624
          %3689 = vst [vmem:[%s452 + $0x1b0] sm:$0xff] %v3625
          %3690 = vst [vmem:[%s452 + $0x1b8] sm:$0xff] %v3626
          %3691 = vst [vmem:[%s452 + $0x1c0] sm:$0xff] %v3627
          %3692 = vst [vmem:[%s452 + $0x1c8] sm:$0xff] %v3628
          %3693 = vst [vmem:[%s452 + $0x1d0] sm:$0xff] %v3629
          %3694 = vst [vmem:[%s452 + $0x1d8] sm:$0xff] %v3630
          %3695 = vst [vmem:[%s452 + $0x1e0] sm:$0xff] %v3631
          %3696 = vst [vmem:[%s452 + $0x1e8] sm:$0xff] %v3632
          %3697 = vst [vmem:[%s452 + $0x1f0] sm:$0xff] %v3633
          %3698 = vst [vmem:[%s452 + $0x1f8] sm:$0xff] %v3634
        $region80: #{tpu_custom_call.1} parent=47 // pred_fallthru
          _
        %s3699 = sand.u32 %s218, 1
        %s3700 = scalar_lea.sflag [#allocation5], %s3699
        %s3701 = sand.u32 %s218, 1
        %s3702 = smul.addr %s3701, 512
        %s3703 = scalar_lea.vmem [#allocation14], %s3702
        // Predicated region
        $region81: #{tpu_custom_call.1} parent=47 // pred_check
          %p3704 = pneg %p228
        $region82: #{tpu_custom_call.1} parent=47 // pred_check_branch
          %3706 = sbr.rel (%p3704) target = $region84
        $region83: #{tpu_custom_call.1} parent=47 // pred_region
          %s3708 = ssub.s32 8192, 8192
          %3709 = vsyncadd %s3700, %s3708
          %s3710 = smul.addr %s35, 64
          %s3711 = smul.addr %s3710, 128
          %s3712 = scalar_lea.hbm %s7, %s3711
          %s3713 = sshll.u32 %s3703, 4
          %s3714 = int_to_ptr.vmem [resolvable:$true] %s3713
          %3719 = dma.vmem_to_hbm [thread:$0]  %s3714, 8192, %s3712, %s3700, 512, 512, 32
        $region84: #{tpu_custom_call.1} parent=47 // pred_fallthru
          _
      $region48: #{tpu_custom_call.1} parent=5 // pred_fallthru
        _
      %p3720 = scmp.le.s32.totalorder 2, %s26
      // Predicated region
      $region85: #{tpu_custom_call.1} parent=5 // pred_check
        %p3721 = pneg %p3720
      $region86: #{tpu_custom_call.1} parent=5 // pred_check_branch
        %3723 = sbr.rel (%p3721) target = $region88
      $region87: #{tpu_custom_call.1} parent=5 // pred_region
        %s3724 = ssub.s32 %s26, 2
        // Predicated region
        $region89: #{tpu_custom_call.1} parent=87 // pred_check
          %p3725 = pneg %p234
        $region90: #{tpu_custom_call.1} parent=87 // pred_check_branch
          %3727 = sbr.rel (%p3725) target = $region92
        $region91: #{tpu_custom_call.1} parent=87 // pred_region
          %s3728 = sand.u32 %s219, 1
          %s3729 = scalar_lea.sflag [#allocation5], %s3728
          %s3730 = sand.u32 %s219, 1
          %s3731 = smul.addr %s3730, 512
          %s3732 = scalar_lea.vmem [#allocation14], %s3731
          %3733 = dma.done %s3729, 8192
        $region92: #{tpu_custom_call.1} parent=87 // pred_fallthru
          _
      $region88: #{tpu_custom_call.1} parent=5 // pred_fallthru
        _
    $region6: #{tpu_custom_call.1} parent=1 // loop_footer
      %s30 = sadd.s32 1, %s26
    $region7: #{tpu_custom_call.1} parent=1 // loop_footer_branch
      %25 = sbr.rel target = $region3
    $region8: #{tpu_custom_call.1} parent=1 // loop_exit
      _
    %3734 = vsyncpa [#allocation4], 1
    %s3735 = scalar_lea.sflag [#allocation4], 1
    %3736 = vsyncpa %s3735, 1
    %3737 = vsyncpa [#allocation7], 1
    %s3738 = scalar_lea.sflag [#allocation7], 1
    %3739 = vsyncpa %s3738, 1
    %3740 = vsyncpa [#allocation10], 1
    %s3741 = scalar_lea.sflag [#allocation10], 1
    %3742 = vsyncpa %s3741, 1
    %3743 = vsyncpa [#allocation13], 1
    %3744 = vsyncpa [#allocation5], 1
    %s3745 = scalar_lea.sflag [#allocation5], 1
    %3746 = vsyncpa %s3745, 1

</llo_original>
